<compile_context>
chip_gen: v5e
topology: v5e:2x2
jax: 0.10.0
libtpu: 0.0.40
codegen_flags: <defaults>
</compile_context>

<pallas_src>
import functools
import numpy as np
import jax
import jax.numpy as jnp
from jax import lax
from jax.experimental import pallas as pl
from jax.experimental.pallas import tpu as pltpu


# ----------------------------------------------------------------------------
# Fused kernel: GRU stack (unrolled over time, wavefronted across layers)
#               + running sum over time + fc head with masked BatchNorm.
# ----------------------------------------------------------------------------
def _make_fused_kernel(n_layers, T, B, B_pad, Hp):
    def kernel(*refs):
        x_ref = refs[0]                               # (T*B_pad, In), time-major
        mask_ref = refs[1]                            # (B_pad, 1): 1.0 real row, 0.0 pad
        gru_refs = refs[2:2 + 4 * n_layers]           # per layer: wi, wh, bi, bhn
        (w1_ref, b1_ref, g1_ref, be1_ref,
         w2_ref, b2_ref, g2_ref, be2_ref,
         w3_ref, b3_ref, out_ref) = refs[2 + 4 * n_layers:]

        # Lane-aligned gate offsets (each gate block is a full 128-lane tile).
        G0, G1, G2 = 0, Hp, 2 * Hp

        def gru_cell(xp_t, h, wh, bhn):
            # xp_t: (B_pad, 3*Hp) input-side projection (+ fused r/z biases)
            gh = jnp.dot(h, wh, preferred_element_type=jnp.float32)
            r = jax.nn.sigmoid(xp_t[:, G0:G0 + Hp] + gh[:, G0:G0 + Hp])
            z = jax.nn.sigmoid(xp_t[:, G1:G1 + Hp] + gh[:, G1:G1 + Hp])
            n = jnp.tanh(xp_t[:, G2:G2 + Hp] + r * (gh[:, G2:G2 + Hp] + bhn))
            return (1.0 - z) * n + z * h

        # Weights loaded once (VMEM-resident).
        wis = [gru_refs[4 * l + 0][...] for l in range(n_layers)]
        whs = [gru_refs[4 * l + 1][...] for l in range(n_layers)]
        bis = [gru_refs[4 * l + 2][...] for l in range(n_layers)]
        bhns = [gru_refs[4 * l + 3][...] for l in range(n_layers)]

        # Layer-0 input-side GEMM hoisted over the whole sequence (one MXU pass).
        xp0 = jnp.dot(x_ref[...], wis[0],
                      preferred_element_type=jnp.float32) + bis[0]   # (T*B_pad, 3*Hp)

        # Wavefronted recurrence: deeper layers project per timestep; running
        # time-sum of the last layer's hidden state replaces r_out.sum(dim=1).
        h = [jnp.zeros((B_pad, Hp), jnp.float32) for _ in range(n_layers)]
        s = jnp.zeros((B_pad, Hp), jnp.float32)
        for t in range(T):                                           # static unroll
            xt = xp0[t * B_pad:(t + 1) * B_pad, :]                   # sublane-aligned
            h[0] = gru_cell(xt, h[0], whs[0], bhns[0])
            for l in range(1, n_layers):
                xp_l = jnp.dot(h[l - 1], wis[l],
                               preferred_element_type=jnp.float32) + bis[l]
                h[l] = gru_cell(xp_l, h[l], whs[l], bhns[l])
            s = s + h[n_layers - 1]

        # ---------------- fc head (BatchNorm over the REAL batch rows only) --
        eps = 1e-5
        inv_b = 1.0 / B
        mask = mask_ref[...]                                         # (B_pad, 1)

        # Linear 1 + BatchNorm1d (batch stats, biased var) + ReLU
        h1 = jnp.dot(s, w1_ref[...], preferred_element_type=jnp.float32) + b1_ref[...]
        mu1 = jnp.sum(h1 * mask, axis=0, keepdims=True) * inv_b
        d1 = h1 - mu1
        var1 = jnp.sum(d1 * d1 * mask, axis=0, keepdims=True) * inv_b
        h1 = jnp.maximum(d1 * lax.rsqrt(var1 + eps) * g1_ref[...] + be1_ref[...], 0.0)

        # Linear 2 + BatchNorm1d (no ReLU here, per the module)
        h2 = jnp.dot(h1, w2_ref[...], preferred_element_type=jnp.float32) + b2_ref[...]
        mu2 = jnp.sum(h2 * mask, axis=0, keepdims=True) * inv_b
        d2 = h2 - mu2
        var2 = jnp.sum(d2 * d2 * mask, axis=0, keepdims=True) * inv_b
        h2 = d2 * lax.rsqrt(var2 + eps) * g2_ref[...] + be2_ref[...]

        # Linear 3 + ReLU (output padded to a full 128-lane tile -> dense vst)
        h3 = jnp.dot(h2, w3_ref[...], preferred_element_type=jnp.float32) + b3_ref[...]
        out_ref[...] = jnp.maximum(h3, 0.0)

    return kernel


# ----------------------------------------------------------------------------
# Full forward (jitted glue around the single fused Pallas kernel).
# ----------------------------------------------------------------------------
@functools.partial(jax.jit, static_argnums=(2, 3))
def concept_learner_gru_forward(x, params, vocab_size, max_repeat):
    # x: (B, T, input_size) batch_first, like the PyTorch module.
    B, T, In = x.shape
    n_layers = len(params["gru"])
    Hp = params["gru"][0]["wh"].shape[0]            # padded hidden width (lanes)
    mid_p = params["fc"]["w1"].shape[1]
    out_p = params["fc"]["w3"].shape[1]
    out_dim = vocab_size * max_repeat

    B_pad = max(8, -(-B // 8) * 8)                   # sublane-tile-aligned batch

    # Zero-pad batch, go time-major; tiny reshape fused by jit into the program.
    x_pad = jnp.zeros((B_pad, T, In), jnp.float32).at[:B].set(x.astype(jnp.float32))
    x2d = jnp.transpose(x_pad, (1, 0, 2)).reshape(T * B_pad, In)
    mask = (jnp.arange(B_pad) < B).astype(jnp.float32).reshape(B_pad, 1)

    args = [x2d, mask]
    for lp in params["gru"]:
        args += [lp["wi"], lp["wh"], lp["bi"], lp["bhn"]]
    fp = params["fc"]
    args += [fp["w1"], fp["b1"], fp["g1"], fp["be1"],
             fp["w2"], fp["b2"], fp["g2"], fp["be2"],
             fp["w3"], fp["b3"]]

    # Advisory cost estimate (fc GEMMs dominate the flops at these sizes).
    gru_flops = (2 * T * B_pad * In * 3 * Hp
                 + 2 * T * n_layers * B_pad * Hp * 3 * Hp
                 + 2 * T * (n_layers - 1) * B_pad * Hp * 3 * Hp)
    fc_flops = 2 * B_pad * (Hp * mid_p + mid_p * mid_p + mid_p * out_p)
    bytes_accessed = 4 * (sum(int(np.prod(a.shape)) for a in args) + B_pad * out_p)
    transcendentals = 3 * T * n_layers * B_pad * Hp

    out_flat = pl.pallas_call(
        _make_fused_kernel(n_layers, T, B, B_pad, Hp),
        out_shape=jax.ShapeDtypeStruct((B_pad, out_p), jnp.float32),
        in_specs=[pl.BlockSpec(memory_space=pltpu.MemorySpace.VMEM)] * len(args),
        out_specs=pl.BlockSpec(memory_space=pltpu.MemorySpace.VMEM),
        compiler_params=pltpu.CompilerParams(
            vmem_limit_bytes=32 * 1024 * 1024),      # safe on v5e/v6e/v7x
        cost_estimate=pl.CostEstimate(
            flops=int(gru_flops + fc_flops),
            transcendentals=int(transcendentals),
            bytes_accessed=int(bytes_accessed)),
    )(*args)
    return out_flat[:B, :out_dim].reshape(B, vocab_size, max_repeat)


# ----------------------------------------------------------------------------
# Parameter construction (deterministic, PyTorch-like uniform init).
# Weights are stored pre-transposed (in, out), pre-fused and LANE-PADDED so
# every gate block occupies a full 128-lane tile:
#   wi  : (in_p, 3*Hp)  = [W_ir | W_iz | W_in]^T, each gate in its own 128 tile
#   wh  : (Hp,  3*Hp)
#   bi  : (1,   3*Hp)   = [b_ir+b_hr | b_iz+b_hz | b_in]
#   bhn : (1,   Hp)     (must remain inside r * (...))
# Padded lanes/rows are zero, so padded hidden lanes stay exactly 0 through the
# recurrence and the math for the real lanes is unchanged.
# ----------------------------------------------------------------------------
def init_params(key, input_size, hidden, n_layers, vocab_size, max_repeat):
    Hp = max(128, -(-hidden // 128) * 128)
    mid = 20 * hidden
    mid_p = max(128, -(-mid // 128) * 128)
    out_dim = vocab_size * max_repeat
    out_p = max(128, -(-out_dim // 128) * 128)

    def unif(k, shape, bound):
        return jax.random.uniform(k, shape, jnp.float32, -bound, bound)

    params = {"gru": [], "fc": {}}
    kb = 1.0 / np.sqrt(hidden)
    for layer in range(n_layers):
        in_dim = input_size if layer == 0 else hidden
        in_dim_p = input_size if layer == 0 else Hp
        keys = jax.random.split(jax.random.fold_in(key, layer), 12)
        wir = unif(keys[0], (in_dim, hidden), kb)
        wiz = unif(keys[1], (in_dim, hidden), kb)
        win = unif(keys[2], (in_dim, hidden), kb)
        whr = unif(keys[3], (hidden, hidden), kb)
        whz = unif(keys[4], (hidden, hidden), kb)
        whn = unif(keys[5], (hidden, hidden), kb)
        bir = unif(keys[6], (1, hidden), kb)
        biz = unif(keys[7], (1, hidden), kb)
        bin_ = unif(keys[8], (1, hidden), kb)
        bhr = unif(keys[9], (1, hidden), kb)
        bhz = unif(keys[10], (1, hidden), kb)
        bhn = unif(keys[11], (1, hidden), kb)

        wi = jnp.zeros((in_dim_p, 3 * Hp), jnp.float32)
        wi = wi.at[:in_dim, 0:hidden].set(wir)
        wi = wi.at[:in_dim, Hp:Hp + hidden].set(wiz)
        wi = wi.at[:in_dim, 2 * Hp:2 * Hp + hidden].set(win)

        wh = jnp.zeros((Hp, 3 * Hp), jnp.float32)
        wh = wh.at[:hidden, 0:hidden].set(whr)
        wh = wh.at[:hidden, Hp:Hp + hidden].set(whz)
        wh = wh.at[:hidden, 2 * Hp:2 * Hp + hidden].set(whn)

        bi = jnp.zeros((1, 3 * Hp), jnp.float32)
        bi = bi.at[:, 0:hidden].set(bir + bhr)
        bi = bi.at[:, Hp:Hp + hidden].set(biz + bhz)
        bi = bi.at[:, 2 * Hp:2 * Hp + hidden].set(bin_)

        bhn_p = jnp.zeros((1, Hp), jnp.float32).at[:, :hidden].set(bhn)
        params["gru"].append({"wi": wi, "wh": wh, "bi": bi, "bhn": bhn_p})

    kf = jax.random.split(jax.random.fold_in(key, 1000), 6)
    k1 = 1.0 / np.sqrt(hidden)
    k2 = 1.0 / np.sqrt(mid)
    w1 = jnp.zeros((Hp, mid_p), jnp.float32).at[:hidden, :mid].set(
        unif(kf[0], (hidden, mid), k1))
    b1 = jnp.zeros((1, mid_p), jnp.float32).at[:, :mid].set(unif(kf[1], (1, mid), k1))
    w2 = jnp.zeros((mid_p, mid_p), jnp.float32).at[:mid, :mid].set(
        unif(kf[2], (mid, mid), k2))
    b2 = jnp.zeros((1, mid_p), jnp.float32).at[:, :mid].set(unif(kf[3], (1, mid), k2))
    w3 = jnp.zeros((mid_p, out_p), jnp.float32).at[:mid, :out_dim].set(
        unif(kf[4], (mid, out_dim), k2))
    b3 = jnp.zeros((1, out_p), jnp.float32).at[:, :out_dim].set(
        unif(kf[5], (1, out_dim), k2))
    params["fc"] = {
        "w1": w1, "b1": b1,
        "g1": jnp.ones((1, mid_p), jnp.float32), "be1": jnp.zeros((1, mid_p), jnp.float32),
        "w2": w2, "b2": b2,
        "g2": jnp.ones((1, mid_p), jnp.float32), "be2": jnp.zeros((1, mid_p), jnp.float32),
        "w3": w3, "b3": b3,
    }
    return params


# ----------------------------------------------------------------------------
# Host-side post-processing replicating the module's aligned_chars logic.
# TODO(synk): string assembly / per-example vocab lookup has no Pallas
#             equivalent (Python object / string ops); kept on host.
# ----------------------------------------------------------------------------
def build_aligned_chars(out_np, kwargs, target_scores=None):
    B = out_np.shape[0]
    flat = out_np.reshape(B, -1)
    values = -np.sort(-flat, axis=1)  # descending sort per example
    aligned_chars = []
    for i in range(B):
        if target_scores is None:
            thresh = kwargs["index_score_upper_bound"] * (
                1 - kwargs["index_score_lower_bound_rate"])
            num_select = max(1, int((out_np[i] > thresh).sum()))
        else:
            nz = target_scores[i][target_scores[i] != 0.0]
            num_select = max(1, int((out_np[i] > 0.8 * nz.min()).sum()))
        atoms = []
        for stop in range(num_select):
            v = values[i][stop]
            vocab_idx = int(np.argwhere(out_np[i] == v)[0][0])
            atoms.append(kwargs["vocab"][vocab_idx])
        aligned_chars.append(np.array(atoms, dtype=object).sum())
    return aligned_chars


if __name__ == "__main__":
    kwargs = {
        "input_size": 32,
        "rnn_n_hidden": 32,
        "rnn_n_layers": 2,
        "drop_prob": 0.0,   # dropout is a no-op here (inference semantics)
        "vocab": ["A", "B", "C", "D", "E", "F", "G", "H"],
        "output_size": 8,   # == len(vocab)
        "max_num_atom_repeat": 4,
        "index_score_upper_bound": 5.0,
        "index_score_lower_bound_rate": 0.8,
    }
    B, T = 2, 8
    V = len(kwargs["vocab"])
    R = kwargs["max_num_atom_repeat"]

    key = jax.random.PRNGKey(0)
    kx, kp = jax.random.split(key)
    x = jax.random.normal(kx, (B, T, kwargs["input_size"]), jnp.float32)
    params = init_params(kp, kwargs["input_size"], kwargs["rnn_n_hidden"],
                         kwargs["rnn_n_layers"], V, R)

    out = concept_learner_gru_forward(x, params, V, R)
    out = jax.block_until_ready(out)
    assert out.shape == (B, V, R) and out.dtype == jnp.float32
    assert bool(jnp.all(jnp.isfinite(out)))

    aligned_chars = build_aligned_chars(np.asarray(out), kwargs)
    assert len(aligned_chars) == B and all(isinstance(a, str) for a in aligned_chars)

    print("KERNEL_OK")
</pallas_src>

<mosaic_0001>
module attributes {stable_mosaic.version = 11 : i64} {
  func.func @kernel(%arg0: memref<64x32xf32, #tpu.memory_space<vmem>>, %arg1: memref<8x1xf32, #tpu.memory_space<vmem>>, %arg2: memref<32x384xf32, #tpu.memory_space<vmem>>, %arg3: memref<128x384xf32, #tpu.memory_space<vmem>>, %arg4: memref<1x384xf32, #tpu.memory_space<vmem>>, %arg5: memref<1x128xf32, #tpu.memory_space<vmem>>, %arg6: memref<128x384xf32, #tpu.memory_space<vmem>>, %arg7: memref<128x384xf32, #tpu.memory_space<vmem>>, %arg8: memref<1x384xf32, #tpu.memory_space<vmem>>, %arg9: memref<1x128xf32, #tpu.memory_space<vmem>>, %arg10: memref<128x640xf32, #tpu.memory_space<vmem>>, %arg11: memref<1x640xf32, #tpu.memory_space<vmem>>, %arg12: memref<1x640xf32, #tpu.memory_space<vmem>>, %arg13: memref<1x640xf32, #tpu.memory_space<vmem>>, %arg14: memref<640x640xf32, #tpu.memory_space<vmem>>, %arg15: memref<1x640xf32, #tpu.memory_space<vmem>>, %arg16: memref<1x640xf32, #tpu.memory_space<vmem>>, %arg17: memref<1x640xf32, #tpu.memory_space<vmem>>, %arg18: memref<640x128xf32, #tpu.memory_space<vmem>>, %arg19: memref<1x128xf32, #tpu.memory_space<vmem>>, %arg20: memref<8x128xf32, #tpu.memory_space<vmem>>) attributes {dimension_semantics = [], scalar_prefetch = 0 : i64, scratch_operands = 0 : i64, tpu.core_type = #tpu.core_type<tc>} {
    %c0 = arith.constant 0 : index
    %c0_0 = arith.constant 0 : index
    %0 = vector.load %arg2[%c0, %c0_0] : memref<32x384xf32, #tpu.memory_space<vmem>>, vector<32x384xf32>
    %c0_1 = arith.constant 0 : index
    %c0_2 = arith.constant 0 : index
    %1 = vector.load %arg6[%c0_1, %c0_2] : memref<128x384xf32, #tpu.memory_space<vmem>>, vector<128x384xf32>
    %c0_3 = arith.constant 0 : index
    %c0_4 = arith.constant 0 : index
    %2 = vector.load %arg3[%c0_3, %c0_4] : memref<128x384xf32, #tpu.memory_space<vmem>>, vector<128x384xf32>
    %c0_5 = arith.constant 0 : index
    %c0_6 = arith.constant 0 : index
    %3 = vector.load %arg7[%c0_5, %c0_6] : memref<128x384xf32, #tpu.memory_space<vmem>>, vector<128x384xf32>
    %c0_7 = arith.constant 0 : index
    %c0_8 = arith.constant 0 : index
    %4 = vector.load %arg4[%c0_7, %c0_8] : memref<1x384xf32, #tpu.memory_space<vmem>>, vector<1x384xf32>
    %c0_9 = arith.constant 0 : index
    %c0_10 = arith.constant 0 : index
    %5 = vector.load %arg8[%c0_9, %c0_10] : memref<1x384xf32, #tpu.memory_space<vmem>>, vector<1x384xf32>
    %c0_11 = arith.constant 0 : index
    %c0_12 = arith.constant 0 : index
    %6 = vector.load %arg5[%c0_11, %c0_12] : memref<1x128xf32, #tpu.memory_space<vmem>>, vector<1x128xf32>
    %c0_13 = arith.constant 0 : index
    %c0_14 = arith.constant 0 : index
    %7 = vector.load %arg9[%c0_13, %c0_14] : memref<1x128xf32, #tpu.memory_space<vmem>>, vector<1x128xf32>
    %c0_15 = arith.constant 0 : index
    %c0_16 = arith.constant 0 : index
    %8 = vector.load %arg0[%c0_15, %c0_16] : memref<64x32xf32, #tpu.memory_space<vmem>>, vector<64x32xf32>
    %cst = arith.constant dense<0.000000e+00> : vector<64x384xf32>
    %9 = tpu.matmul %8, %0, %cst {dimension_numbers = #tpu.dot_dimension_numbers<[1], [0], [0], [1], [0, 0, 1, 1], [], []>} : vector<64x32xf32>, vector<32x384xf32>, vector<64x384xf32> -> vector<64x384xf32>
    %10 = vector.broadcast %4 : vector<1x384xf32> to vector<64x384xf32>
    %11 = arith.addf %9, %10 : vector<64x384xf32>
    %cst_17 = arith.constant 0.000000e+00 : f32
    %12 = vector.broadcast %cst_17 : f32 to vector<8x128xf32>
    %cst_18 = arith.constant 0.000000e+00 : f32
    %13 = vector.broadcast %cst_18 : f32 to vector<8x128xf32>
    %cst_19 = arith.constant 0.000000e+00 : f32
    %14 = vector.broadcast %cst_19 : f32 to vector<8x128xf32>
    %15 = vector.extract_strided_slice %11 {offsets = [0, 0], sizes = [8, 384], strides = [1, 1]} : vector<64x384xf32> to vector<8x384xf32>
    %cst_20 = arith.constant dense<0.000000e+00> : vector<8x384xf32>
    %16 = tpu.matmul %12, %2, %cst_20 {dimension_numbers = #tpu.dot_dimension_numbers<[1], [0], [0], [1], [0, 0, 1, 1], [], []>} : vector<8x128xf32>, vector<128x384xf32>, vector<8x384xf32> -> vector<8x384xf32>
    %17 = vector.extract_strided_slice %15 {offsets = [0, 0], sizes = [8, 128], strides = [1, 1]} : vector<8x384xf32> to vector<8x128xf32>
    %18 = vector.extract_strided_slice %16 {offsets = [0, 0], sizes = [8, 128], strides = [1, 1]} : vector<8x384xf32> to vector<8x128xf32>
    %19 = arith.addf %17, %18 : vector<8x128xf32>
    %20 = arith.negf %19 : vector<8x128xf32>
    %21 = math.exp %20 : vector<8x128xf32>
    %cst_21 = arith.constant 1.000000e+00 : f32
    %22 = vector.broadcast %cst_21 : f32 to vector<8x128xf32>
    %23 = arith.addf %22, %21 : vector<8x128xf32>
    %24 = arith.divf %22, %23 : vector<8x128xf32>
    %25 = vector.extract_strided_slice %15 {offsets = [0, 128], sizes = [8, 128], strides = [1, 1]} : vector<8x384xf32> to vector<8x128xf32>
    %26 = vector.extract_strided_slice %16 {offsets = [0, 128], sizes = [8, 128], strides = [1, 1]} : vector<8x384xf32> to vector<8x128xf32>
    %27 = arith.addf %25, %26 : vector<8x128xf32>
    %28 = arith.negf %27 : vector<8x128xf32>
    %29 = math.exp %28 : vector<8x128xf32>
    %cst_22 = arith.constant 1.000000e+00 : f32
    %30 = vector.broadcast %cst_22 : f32 to vector<8x128xf32>
    %31 = arith.addf %30, %29 : vector<8x128xf32>
    %32 = arith.divf %30, %31 : vector<8x128xf32>
    %33 = vector.extract_strided_slice %15 {offsets = [0, 256], sizes = [8, 128], strides = [1, 1]} : vector<8x384xf32> to vector<8x128xf32>
    %34 = vector.extract_strided_slice %16 {offsets = [0, 256], sizes = [8, 128], strides = [1, 1]} : vector<8x384xf32> to vector<8x128xf32>
    %35 = vector.broadcast %6 : vector<1x128xf32> to vector<8x128xf32>
    %36 = arith.addf %34, %35 : vector<8x128xf32>
    %37 = arith.mulf %24, %36 : vector<8x128xf32>
    %38 = arith.addf %33, %37 : vector<8x128xf32>
    %39 = math.tanh %38 : vector<8x128xf32>
    %cst_23 = arith.constant 1.000000e+00 : f32
    %40 = vector.broadcast %cst_23 : f32 to vector<8x128xf32>
    %41 = arith.subf %40, %32 : vector<8x128xf32>
    %42 = arith.mulf %41, %39 : vector<8x128xf32>
    %43 = arith.mulf %32, %12 : vector<8x128xf32>
    %44 = arith.addf %42, %43 : vector<8x128xf32>
    %cst_24 = arith.constant dense<0.000000e+00> : vector<8x384xf32>
    %45 = tpu.matmul %44, %1, %cst_24 {dimension_numbers = #tpu.dot_dimension_numbers<[1], [0], [0], [1], [0, 0, 1, 1], [], []>} : vector<8x128xf32>, vector<128x384xf32>, vector<8x384xf32> -> vector<8x384xf32>
    %46 = vector.broadcast %5 : vector<1x384xf32> to vector<8x384xf32>
    %47 = arith.addf %45, %46 : vector<8x384xf32>
    %cst_25 = arith.constant dense<0.000000e+00> : vector<8x384xf32>
    %48 = tpu.matmul %13, %3, %cst_25 {dimension_numbers = #tpu.dot_dimension_numbers<[1], [0], [0], [1], [0, 0, 1, 1], [], []>} : vector<8x128xf32>, vector<128x384xf32>, vector<8x384xf32> -> vector<8x384xf32>
    %49 = vector.extract_strided_slice %47 {offsets = [0, 0], sizes = [8, 128], strides = [1, 1]} : vector<8x384xf32> to vector<8x128xf32>
    %50 = vector.extract_strided_slice %48 {offsets = [0, 0], sizes = [8, 128], strides = [1, 1]} : vector<8x384xf32> to vector<8x128xf32>
    %51 = arith.addf %49, %50 : vector<8x128xf32>
    %52 = arith.negf %51 : vector<8x128xf32>
    %53 = math.exp %52 : vector<8x128xf32>
    %cst_26 = arith.constant 1.000000e+00 : f32
    %54 = vector.broadcast %cst_26 : f32 to vector<8x128xf32>
    %55 = arith.addf %54, %53 : vector<8x128xf32>
    %56 = arith.divf %54, %55 : vector<8x128xf32>
    %57 = vector.extract_strided_slice %47 {offsets = [0, 128], sizes = [8, 128], strides = [1, 1]} : vector<8x384xf32> to vector<8x128xf32>
    %58 = vector.extract_strided_slice %48 {offsets = [0, 128], sizes = [8, 128], strides = [1, 1]} : vector<8x384xf32> to vector<8x128xf32>
    %59 = arith.addf %57, %58 : vector<8x128xf32>
    %60 = arith.negf %59 : vector<8x128xf32>
    %61 = math.exp %60 : vector<8x128xf32>
    %cst_27 = arith.constant 1.000000e+00 : f32
    %62 = vector.broadcast %cst_27 : f32 to vector<8x128xf32>
    %63 = arith.addf %62, %61 : vector<8x128xf32>
    %64 = arith.divf %62, %63 : vector<8x128xf32>
    %65 = vector.extract_strided_slice %47 {offsets = [0, 256], sizes = [8, 128], strides = [1, 1]} : vector<8x384xf32> to vector<8x128xf32>
    %66 = vector.extract_strided_slice %48 {offsets = [0, 256], sizes = [8, 128], strides = [1, 1]} : vector<8x384xf32> to vector<8x128xf32>
    %67 = vector.broadcast %7 : vector<1x128xf32> to vector<8x128xf32>
    %68 = arith.addf %66, %67 : vector<8x128xf32>
    %69 = arith.mulf %56, %68 : vector<8x128xf32>
    %70 = arith.addf %65, %69 : vector<8x128xf32>
    %71 = math.tanh %70 : vector<8x128xf32>
    %cst_28 = arith.constant 1.000000e+00 : f32
    %72 = vector.broadcast %cst_28 : f32 to vector<8x128xf32>
    %73 = arith.subf %72, %64 : vector<8x128xf32>
    %74 = arith.mulf %73, %71 : vector<8x128xf32>
    %75 = arith.mulf %64, %13 : vector<8x128xf32>
    %76 = arith.addf %74, %75 : vector<8x128xf32>
    %77 = arith.addf %14, %76 : vector<8x128xf32>
    %78 = vector.extract_strided_slice %11 {offsets = [8, 0], sizes = [8, 384], strides = [1, 1]} : vector<64x384xf32> to vector<8x384xf32>
    %cst_29 = arith.constant dense<0.000000e+00> : vector<8x384xf32>
    %79 = tpu.matmul %44, %2, %cst_29 {dimension_numbers = #tpu.dot_dimension_numbers<[1], [0], [0], [1], [0, 0, 1, 1], [], []>} : vector<8x128xf32>, vector<128x384xf32>, vector<8x384xf32> -> vector<8x384xf32>
    %80 = vector.extract_strided_slice %78 {offsets = [0, 0], sizes = [8, 128], strides = [1, 1]} : vector<8x384xf32> to vector<8x128xf32>
    %81 = vector.extract_strided_slice %79 {offsets = [0, 0], sizes = [8, 128], strides = [1, 1]} : vector<8x384xf32> to vector<8x128xf32>
    %82 = arith.addf %80, %81 : vector<8x128xf32>
    %83 = arith.negf %82 : vector<8x128xf32>
    %84 = math.exp %83 : vector<8x128xf32>
    %cst_30 = arith.constant 1.000000e+00 : f32
    %85 = vector.broadcast %cst_30 : f32 to vector<8x128xf32>
    %86 = arith.addf %85, %84 : vector<8x128xf32>
    %87 = arith.divf %85, %86 : vector<8x128xf32>
    %88 = vector.extract_strided_slice %78 {offsets = [0, 128], sizes = [8, 128], strides = [1, 1]} : vector<8x384xf32> to vector<8x128xf32>
    %89 = vector.extract_strided_slice %79 {offsets = [0, 128], sizes = [8, 128], strides = [1, 1]} : vector<8x384xf32> to vector<8x128xf32>
    %90 = arith.addf %88, %89 : vector<8x128xf32>
    %91 = arith.negf %90 : vector<8x128xf32>
    %92 = math.exp %91 : vector<8x128xf32>
    %cst_31 = arith.constant 1.000000e+00 : f32
    %93 = vector.broadcast %cst_31 : f32 to vector<8x128xf32>
    %94 = arith.addf %93, %92 : vector<8x128xf32>
    %95 = arith.divf %93, %94 : vector<8x128xf32>
    %96 = vector.extract_strided_slice %78 {offsets = [0, 256], sizes = [8, 128], strides = [1, 1]} : vector<8x384xf32> to vector<8x128xf32>
    %97 = vector.extract_strided_slice %79 {offsets = [0, 256], sizes = [8, 128], strides = [1, 1]} : vector<8x384xf32> to vector<8x128xf32>
    %98 = vector.broadcast %6 : vector<1x128xf32> to vector<8x128xf32>
    %99 = arith.addf %97, %98 : vector<8x128xf32>
    %100 = arith.mulf %87, %99 : vector<8x128xf32>
    %101 = arith.addf %96, %100 : vector<8x128xf32>
    %102 = math.tanh %101 : vector<8x128xf32>
    %cst_32 = arith.constant 1.000000e+00 : f32
    %103 = vector.broadcast %cst_32 : f32 to vector<8x128xf32>
    %104 = arith.subf %103, %95 : vector<8x128xf32>
    %105 = arith.mulf %104, %102 : vector<8x128xf32>
    %106 = arith.mulf %95, %44 : vector<8x128xf32>
    %107 = arith.addf %105, %106 : vector<8x128xf32>
    %cst_33 = arith.constant dense<0.000000e+00> : vector<8x384xf32>
    %108 = tpu.matmul %107, %1, %cst_33 {dimension_numbers = #tpu.dot_dimension_numbers<[1], [0], [0], [1], [0, 0, 1, 1], [], []>} : vector<8x128xf32>, vector<128x384xf32>, vector<8x384xf32> -> vector<8x384xf32>
    %109 = vector.broadcast %5 : vector<1x384xf32> to vector<8x384xf32>
    %110 = arith.addf %108, %109 : vector<8x384xf32>
    %cst_34 = arith.constant dense<0.000000e+00> : vector<8x384xf32>
    %111 = tpu.matmul %76, %3, %cst_34 {dimension_numbers = #tpu.dot_dimension_numbers<[1], [0], [0], [1], [0, 0, 1, 1], [], []>} : vector<8x128xf32>, vector<128x384xf32>, vector<8x384xf32> -> vector<8x384xf32>
    %112 = vector.extract_strided_slice %110 {offsets = [0, 0], sizes = [8, 128], strides = [1, 1]} : vector<8x384xf32> to vector<8x128xf32>
    %113 = vector.extract_strided_slice %111 {offsets = [0, 0], sizes = [8, 128], strides = [1, 1]} : vector<8x384xf32> to vector<8x128xf32>
    %114 = arith.addf %112, %113 : vector<8x128xf32>
    %115 = arith.negf %114 : vector<8x128xf32>
    %116 = math.exp %115 : vector<8x128xf32>
    %cst_35 = arith.constant 1.000000e+00 : f32
    %117 = vector.broadcast %cst_35 : f32 to vector<8x128xf32>
    %118 = arith.addf %117, %116 : vector<8x128xf32>
    %119 = arith.divf %117, %118 : vector<8x128xf32>
    %120 = vector.extract_strided_slice %110 {offsets = [0, 128], sizes = [8, 128], strides = [1, 1]} : vector<8x384xf32> to vector<8x128xf32>
    %121 = vector.extract_strided_slice %111 {offsets = [0, 128], sizes = [8, 128], strides = [1, 1]} : vector<8x384xf32> to vector<8x128xf32>
    %122 = arith.addf %120, %121 : vector<8x128xf32>
    %123 = arith.negf %122 : vector<8x128xf32>
    %124 = math.exp %123 : vector<8x128xf32>
    %cst_36 = arith.constant 1.000000e+00 : f32
    %125 = vector.broadcast %cst_36 : f32 to vector<8x128xf32>
    %126 = arith.addf %125, %124 : vector<8x128xf32>
    %127 = arith.divf %125, %126 : vector<8x128xf32>
    %128 = vector.extract_strided_slice %110 {offsets = [0, 256], sizes = [8, 128], strides = [1, 1]} : vector<8x384xf32> to vector<8x128xf32>
    %129 = vector.extract_strided_slice %111 {offsets = [0, 256], sizes = [8, 128], strides = [1, 1]} : vector<8x384xf32> to vector<8x128xf32>
    %130 = vector.broadcast %7 : vector<1x128xf32> to vector<8x128xf32>
    %131 = arith.addf %129, %130 : vector<8x128xf32>
    %132 = arith.mulf %119, %131 : vector<8x128xf32>
    %133 = arith.addf %128, %132 : vector<8x128xf32>
    %134 = math.tanh %133 : vector<8x128xf32>
    %cst_37 = arith.constant 1.000000e+00 : f32
    %135 = vector.broadcast %cst_37 : f32 to vector<8x128xf32>
    %136 = arith.subf %135, %127 : vector<8x128xf32>
    %137 = arith.mulf %136, %134 : vector<8x128xf32>
    %138 = arith.mulf %127, %76 : vector<8x128xf32>
    %139 = arith.addf %137, %138 : vector<8x128xf32>
    %140 = arith.addf %77, %139 : vector<8x128xf32>
    %141 = vector.extract_strided_slice %11 {offsets = [16, 0], sizes = [8, 384], strides = [1, 1]} : vector<64x384xf32> to vector<8x384xf32>
    %cst_38 = arith.constant dense<0.000000e+00> : vector<8x384xf32>
    %142 = tpu.matmul %107, %2, %cst_38 {dimension_numbers = #tpu.dot_dimension_numbers<[1], [0], [0], [1], [0, 0, 1, 1], [], []>} : vector<8x128xf32>, vector<128x384xf32>, vector<8x384xf32> -> vector<8x384xf32>
    %143 = vector.extract_strided_slice %141 {offsets = [0, 0], sizes = [8, 128], strides = [1, 1]} : vector<8x384xf32> to vector<8x128xf32>
    %144 = vector.extract_strided_slice %142 {offsets = [0, 0], sizes = [8, 128], strides = [1, 1]} : vector<8x384xf32> to vector<8x128xf32>
    %145 = arith.addf %143, %144 : vector<8x128xf32>
    %146 = arith.negf %145 : vector<8x128xf32>
    %147 = math.exp %146 : vector<8x128xf32>
    %cst_39 = arith.constant 1.000000e+00 : f32
    %148 = vector.broadcast %cst_39 : f32 to vector<8x128xf32>
    %149 = arith.addf %148, %147 : vector<8x128xf32>
    %150 = arith.divf %148, %149 : vector<8x128xf32>
    %151 = vector.extract_strided_slice %141 {offsets = [0, 128], sizes = [8, 128], strides = [1, 1]} : vector<8x384xf32> to vector<8x128xf32>
    %152 = vector.extract_strided_slice %142 {offsets = [0, 128], sizes = [8, 128], strides = [1, 1]} : vector<8x384xf32> to vector<8x128xf32>
    %153 = arith.addf %151, %152 : vector<8x128xf32>
    %154 = arith.negf %153 : vector<8x128xf32>
    %155 = math.exp %154 : vector<8x128xf32>
    %cst_40 = arith.constant 1.000000e+00 : f32
    %156 = vector.broadcast %cst_40 : f32 to vector<8x128xf32>
    %157 = arith.addf %156, %155 : vector<8x128xf32>
    %158 = arith.divf %156, %157 : vector<8x128xf32>
    %159 = vector.extract_strided_slice %141 {offsets = [0, 256], sizes = [8, 128], strides = [1, 1]} : vector<8x384xf32> to vector<8x128xf32>
    %160 = vector.extract_strided_slice %142 {offsets = [0, 256], sizes = [8, 128], strides = [1, 1]} : vector<8x384xf32> to vector<8x128xf32>
    %161 = vector.broadcast %6 : vector<1x128xf32> to vector<8x128xf32>
    %162 = arith.addf %160, %161 : vector<8x128xf32>
    %163 = arith.mulf %150, %162 : vector<8x128xf32>
    %164 = arith.addf %159, %163 : vector<8x128xf32>
    %165 = math.tanh %164 : vector<8x128xf32>
    %cst_41 = arith.constant 1.000000e+00 : f32
    %166 = vector.broadcast %cst_41 : f32 to vector<8x128xf32>
    %167 = arith.subf %166, %158 : vector<8x128xf32>
    %168 = arith.mulf %167, %165 : vector<8x128xf32>
    %169 = arith.mulf %158, %107 : vector<8x128xf32>
    %170 = arith.addf %168, %169 : vector<8x128xf32>
    %cst_42 = arith.constant dense<0.000000e+00> : vector<8x384xf32>
    %171 = tpu.matmul %170, %1, %cst_42 {dimension_numbers = #tpu.dot_dimension_numbers<[1], [0], [0], [1], [0, 0, 1, 1], [], []>} : vector<8x128xf32>, vector<128x384xf32>, vector<8x384xf32> -> vector<8x384xf32>
    %172 = vector.broadcast %5 : vector<1x384xf32> to vector<8x384xf32>
    %173 = arith.addf %171, %172 : vector<8x384xf32>
    %cst_43 = arith.constant dense<0.000000e+00> : vector<8x384xf32>
    %174 = tpu.matmul %139, %3, %cst_43 {dimension_numbers = #tpu.dot_dimension_numbers<[1], [0], [0], [1], [0, 0, 1, 1], [], []>} : vector<8x128xf32>, vector<128x384xf32>, vector<8x384xf32> -> vector<8x384xf32>
    %175 = vector.extract_strided_slice %173 {offsets = [0, 0], sizes = [8, 128], strides = [1, 1]} : vector<8x384xf32> to vector<8x128xf32>
    %176 = vector.extract_strided_slice %174 {offsets = [0, 0], sizes = [8, 128], strides = [1, 1]} : vector<8x384xf32> to vector<8x128xf32>
    %177 = arith.addf %175, %176 : vector<8x128xf32>
    %178 = arith.negf %177 : vector<8x128xf32>
    %179 = math.exp %178 : vector<8x128xf32>
    %cst_44 = arith.constant 1.000000e+00 : f32
    %180 = vector.broadcast %cst_44 : f32 to vector<8x128xf32>
    %181 = arith.addf %180, %179 : vector<8x128xf32>
    %182 = arith.divf %180, %181 : vector<8x128xf32>
    %183 = vector.extract_strided_slice %173 {offsets = [0, 128], sizes = [8, 128], strides = [1, 1]} : vector<8x384xf32> to vector<8x128xf32>
    %184 = vector.extract_strided_slice %174 {offsets = [0, 128], sizes = [8, 128], strides = [1, 1]} : vector<8x384xf32> to vector<8x128xf32>
    %185 = arith.addf %183, %184 : vector<8x128xf32>
    %186 = arith.negf %185 : vector<8x128xf32>
    %187 = math.exp %186 : vector<8x128xf32>
    %cst_45 = arith.constant 1.000000e+00 : f32
    %188 = vector.broadcast %cst_45 : f32 to vector<8x128xf32>
    %189 = arith.addf %188, %187 : vector<8x128xf32>
    %190 = arith.divf %188, %189 : vector<8x128xf32>
    %191 = vector.extract_strided_slice %173 {offsets = [0, 256], sizes = [8, 128], strides = [1, 1]} : vector<8x384xf32> to vector<8x128xf32>
    %192 = vector.extract_strided_slice %174 {offsets = [0, 256], sizes = [8, 128], strides = [1, 1]} : vector<8x384xf32> to vector<8x128xf32>
    %193 = vector.broadcast %7 : vector<1x128xf32> to vector<8x128xf32>
    %194 = arith.addf %192, %193 : vector<8x128xf32>
    %195 = arith.mulf %182, %194 : vector<8x128xf32>
    %196 = arith.addf %191, %195 : vector<8x128xf32>
    %197 = math.tanh %196 : vector<8x128xf32>
    %cst_46 = arith.constant 1.000000e+00 : f32
    %198 = vector.broadcast %cst_46 : f32 to vector<8x128xf32>
    %199 = arith.subf %198, %190 : vector<8x128xf32>
    %200 = arith.mulf %199, %197 : vector<8x128xf32>
    %201 = arith.mulf %190, %139 : vector<8x128xf32>
    %202 = arith.addf %200, %201 : vector<8x128xf32>
    %203 = arith.addf %140, %202 : vector<8x128xf32>
    %204 = vector.extract_strided_slice %11 {offsets = [24, 0], sizes = [8, 384], strides = [1, 1]} : vector<64x384xf32> to vector<8x384xf32>
    %cst_47 = arith.constant dense<0.000000e+00> : vector<8x384xf32>
    %205 = tpu.matmul %170, %2, %cst_47 {dimension_numbers = #tpu.dot_dimension_numbers<[1], [0], [0], [1], [0, 0, 1, 1], [], []>} : vector<8x128xf32>, vector<128x384xf32>, vector<8x384xf32> -> vector<8x384xf32>
    %206 = vector.extract_strided_slice %204 {offsets = [0, 0], sizes = [8, 128], strides = [1, 1]} : vector<8x384xf32> to vector<8x128xf32>
    %207 = vector.extract_strided_slice %205 {offsets = [0, 0], sizes = [8, 128], strides = [1, 1]} : vector<8x384xf32> to vector<8x128xf32>
    %208 = arith.addf %206, %207 : vector<8x128xf32>
    %209 = arith.negf %208 : vector<8x128xf32>
    %210 = math.exp %209 : vector<8x128xf32>
    %cst_48 = arith.constant 1.000000e+00 : f32
    %211 = vector.broadcast %cst_48 : f32 to vector<8x128xf32>
    %212 = arith.addf %211, %210 : vector<8x128xf32>
    %213 = arith.divf %211, %212 : vector<8x128xf32>
    %214 = vector.extract_strided_slice %204 {offsets = [0, 128], sizes = [8, 128], strides = [1, 1]} : vector<8x384xf32> to vector<8x128xf32>
    %215 = vector.extract_strided_slice %205 {offsets = [0, 128], sizes = [8, 128], strides = [1, 1]} : vector<8x384xf32> to vector<8x128xf32>
    %216 = arith.addf %214, %215 : vector<8x128xf32>
    %217 = arith.negf %216 : vector<8x128xf32>
    %218 = math.exp %217 : vector<8x128xf32>
    %cst_49 = arith.constant 1.000000e+00 : f32
    %219 = vector.broadcast %cst_49 : f32 to vector<8x128xf32>
    %220 = arith.addf %219, %218 : vector<8x128xf32>
    %221 = arith.divf %219, %220 : vector<8x128xf32>
    %222 = vector.extract_strided_slice %204 {offsets = [0, 256], sizes = [8, 128], strides = [1, 1]} : vector<8x384xf32> to vector<8x128xf32>
    %223 = vector.extract_strided_slice %205 {offsets = [0, 256], sizes = [8, 128], strides = [1, 1]} : vector<8x384xf32> to vector<8x128xf32>
    %224 = vector.broadcast %6 : vector<1x128xf32> to vector<8x128xf32>
    %225 = arith.addf %223, %224 : vector<8x128xf32>
    %226 = arith.mulf %213, %225 : vector<8x128xf32>
    %227 = arith.addf %222, %226 : vector<8x128xf32>
    %228 = math.tanh %227 : vector<8x128xf32>
    %cst_50 = arith.constant 1.000000e+00 : f32
    %229 = vector.broadcast %cst_50 : f32 to vector<8x128xf32>
    %230 = arith.subf %229, %221 : vector<8x128xf32>
    %231 = arith.mulf %230, %228 : vector<8x128xf32>
    %232 = arith.mulf %221, %170 : vector<8x128xf32>
    %233 = arith.addf %231, %232 : vector<8x128xf32>
    %cst_51 = arith.constant dense<0.000000e+00> : vector<8x384xf32>
    %234 = tpu.matmul %233, %1, %cst_51 {dimension_numbers = #tpu.dot_dimension_numbers<[1], [0], [0], [1], [0, 0, 1, 1], [], []>} : vector<8x128xf32>, vector<128x384xf32>, vector<8x384xf32> -> vector<8x384xf32>
    %235 = vector.broadcast %5 : vector<1x384xf32> to vector<8x384xf32>
    %236 = arith.addf %234, %235 : vector<8x384xf32>
    %cst_52 = arith.constant dense<0.000000e+00> : vector<8x384xf32>
    %237 = tpu.matmul %202, %3, %cst_52 {dimension_numbers = #tpu.dot_dimension_numbers<[1], [0], [0], [1], [0, 0, 1, 1], [], []>} : vector<8x128xf32>, vector<128x384xf32>, vector<8x384xf32> -> vector<8x384xf32>
    %238 = vector.extract_strided_slice %236 {offsets = [0, 0], sizes = [8, 128], strides = [1, 1]} : vector<8x384xf32> to vector<8x128xf32>
    %239 = vector.extract_strided_slice %237 {offsets = [0, 0], sizes = [8, 128], strides = [1, 1]} : vector<8x384xf32> to vector<8x128xf32>
    %240 = arith.addf %238, %239 : vector<8x128xf32>
    %241 = arith.negf %240 : vector<8x128xf32>
    %242 = math.exp %241 : vector<8x128xf32>
    %cst_53 = arith.constant 1.000000e+00 : f32
    %243 = vector.broadcast %cst_53 : f32 to vector<8x128xf32>
    %244 = arith.addf %243, %242 : vector<8x128xf32>
    %245 = arith.divf %243, %244 : vector<8x128xf32>
    %246 = vector.extract_strided_slice %236 {offsets = [0, 128], sizes = [8, 128], strides = [1, 1]} : vector<8x384xf32> to vector<8x128xf32>
    %247 = vector.extract_strided_slice %237 {offsets = [0, 128], sizes = [8, 128], strides = [1, 1]} : vector<8x384xf32> to vector<8x128xf32>
    %248 = arith.addf %246, %247 : vector<8x128xf32>
    %249 = arith.negf %248 : vector<8x128xf32>
    %250 = math.exp %249 : vector<8x128xf32>
    %cst_54 = arith.constant 1.000000e+00 : f32
    %251 = vector.broadcast %cst_54 : f32 to vector<8x128xf32>
    %252 = arith.addf %251, %250 : vector<8x128xf32>
    %253 = arith.divf %251, %252 : vector<8x128xf32>
    %254 = vector.extract_strided_slice %236 {offsets = [0, 256], sizes = [8, 128], strides = [1, 1]} : vector<8x384xf32> to vector<8x128xf32>
    %255 = vector.extract_strided_slice %237 {offsets = [0, 256], sizes = [8, 128], strides = [1, 1]} : vector<8x384xf32> to vector<8x128xf32>
    %256 = vector.broadcast %7 : vector<1x128xf32> to vector<8x128xf32>
    %257 = arith.addf %255, %256 : vector<8x128xf32>
    %258 = arith.mulf %245, %257 : vector<8x128xf32>
    %259 = arith.addf %254, %258 : vector<8x128xf32>
    %260 = math.tanh %259 : vector<8x128xf32>
    %cst_55 = arith.constant 1.000000e+00 : f32
    %261 = vector.broadcast %cst_55 : f32 to vector<8x128xf32>
    %262 = arith.subf %261, %253 : vector<8x128xf32>
    %263 = arith.mulf %262, %260 : vector<8x128xf32>
    %264 = arith.mulf %253, %202 : vector<8x128xf32>
    %265 = arith.addf %263, %264 : vector<8x128xf32>
    %266 = arith.addf %203, %265 : vector<8x128xf32>
    %267 = vector.extract_strided_slice %11 {offsets = [32, 0], sizes = [8, 384], strides = [1, 1]} : vector<64x384xf32> to vector<8x384xf32>
    %cst_56 = arith.constant dense<0.000000e+00> : vector<8x384xf32>
    %268 = tpu.matmul %233, %2, %cst_56 {dimension_numbers = #tpu.dot_dimension_numbers<[1], [0], [0], [1], [0, 0, 1, 1], [], []>} : vector<8x128xf32>, vector<128x384xf32>, vector<8x384xf32> -> vector<8x384xf32>
    %269 = vector.extract_strided_slice %267 {offsets = [0, 0], sizes = [8, 128], strides = [1, 1]} : vector<8x384xf32> to vector<8x128xf32>
    %270 = vector.extract_strided_slice %268 {offsets = [0, 0], sizes = [8, 128], strides = [1, 1]} : vector<8x384xf32> to vector<8x128xf32>
    %271 = arith.addf %269, %270 : vector<8x128xf32>
    %272 = arith.negf %271 : vector<8x128xf32>
    %273 = math.exp %272 : vector<8x128xf32>
    %cst_57 = arith.constant 1.000000e+00 : f32
    %274 = vector.broadcast %cst_57 : f32 to vector<8x128xf32>
    %275 = arith.addf %274, %273 : vector<8x128xf32>
    %276 = arith.divf %274, %275 : vector<8x128xf32>
    %277 = vector.extract_strided_slice %267 {offsets = [0, 128], sizes = [8, 128], strides = [1, 1]} : vector<8x384xf32> to vector<8x128xf32>
    %278 = vector.extract_strided_slice %268 {offsets = [0, 128], sizes = [8, 128], strides = [1, 1]} : vector<8x384xf32> to vector<8x128xf32>
    %279 = arith.addf %277, %278 : vector<8x128xf32>
    %280 = arith.negf %279 : vector<8x128xf32>
    %281 = math.exp %280 : vector<8x128xf32>
    %cst_58 = arith.constant 1.000000e+00 : f32
    %282 = vector.broadcast %cst_58 : f32 to vector<8x128xf32>
    %283 = arith.addf %282, %281 : vector<8x128xf32>
    %284 = arith.divf %282, %283 : vector<8x128xf32>
    %285 = vector.extract_strided_slice %267 {offsets = [0, 256], sizes = [8, 128], strides = [1, 1]} : vector<8x384xf32> to vector<8x128xf32>
    %286 = vector.extract_strided_slice %268 {offsets = [0, 256], sizes = [8, 128], strides = [1, 1]} : vector<8x384xf32> to vector<8x128xf32>
    %287 = vector.broadcast %6 : vector<1x128xf32> to vector<8x128xf32>
    %288 = arith.addf %286, %287 : vector<8x128xf32>
    %289 = arith.mulf %276, %288 : vector<8x128xf32>
    %290 = arith.addf %285, %289 : vector<8x128xf32>
    %291 = math.tanh %290 : vector<8x128xf32>
    %cst_59 = arith.constant 1.000000e+00 : f32
    %292 = vector.broadcast %cst_59 : f32 to vector<8x128xf32>
    %293 = arith.subf %292, %284 : vector<8x128xf32>
    %294 = arith.mulf %293, %291 : vector<8x128xf32>
    %295 = arith.mulf %284, %233 : vector<8x128xf32>
    %296 = arith.addf %294, %295 : vector<8x128xf32>
    %cst_60 = arith.constant dense<0.000000e+00> : vector<8x384xf32>
    %297 = tpu.matmul %296, %1, %cst_60 {dimension_numbers = #tpu.dot_dimension_numbers<[1], [0], [0], [1], [0, 0, 1, 1], [], []>} : vector<8x128xf32>, vector<128x384xf32>, vector<8x384xf32> -> vector<8x384xf32>
    %298 = vector.broadcast %5 : vector<1x384xf32> to vector<8x384xf32>
    %299 = arith.addf %297, %298 : vector<8x384xf32>
    %cst_61 = arith.constant dense<0.000000e+00> : vector<8x384xf32>
    %300 = tpu.matmul %265, %3, %cst_61 {dimension_numbers = #tpu.dot_dimension_numbers<[1], [0], [0], [1], [0, 0, 1, 1], [], []>} : vector<8x128xf32>, vector<128x384xf32>, vector<8x384xf32> -> vector<8x384xf32>
    %301 = vector.extract_strided_slice %299 {offsets = [0, 0], sizes = [8, 128], strides = [1, 1]} : vector<8x384xf32> to vector<8x128xf32>
    %302 = vector.extract_strided_slice %300 {offsets = [0, 0], sizes = [8, 128], strides = [1, 1]} : vector<8x384xf32> to vector<8x128xf32>
    %303 = arith.addf %301, %302 : vector<8x128xf32>
    %304 = arith.negf %303 : vector<8x128xf32>
    %305 = math.exp %304 : vector<8x128xf32>
    %cst_62 = arith.constant 1.000000e+00 : f32
    %306 = vector.broadcast %cst_62 : f32 to vector<8x128xf32>
    %307 = arith.addf %306, %305 : vector<8x128xf32>
    %308 = arith.divf %306, %307 : vector<8x128xf32>
    %309 = vector.extract_strided_slice %299 {offsets = [0, 128], sizes = [8, 128], strides = [1, 1]} : vector<8x384xf32> to vector<8x128xf32>
    %310 = vector.extract_strided_slice %300 {offsets = [0, 128], sizes = [8, 128], strides = [1, 1]} : vector<8x384xf32> to vector<8x128xf32>
    %311 = arith.addf %309, %310 : vector<8x128xf32>
    %312 = arith.negf %311 : vector<8x128xf32>
    %313 = math.exp %312 : vector<8x128xf32>
    %cst_63 = arith.constant 1.000000e+00 : f32
    %314 = vector.broadcast %cst_63 : f32 to vector<8x128xf32>
    %315 = arith.addf %314, %313 : vector<8x128xf32>
    %316 = arith.divf %314, %315 : vector<8x128xf32>
    %317 = vector.extract_strided_slice %299 {offsets = [0, 256], sizes = [8, 128], strides = [1, 1]} : vector<8x384xf32> to vector<8x128xf32>
    %318 = vector.extract_strided_slice %300 {offsets = [0, 256], sizes = [8, 128], strides = [1, 1]} : vector<8x384xf32> to vector<8x128xf32>
    %319 = vector.broadcast %7 : vector<1x128xf32> to vector<8x128xf32>
    %320 = arith.addf %318, %319 : vector<8x128xf32>
    %321 = arith.mulf %308, %320 : vector<8x128xf32>
    %322 = arith.addf %317, %321 : vector<8x128xf32>
    %323 = math.tanh %322 : vector<8x128xf32>
    %cst_64 = arith.constant 1.000000e+00 : f32
    %324 = vector.broadcast %cst_64 : f32 to vector<8x128xf32>
    %325 = arith.subf %324, %316 : vector<8x128xf32>
    %326 = arith.mulf %325, %323 : vector<8x128xf32>
    %327 = arith.mulf %316, %265 : vector<8x128xf32>
    %328 = arith.addf %326, %327 : vector<8x128xf32>
    %329 = arith.addf %266, %328 : vector<8x128xf32>
    %330 = vector.extract_strided_slice %11 {offsets = [40, 0], sizes = [8, 384], strides = [1, 1]} : vector<64x384xf32> to vector<8x384xf32>
    %cst_65 = arith.constant dense<0.000000e+00> : vector<8x384xf32>
    %331 = tpu.matmul %296, %2, %cst_65 {dimension_numbers = #tpu.dot_dimension_numbers<[1], [0], [0], [1], [0, 0, 1, 1], [], []>} : vector<8x128xf32>, vector<128x384xf32>, vector<8x384xf32> -> vector<8x384xf32>
    %332 = vector.extract_strided_slice %330 {offsets = [0, 0], sizes = [8, 128], strides = [1, 1]} : vector<8x384xf32> to vector<8x128xf32>
    %333 = vector.extract_strided_slice %331 {offsets = [0, 0], sizes = [8, 128], strides = [1, 1]} : vector<8x384xf32> to vector<8x128xf32>
    %334 = arith.addf %332, %333 : vector<8x128xf32>
    %335 = arith.negf %334 : vector<8x128xf32>
    %336 = math.exp %335 : vector<8x128xf32>
    %cst_66 = arith.constant 1.000000e+00 : f32
    %337 = vector.broadcast %cst_66 : f32 to vector<8x128xf32>
    %338 = arith.addf %337, %336 : vector<8x128xf32>
    %339 = arith.divf %337, %338 : vector<8x128xf32>
    %340 = vector.extract_strided_slice %330 {offsets = [0, 128], sizes = [8, 128], strides = [1, 1]} : vector<8x384xf32> to vector<8x128xf32>
    %341 = vector.extract_strided_slice %331 {offsets = [0, 128], sizes = [8, 128], strides = [1, 1]} : vector<8x384xf32> to vector<8x128xf32>
    %342 = arith.addf %340, %341 : vector<8x128xf32>
    %343 = arith.negf %342 : vector<8x128xf32>
    %344 = math.exp %343 : vector<8x128xf32>
    %cst_67 = arith.constant 1.000000e+00 : f32
    %345 = vector.broadcast %cst_67 : f32 to vector<8x128xf32>
    %346 = arith.addf %345, %344 : vector<8x128xf32>
    %347 = arith.divf %345, %346 : vector<8x128xf32>
    %348 = vector.extract_strided_slice %330 {offsets = [0, 256], sizes = [8, 128], strides = [1, 1]} : vector<8x384xf32> to vector<8x128xf32>
    %349 = vector.extract_strided_slice %331 {offsets = [0, 256], sizes = [8, 128], strides = [1, 1]} : vector<8x384xf32> to vector<8x128xf32>
    %350 = vector.broadcast %6 : vector<1x128xf32> to vector<8x128xf32>
    %351 = arith.addf %349, %350 : vector<8x128xf32>
    %352 = arith.mulf %339, %351 : vector<8x128xf32>
    %353 = arith.addf %348, %352 : vector<8x128xf32>
    %354 = math.tanh %353 : vector<8x128xf32>
    %cst_68 = arith.constant 1.000000e+00 : f32
    %355 = vector.broadcast %cst_68 : f32 to vector<8x128xf32>
    %356 = arith.subf %355, %347 : vector<8x128xf32>
    %357 = arith.mulf %356, %354 : vector<8x128xf32>
    %358 = arith.mulf %347, %296 : vector<8x128xf32>
    %359 = arith.addf %357, %358 : vector<8x128xf32>
    %cst_69 = arith.constant dense<0.000000e+00> : vector<8x384xf32>
    %360 = tpu.matmul %359, %1, %cst_69 {dimension_numbers = #tpu.dot_dimension_numbers<[1], [0], [0], [1], [0, 0, 1, 1], [], []>} : vector<8x128xf32>, vector<128x384xf32>, vector<8x384xf32> -> vector<8x384xf32>
    %361 = vector.broadcast %5 : vector<1x384xf32> to vector<8x384xf32>
    %362 = arith.addf %360, %361 : vector<8x384xf32>
    %cst_70 = arith.constant dense<0.000000e+00> : vector<8x384xf32>
    %363 = tpu.matmul %328, %3, %cst_70 {dimension_numbers = #tpu.dot_dimension_numbers<[1], [0], [0], [1], [0, 0, 1, 1], [], []>} : vector<8x128xf32>, vector<128x384xf32>, vector<8x384xf32> -> vector<8x384xf32>
    %364 = vector.extract_strided_slice %362 {offsets = [0, 0], sizes = [8, 128], strides = [1, 1]} : vector<8x384xf32> to vector<8x128xf32>
    %365 = vector.extract_strided_slice %363 {offsets = [0, 0], sizes = [8, 128], strides = [1, 1]} : vector<8x384xf32> to vector<8x128xf32>
    %366 = arith.addf %364, %365 : vector<8x128xf32>
    %367 = arith.negf %366 : vector<8x128xf32>
    %368 = math.exp %367 : vector<8x128xf32>
    %cst_71 = arith.constant 1.000000e+00 : f32
    %369 = vector.broadcast %cst_71 : f32 to vector<8x128xf32>
    %370 = arith.addf %369, %368 : vector<8x128xf32>
    %371 = arith.divf %369, %370 : vector<8x128xf32>
    %372 = vector.extract_strided_slice %362 {offsets = [0, 128], sizes = [8, 128], strides = [1, 1]} : vector<8x384xf32> to vector<8x128xf32>
    %373 = vector.extract_strided_slice %363 {offsets = [0, 128], sizes = [8, 128], strides = [1, 1]} : vector<8x384xf32> to vector<8x128xf32>
    %374 = arith.addf %372, %373 : vector<8x128xf32>
    %375 = arith.negf %374 : vector<8x128xf32>
    %376 = math.exp %375 : vector<8x128xf32>
    %cst_72 = arith.constant 1.000000e+00 : f32
    %377 = vector.broadcast %cst_72 : f32 to vector<8x128xf32>
    %378 = arith.addf %377, %376 : vector<8x128xf32>
    %379 = arith.divf %377, %378 : vector<8x128xf32>
    %380 = vector.extract_strided_slice %362 {offsets = [0, 256], sizes = [8, 128], strides = [1, 1]} : vector<8x384xf32> to vector<8x128xf32>
    %381 = vector.extract_strided_slice %363 {offsets = [0, 256], sizes = [8, 128], strides = [1, 1]} : vector<8x384xf32> to vector<8x128xf32>
    %382 = vector.broadcast %7 : vector<1x128xf32> to vector<8x128xf32>
    %383 = arith.addf %381, %382 : vector<8x128xf32>
    %384 = arith.mulf %371, %383 : vector<8x128xf32>
    %385 = arith.addf %380, %384 : vector<8x128xf32>
    %386 = math.tanh %385 : vector<8x128xf32>
    %cst_73 = arith.constant 1.000000e+00 : f32
    %387 = vector.broadcast %cst_73 : f32 to vector<8x128xf32>
    %388 = arith.subf %387, %379 : vector<8x128xf32>
    %389 = arith.mulf %388, %386 : vector<8x128xf32>
    %390 = arith.mulf %379, %328 : vector<8x128xf32>
    %391 = arith.addf %389, %390 : vector<8x128xf32>
    %392 = arith.addf %329, %391 : vector<8x128xf32>
    %393 = vector.extract_strided_slice %11 {offsets = [48, 0], sizes = [8, 384], strides = [1, 1]} : vector<64x384xf32> to vector<8x384xf32>
    %cst_74 = arith.constant dense<0.000000e+00> : vector<8x384xf32>
    %394 = tpu.matmul %359, %2, %cst_74 {dimension_numbers = #tpu.dot_dimension_numbers<[1], [0], [0], [1], [0, 0, 1, 1], [], []>} : vector<8x128xf32>, vector<128x384xf32>, vector<8x384xf32> -> vector<8x384xf32>
    %395 = vector.extract_strided_slice %393 {offsets = [0, 0], sizes = [8, 128], strides = [1, 1]} : vector<8x384xf32> to vector<8x128xf32>
    %396 = vector.extract_strided_slice %394 {offsets = [0, 0], sizes = [8, 128], strides = [1, 1]} : vector<8x384xf32> to vector<8x128xf32>
    %397 = arith.addf %395, %396 : vector<8x128xf32>
    %398 = arith.negf %397 : vector<8x128xf32>
    %399 = math.exp %398 : vector<8x128xf32>
    %cst_75 = arith.constant 1.000000e+00 : f32
    %400 = vector.broadcast %cst_75 : f32 to vector<8x128xf32>
    %401 = arith.addf %400, %399 : vector<8x128xf32>
    %402 = arith.divf %400, %401 : vector<8x128xf32>
    %403 = vector.extract_strided_slice %393 {offsets = [0, 128], sizes = [8, 128], strides = [1, 1]} : vector<8x384xf32> to vector<8x128xf32>
    %404 = vector.extract_strided_slice %394 {offsets = [0, 128], sizes = [8, 128], strides = [1, 1]} : vector<8x384xf32> to vector<8x128xf32>
    %405 = arith.addf %403, %404 : vector<8x128xf32>
    %406 = arith.negf %405 : vector<8x128xf32>
    %407 = math.exp %406 : vector<8x128xf32>
    %cst_76 = arith.constant 1.000000e+00 : f32
    %408 = vector.broadcast %cst_76 : f32 to vector<8x128xf32>
    %409 = arith.addf %408, %407 : vector<8x128xf32>
    %410 = arith.divf %408, %409 : vector<8x128xf32>
    %411 = vector.extract_strided_slice %393 {offsets = [0, 256], sizes = [8, 128], strides = [1, 1]} : vector<8x384xf32> to vector<8x128xf32>
    %412 = vector.extract_strided_slice %394 {offsets = [0, 256], sizes = [8, 128], strides = [1, 1]} : vector<8x384xf32> to vector<8x128xf32>
    %413 = vector.broadcast %6 : vector<1x128xf32> to vector<8x128xf32>
    %414 = arith.addf %412, %413 : vector<8x128xf32>
    %415 = arith.mulf %402, %414 : vector<8x128xf32>
    %416 = arith.addf %411, %415 : vector<8x128xf32>
    %417 = math.tanh %416 : vector<8x128xf32>
    %cst_77 = arith.constant 1.000000e+00 : f32
    %418 = vector.broadcast %cst_77 : f32 to vector<8x128xf32>
    %419 = arith.subf %418, %410 : vector<8x128xf32>
    %420 = arith.mulf %419, %417 : vector<8x128xf32>
    %421 = arith.mulf %410, %359 : vector<8x128xf32>
    %422 = arith.addf %420, %421 : vector<8x128xf32>
    %cst_78 = arith.constant dense<0.000000e+00> : vector<8x384xf32>
    %423 = tpu.matmul %422, %1, %cst_78 {dimension_numbers = #tpu.dot_dimension_numbers<[1], [0], [0], [1], [0, 0, 1, 1], [], []>} : vector<8x128xf32>, vector<128x384xf32>, vector<8x384xf32> -> vector<8x384xf32>
    %424 = vector.broadcast %5 : vector<1x384xf32> to vector<8x384xf32>
    %425 = arith.addf %423, %424 : vector<8x384xf32>
    %cst_79 = arith.constant dense<0.000000e+00> : vector<8x384xf32>
    %426 = tpu.matmul %391, %3, %cst_79 {dimension_numbers = #tpu.dot_dimension_numbers<[1], [0], [0], [1], [0, 0, 1, 1], [], []>} : vector<8x128xf32>, vector<128x384xf32>, vector<8x384xf32> -> vector<8x384xf32>
    %427 = vector.extract_strided_slice %425 {offsets = [0, 0], sizes = [8, 128], strides = [1, 1]} : vector<8x384xf32> to vector<8x128xf32>
    %428 = vector.extract_strided_slice %426 {offsets = [0, 0], sizes = [8, 128], strides = [1, 1]} : vector<8x384xf32> to vector<8x128xf32>
    %429 = arith.addf %427, %428 : vector<8x128xf32>
    %430 = arith.negf %429 : vector<8x128xf32>
    %431 = math.exp %430 : vector<8x128xf32>
    %cst_80 = arith.constant 1.000000e+00 : f32
    %432 = vector.broadcast %cst_80 : f32 to vector<8x128xf32>
    %433 = arith.addf %432, %431 : vector<8x128xf32>
    %434 = arith.divf %432, %433 : vector<8x128xf32>
    %435 = vector.extract_strided_slice %425 {offsets = [0, 128], sizes = [8, 128], strides = [1, 1]} : vector<8x384xf32> to vector<8x128xf32>
    %436 = vector.extract_strided_slice %426 {offsets = [0, 128], sizes = [8, 128], strides = [1, 1]} : vector<8x384xf32> to vector<8x128xf32>
    %437 = arith.addf %435, %436 : vector<8x128xf32>
    %438 = arith.negf %437 : vector<8x128xf32>
    %439 = math.exp %438 : vector<8x128xf32>
    %cst_81 = arith.constant 1.000000e+00 : f32
    %440 = vector.broadcast %cst_81 : f32 to vector<8x128xf32>
    %441 = arith.addf %440, %439 : vector<8x128xf32>
    %442 = arith.divf %440, %441 : vector<8x128xf32>
    %443 = vector.extract_strided_slice %425 {offsets = [0, 256], sizes = [8, 128], strides = [1, 1]} : vector<8x384xf32> to vector<8x128xf32>
    %444 = vector.extract_strided_slice %426 {offsets = [0, 256], sizes = [8, 128], strides = [1, 1]} : vector<8x384xf32> to vector<8x128xf32>
    %445 = vector.broadcast %7 : vector<1x128xf32> to vector<8x128xf32>
    %446 = arith.addf %444, %445 : vector<8x128xf32>
    %447 = arith.mulf %434, %446 : vector<8x128xf32>
    %448 = arith.addf %443, %447 : vector<8x128xf32>
    %449 = math.tanh %448 : vector<8x128xf32>
    %cst_82 = arith.constant 1.000000e+00 : f32
    %450 = vector.broadcast %cst_82 : f32 to vector<8x128xf32>
    %451 = arith.subf %450, %442 : vector<8x128xf32>
    %452 = arith.mulf %451, %449 : vector<8x128xf32>
    %453 = arith.mulf %442, %391 : vector<8x128xf32>
    %454 = arith.addf %452, %453 : vector<8x128xf32>
    %455 = arith.addf %392, %454 : vector<8x128xf32>
    %456 = vector.extract_strided_slice %11 {offsets = [56, 0], sizes = [8, 384], strides = [1, 1]} : vector<64x384xf32> to vector<8x384xf32>
    %cst_83 = arith.constant dense<0.000000e+00> : vector<8x384xf32>
    %457 = tpu.matmul %422, %2, %cst_83 {dimension_numbers = #tpu.dot_dimension_numbers<[1], [0], [0], [1], [0, 0, 1, 1], [], []>} : vector<8x128xf32>, vector<128x384xf32>, vector<8x384xf32> -> vector<8x384xf32>
    %458 = vector.extract_strided_slice %456 {offsets = [0, 0], sizes = [8, 128], strides = [1, 1]} : vector<8x384xf32> to vector<8x128xf32>
    %459 = vector.extract_strided_slice %457 {offsets = [0, 0], sizes = [8, 128], strides = [1, 1]} : vector<8x384xf32> to vector<8x128xf32>
    %460 = arith.addf %458, %459 : vector<8x128xf32>
    %461 = arith.negf %460 : vector<8x128xf32>
    %462 = math.exp %461 : vector<8x128xf32>
    %cst_84 = arith.constant 1.000000e+00 : f32
    %463 = vector.broadcast %cst_84 : f32 to vector<8x128xf32>
    %464 = arith.addf %463, %462 : vector<8x128xf32>
    %465 = arith.divf %463, %464 : vector<8x128xf32>
    %466 = vector.extract_strided_slice %456 {offsets = [0, 128], sizes = [8, 128], strides = [1, 1]} : vector<8x384xf32> to vector<8x128xf32>
    %467 = vector.extract_strided_slice %457 {offsets = [0, 128], sizes = [8, 128], strides = [1, 1]} : vector<8x384xf32> to vector<8x128xf32>
    %468 = arith.addf %466, %467 : vector<8x128xf32>
    %469 = arith.negf %468 : vector<8x128xf32>
    %470 = math.exp %469 : vector<8x128xf32>
    %cst_85 = arith.constant 1.000000e+00 : f32
    %471 = vector.broadcast %cst_85 : f32 to vector<8x128xf32>
    %472 = arith.addf %471, %470 : vector<8x128xf32>
    %473 = arith.divf %471, %472 : vector<8x128xf32>
    %474 = vector.extract_strided_slice %456 {offsets = [0, 256], sizes = [8, 128], strides = [1, 1]} : vector<8x384xf32> to vector<8x128xf32>
    %475 = vector.extract_strided_slice %457 {offsets = [0, 256], sizes = [8, 128], strides = [1, 1]} : vector<8x384xf32> to vector<8x128xf32>
    %476 = vector.broadcast %6 : vector<1x128xf32> to vector<8x128xf32>
    %477 = arith.addf %475, %476 : vector<8x128xf32>
    %478 = arith.mulf %465, %477 : vector<8x128xf32>
    %479 = arith.addf %474, %478 : vector<8x128xf32>
    %480 = math.tanh %479 : vector<8x128xf32>
    %cst_86 = arith.constant 1.000000e+00 : f32
    %481 = vector.broadcast %cst_86 : f32 to vector<8x128xf32>
    %482 = arith.subf %481, %473 : vector<8x128xf32>
    %483 = arith.mulf %482, %480 : vector<8x128xf32>
    %484 = arith.mulf %473, %422 : vector<8x128xf32>
    %485 = arith.addf %483, %484 : vector<8x128xf32>
    %cst_87 = arith.constant dense<0.000000e+00> : vector<8x384xf32>
    %486 = tpu.matmul %485, %1, %cst_87 {dimension_numbers = #tpu.dot_dimension_numbers<[1], [0], [0], [1], [0, 0, 1, 1], [], []>} : vector<8x128xf32>, vector<128x384xf32>, vector<8x384xf32> -> vector<8x384xf32>
    %487 = vector.broadcast %5 : vector<1x384xf32> to vector<8x384xf32>
    %488 = arith.addf %486, %487 : vector<8x384xf32>
    %cst_88 = arith.constant dense<0.000000e+00> : vector<8x384xf32>
    %489 = tpu.matmul %454, %3, %cst_88 {dimension_numbers = #tpu.dot_dimension_numbers<[1], [0], [0], [1], [0, 0, 1, 1], [], []>} : vector<8x128xf32>, vector<128x384xf32>, vector<8x384xf32> -> vector<8x384xf32>
    %490 = vector.extract_strided_slice %488 {offsets = [0, 0], sizes = [8, 128], strides = [1, 1]} : vector<8x384xf32> to vector<8x128xf32>
    %491 = vector.extract_strided_slice %489 {offsets = [0, 0], sizes = [8, 128], strides = [1, 1]} : vector<8x384xf32> to vector<8x128xf32>
    %492 = arith.addf %490, %491 : vector<8x128xf32>
    %493 = arith.negf %492 : vector<8x128xf32>
    %494 = math.exp %493 : vector<8x128xf32>
    %cst_89 = arith.constant 1.000000e+00 : f32
    %495 = vector.broadcast %cst_89 : f32 to vector<8x128xf32>
    %496 = arith.addf %495, %494 : vector<8x128xf32>
    %497 = arith.divf %495, %496 : vector<8x128xf32>
    %498 = vector.extract_strided_slice %488 {offsets = [0, 128], sizes = [8, 128], strides = [1, 1]} : vector<8x384xf32> to vector<8x128xf32>
    %499 = vector.extract_strided_slice %489 {offsets = [0, 128], sizes = [8, 128], strides = [1, 1]} : vector<8x384xf32> to vector<8x128xf32>
    %500 = arith.addf %498, %499 : vector<8x128xf32>
    %501 = arith.negf %500 : vector<8x128xf32>
    %502 = math.exp %501 : vector<8x128xf32>
    %cst_90 = arith.constant 1.000000e+00 : f32
    %503 = vector.broadcast %cst_90 : f32 to vector<8x128xf32>
    %504 = arith.addf %503, %502 : vector<8x128xf32>
    %505 = arith.divf %503, %504 : vector<8x128xf32>
    %506 = vector.extract_strided_slice %488 {offsets = [0, 256], sizes = [8, 128], strides = [1, 1]} : vector<8x384xf32> to vector<8x128xf32>
    %507 = vector.extract_strided_slice %489 {offsets = [0, 256], sizes = [8, 128], strides = [1, 1]} : vector<8x384xf32> to vector<8x128xf32>
    %508 = vector.broadcast %7 : vector<1x128xf32> to vector<8x128xf32>
    %509 = arith.addf %507, %508 : vector<8x128xf32>
    %510 = arith.mulf %497, %509 : vector<8x128xf32>
    %511 = arith.addf %506, %510 : vector<8x128xf32>
    %512 = math.tanh %511 : vector<8x128xf32>
    %cst_91 = arith.constant 1.000000e+00 : f32
    %513 = vector.broadcast %cst_91 : f32 to vector<8x128xf32>
    %514 = arith.subf %513, %505 : vector<8x128xf32>
    %515 = arith.mulf %514, %512 : vector<8x128xf32>
    %516 = arith.mulf %505, %454 : vector<8x128xf32>
    %517 = arith.addf %515, %516 : vector<8x128xf32>
    %518 = arith.addf %455, %517 : vector<8x128xf32>
    %c0_92 = arith.constant 0 : index
    %c0_93 = arith.constant 0 : index
    %519 = vector.load %arg1[%c0_92, %c0_93] : memref<8x1xf32, #tpu.memory_space<vmem>>, vector<8x1xf32>
    %c0_94 = arith.constant 0 : index
    %c0_95 = arith.constant 0 : index
    %520 = vector.load %arg10[%c0_94, %c0_95] : memref<128x640xf32, #tpu.memory_space<vmem>>, vector<128x640xf32>
    %cst_96 = arith.constant dense<0.000000e+00> : vector<8x640xf32>
    %521 = tpu.matmul %518, %520, %cst_96 {dimension_numbers = #tpu.dot_dimension_numbers<[1], [0], [0], [1], [0, 0, 1, 1], [], []>} : vector<8x128xf32>, vector<128x640xf32>, vector<8x640xf32> -> vector<8x640xf32>
    %c0_97 = arith.constant 0 : index
    %c0_98 = arith.constant 0 : index
    %522 = vector.load %arg11[%c0_97, %c0_98] : memref<1x640xf32, #tpu.memory_space<vmem>>, vector<1x640xf32>
    %523 = vector.broadcast %522 : vector<1x640xf32> to vector<8x640xf32>
    %524 = arith.addf %521, %523 : vector<8x640xf32>
    %525 = vector.broadcast %519 : vector<8x1xf32> to vector<8x640xf32>
    %526 = arith.mulf %524, %525 : vector<8x640xf32>
    %cst_99 = arith.constant dense<0.000000e+00> : vector<640xf32>
    %527 = vector.multi_reduction <add>, %526, %cst_99 [0] : vector<8x640xf32> to vector<640xf32>
    %528 = vector.shape_cast %527 : vector<640xf32> to vector<1x640xf32>
    %cst_100 = arith.constant 5.000000e-01 : f32
    %529 = vector.broadcast %cst_100 : f32 to vector<1x640xf32>
    %530 = arith.mulf %528, %529 : vector<1x640xf32>
    %531 = vector.broadcast %530 : vector<1x640xf32> to vector<8x640xf32>
    %532 = arith.subf %524, %531 : vector<8x640xf32>
    %533 = arith.mulf %532, %532 : vector<8x640xf32>
    %534 = vector.broadcast %519 : vector<8x1xf32> to vector<8x640xf32>
    %535 = arith.mulf %533, %534 : vector<8x640xf32>
    %cst_101 = arith.constant dense<0.000000e+00> : vector<640xf32>
    %536 = vector.multi_reduction <add>, %535, %cst_101 [0] : vector<8x640xf32> to vector<640xf32>
    %537 = vector.shape_cast %536 : vector<640xf32> to vector<1x640xf32>
    %cst_102 = arith.constant 5.000000e-01 : f32
    %538 = vector.broadcast %cst_102 : f32 to vector<1x640xf32>
    %539 = arith.mulf %537, %538 : vector<1x640xf32>
    %cst_103 = arith.constant 9.99999974E-6 : f32
    %540 = vector.broadcast %cst_103 : f32 to vector<1x640xf32>
    %541 = arith.addf %539, %540 : vector<1x640xf32>
    %542 = math.rsqrt %541 : vector<1x640xf32>
    %543 = vector.broadcast %542 : vector<1x640xf32> to vector<8x640xf32>
    %544 = arith.mulf %532, %543 : vector<8x640xf32>
    %c0_104 = arith.constant 0 : index
    %c0_105 = arith.constant 0 : index
    %545 = vector.load %arg12[%c0_104, %c0_105] : memref<1x640xf32, #tpu.memory_space<vmem>>, vector<1x640xf32>
    %546 = vector.broadcast %545 : vector<1x640xf32> to vector<8x640xf32>
    %547 = arith.mulf %544, %546 : vector<8x640xf32>
    %c0_106 = arith.constant 0 : index
    %c0_107 = arith.constant 0 : index
    %548 = vector.load %arg13[%c0_106, %c0_107] : memref<1x640xf32, #tpu.memory_space<vmem>>, vector<1x640xf32>
    %549 = vector.broadcast %548 : vector<1x640xf32> to vector<8x640xf32>
    %550 = arith.addf %547, %549 : vector<8x640xf32>
    %cst_108 = arith.constant 0.000000e+00 : f32
    %551 = vector.broadcast %cst_108 : f32 to vector<8x640xf32>
    %552 = arith.maximumf %550, %551 : vector<8x640xf32>
    %c0_109 = arith.constant 0 : index
    %c0_110 = arith.constant 0 : index
    %553 = vector.load %arg14[%c0_109, %c0_110] : memref<640x640xf32, #tpu.memory_space<vmem>>, vector<640x640xf32>
    %cst_111 = arith.constant dense<0.000000e+00> : vector<8x640xf32>
    %554 = tpu.matmul %552, %553, %cst_111 {dimension_numbers = #tpu.dot_dimension_numbers<[1], [0], [0], [1], [0, 0, 1, 1], [], []>} : vector<8x640xf32>, vector<640x640xf32>, vector<8x640xf32> -> vector<8x640xf32>
    %c0_112 = arith.constant 0 : index
    %c0_113 = arith.constant 0 : index
    %555 = vector.load %arg15[%c0_112, %c0_113] : memref<1x640xf32, #tpu.memory_space<vmem>>, vector<1x640xf32>
    %556 = vector.broadcast %555 : vector<1x640xf32> to vector<8x640xf32>
    %557 = arith.addf %554, %556 : vector<8x640xf32>
    %558 = vector.broadcast %519 : vector<8x1xf32> to vector<8x640xf32>
    %559 = arith.mulf %557, %558 : vector<8x640xf32>
    %cst_114 = arith.constant dense<0.000000e+00> : vector<640xf32>
    %560 = vector.multi_reduction <add>, %559, %cst_114 [0] : vector<8x640xf32> to vector<640xf32>
    %561 = vector.shape_cast %560 : vector<640xf32> to vector<1x640xf32>
    %cst_115 = arith.constant 5.000000e-01 : f32
    %562 = vector.broadcast %cst_115 : f32 to vector<1x640xf32>
    %563 = arith.mulf %561, %562 : vector<1x640xf32>
    %564 = vector.broadcast %563 : vector<1x640xf32> to vector<8x640xf32>
    %565 = arith.subf %557, %564 : vector<8x640xf32>
    %566 = arith.mulf %565, %565 : vector<8x640xf32>
    %567 = vector.broadcast %519 : vector<8x1xf32> to vector<8x640xf32>
    %568 = arith.mulf %566, %567 : vector<8x640xf32>
    %cst_116 = arith.constant dense<0.000000e+00> : vector<640xf32>
    %569 = vector.multi_reduction <add>, %568, %cst_116 [0] : vector<8x640xf32> to vector<640xf32>
    %570 = vector.shape_cast %569 : vector<640xf32> to vector<1x640xf32>
    %cst_117 = arith.constant 5.000000e-01 : f32
    %571 = vector.broadcast %cst_117 : f32 to vector<1x640xf32>
    %572 = arith.mulf %570, %571 : vector<1x640xf32>
    %cst_118 = arith.constant 9.99999974E-6 : f32
    %573 = vector.broadcast %cst_118 : f32 to vector<1x640xf32>
    %574 = arith.addf %572, %573 : vector<1x640xf32>
    %575 = math.rsqrt %574 : vector<1x640xf32>
    %576 = vector.broadcast %575 : vector<1x640xf32> to vector<8x640xf32>
    %577 = arith.mulf %565, %576 : vector<8x640xf32>
    %c0_119 = arith.constant 0 : index
    %c0_120 = arith.constant 0 : index
    %578 = vector.load %arg16[%c0_119, %c0_120] : memref<1x640xf32, #tpu.memory_space<vmem>>, vector<1x640xf32>
    %579 = vector.broadcast %578 : vector<1x640xf32> to vector<8x640xf32>
    %580 = arith.mulf %577, %579 : vector<8x640xf32>
    %c0_121 = arith.constant 0 : index
    %c0_122 = arith.constant 0 : index
    %581 = vector.load %arg17[%c0_121, %c0_122] : memref<1x640xf32, #tpu.memory_space<vmem>>, vector<1x640xf32>
    %582 = vector.broadcast %581 : vector<1x640xf32> to vector<8x640xf32>
    %583 = arith.addf %580, %582 : vector<8x640xf32>
    %c0_123 = arith.constant 0 : index
    %c0_124 = arith.constant 0 : index
    %584 = vector.load %arg18[%c0_123, %c0_124] : memref<640x128xf32, #tpu.memory_space<vmem>>, vector<640x128xf32>
    %cst_125 = arith.constant dense<0.000000e+00> : vector<8x128xf32>
    %585 = tpu.matmul %583, %584, %cst_125 {dimension_numbers = #tpu.dot_dimension_numbers<[1], [0], [0], [1], [0, 0, 1, 1], [], []>} : vector<8x640xf32>, vector<640x128xf32>, vector<8x128xf32> -> vector<8x128xf32>
    %c0_126 = arith.constant 0 : index
    %c0_127 = arith.constant 0 : index
    %586 = vector.load %arg19[%c0_126, %c0_127] : memref<1x128xf32, #tpu.memory_space<vmem>>, vector<1x128xf32>
    %587 = vector.broadcast %586 : vector<1x128xf32> to vector<8x128xf32>
    %588 = arith.addf %585, %587 : vector<8x128xf32>
    %cst_128 = arith.constant 0.000000e+00 : f32
    %589 = vector.broadcast %cst_128 : f32 to vector<8x128xf32>
    %590 = arith.maximumf %588, %589 : vector<8x128xf32>
    %c0_129 = arith.constant 0 : index
    %c0_130 = arith.constant 0 : index
    %591 = vector.load %arg20[%c0_129, %c0_130] : memref<8x128xf32, #tpu.memory_space<vmem>>, vector<8x128xf32>
    tpu.vector_store %arg20[%c0_129, %c0_130], %590 {strides = array<i32>} : memref<8x128xf32, #tpu.memory_space<vmem>>, vector<8x128xf32>,
    return
  }
}

</mosaic_0001>

<llo_original>
// kernel: concept_learner_gru_forward.1
$region0: #{concept_learner_gru_forward.1}
  #allocation0 [shape = 'u32[]', space=smem, size = 0x4, offset = 0x4, fixed_abs, tag = 'smem constant byte address 0x4 - core index']
  #allocation1 [shape = 'u32[72,128]{1,0:T(1,128)}', space=vmem, size = 0x9000, scoped, tag = 'internal scratch']
  %s0 = inlined_call_operand.vmem [shape: f32[64,32], index: 0, kind: input, shape index: {}]
  %s1 = inlined_call_operand.vmem [shape: f32[8,1], index: 1, kind: input, shape index: {}]
  %s2 = inlined_call_operand.hbm [shape: f32[32,384], index: 2, kind: input, shape index: {}]
  %s3 = inlined_call_operand.hbm [shape: f32[128,384], index: 3, kind: input, shape index: {}]
  %s4 = inlined_call_operand.hbm [shape: f32[1,384], index: 4, kind: input, shape index: {}]
  %s5 = inlined_call_operand.hbm [shape: f32[1,128], index: 5, kind: input, shape index: {}]
  %s6 = inlined_call_operand.hbm [shape: f32[128,384], index: 6, kind: input, shape index: {}]
  %s7 = inlined_call_operand.hbm [shape: f32[128,384], index: 7, kind: input, shape index: {}]
  %s8 = inlined_call_operand.hbm [shape: f32[1,384], index: 8, kind: input, shape index: {}]
  %s9 = inlined_call_operand.hbm [shape: f32[1,128], index: 9, kind: input, shape index: {}]
  %s10 = inlined_call_operand.hbm [shape: f32[128,640], index: 10, kind: input, shape index: {}]
  %s11 = inlined_call_operand.hbm [shape: f32[1,640], index: 11, kind: input, shape index: {}]
  %s12 = inlined_call_operand.hbm [shape: f32[1,640], index: 12, kind: input, shape index: {}]
  %s13 = inlined_call_operand.hbm [shape: f32[1,640], index: 13, kind: input, shape index: {}]
  %s14 = inlined_call_operand.hbm [shape: f32[640,640], index: 14, kind: input, shape index: {}]
  %s15 = inlined_call_operand.hbm [shape: f32[1,640], index: 15, kind: input, shape index: {}]
  %s16 = inlined_call_operand.hbm [shape: f32[1,640], index: 16, kind: input, shape index: {}]
  %s17 = inlined_call_operand.hbm [shape: f32[1,640], index: 17, kind: input, shape index: {}]
  %s18 = inlined_call_operand.hbm [shape: f32[640,128], index: 18, kind: input, shape index: {}]
  %s19 = inlined_call_operand.hbm [shape: f32[1,128], index: 19, kind: input, shape index: {}]
  %s20 = inlined_call_operand.vmem [shape: f32[8,128], index: 20, kind: output, shape index: {}]
  %s21 = sld [smem:[#allocation0]]
  $region162: #{concept_learner_gru_forward.1} parent=0
    _
  %s23 = ssub.s32 1, %s21
  %s24 = scalar_select 0, %s23, %s21
  $region1: #{concept_learner_gru_forward.1} parent=0
    #allocation2 [shape = 'u8[49152]{0}', space=vmem, size = 0xc000, scoped, tag = 'input window, operand 2, single buffered']
    #allocation3 [shape = 's32[1]{0}', space=sflag, size = 0x4, scoped, tag = 'scoped memory for concept_learner_gru_forward.1']
    #allocation4 [shape = 'u8[196608]{0}', space=vmem, size = 0x30000, scoped, tag = 'input window, operand 3, single buffered']
    #allocation5 [shape = 's32[1]{0}', space=sflag, size = 0x4, scoped, tag = 'scoped memory for concept_learner_gru_forward.1']
    #allocation6 [shape = 'u8[1536]{0}', space=vmem, size = 0x800, scoped, tag = 'input window, operand 4, single buffered']
    #allocation7 [shape = 'u8[512]{0}', space=vmem, size = 0x400, scoped, tag = 'input window, operand 5, single buffered']
    #allocation8 [shape = 's32[1]{0}', space=sflag, size = 0x4, scoped, tag = 'scoped memory for concept_learner_gru_forward.1']
    #allocation9 [shape = 'u8[196608]{0}', space=vmem, size = 0x30000, scoped, tag = 'input window, operand 6, single buffered']
    #allocation10 [shape = 'u8[196608]{0}', space=vmem, size = 0x30000, scoped, tag = 'input window, operand 7, single buffered']
    #allocation11 [shape = 's32[1]{0}', space=sflag, size = 0x4, scoped, tag = 'scoped memory for concept_learner_gru_forward.1']
    #allocation12 [shape = 'u8[1536]{0}', space=vmem, size = 0x800, scoped, tag = 'input window, operand 8, single buffered']
    #allocation13 [shape = 'u8[512]{0}', space=vmem, size = 0x400, scoped, tag = 'input window, operand 9, single buffered']
    #allocation14 [shape = 's32[1]{0}', space=sflag, size = 0x4, scoped, tag = 'scoped memory for concept_learner_gru_forward.1']
    #allocation15 [shape = 'u8[327680]{0}', space=vmem, size = 0x50000, scoped, tag = 'input window, operand 10, single buffered']
    #allocation16 [shape = 'u8[2560]{0}', space=vmem, size = 0xc00, scoped, tag = 'input window, operand 11, single buffered']
    #allocation17 [shape = 's32[1]{0}', space=sflag, size = 0x4, scoped, tag = 'scoped memory for concept_learner_gru_forward.1']
    #allocation18 [shape = 'u8[2560]{0}', space=vmem, size = 0xc00, scoped, tag = 'input window, operand 12, single buffered']
    #allocation19 [shape = 'u8[2560]{0}', space=vmem, size = 0xc00, scoped, tag = 'input window, operand 13, single buffered']
    #allocation20 [shape = 's32[1]{0}', space=sflag, size = 0x4, scoped, tag = 'scoped memory for concept_learner_gru_forward.1']
    #allocation21 [shape = 'u8[1638400]{0}', space=vmem, size = 0x190000, scoped, tag = 'input window, operand 14, single buffered']
    #allocation22 [shape = 'u8[2560]{0}', space=vmem, size = 0xc00, scoped, tag = 'input window, operand 15, single buffered']
    #allocation23 [shape = 's32[1]{0}', space=sflag, size = 0x4, scoped, tag = 'scoped memory for concept_learner_gru_forward.1']
    #allocation24 [shape = 'u8[2560]{0}', space=vmem, size = 0xc00, scoped, tag = 'input window, operand 16, single buffered']
    #allocation25 [shape = 'u8[2560]{0}', space=vmem, size = 0xc00, scoped, tag = 'input window, operand 17, single buffered']
    #allocation26 [shape = 's32[1]{0}', space=sflag, size = 0x4, scoped, tag = 'scoped memory for concept_learner_gru_forward.1']
    #allocation27 [shape = 'u8[327680]{0}', space=vmem, size = 0x50000, scoped, tag = 'input window, operand 18, single buffered']
    #allocation28 [shape = 'u8[512]{0}', space=vmem, size = 0x400, scoped, tag = 'input window, operand 19, single buffered']
    #allocation29 [shape = 's32[1]{0}', space=sflag, size = 0x4, scoped, tag = 'scoped memory for concept_learner_gru_forward.1']
    %25 = vsyncpa [#allocation3], 0
    %26 = vsyncpa [#allocation5], 0
    %27 = vsyncpa [#allocation8], 0
    %28 = vsyncpa [#allocation11], 0
    %29 = vsyncpa [#allocation14], 0
    %30 = vsyncpa [#allocation17], 0
    %31 = vsyncpa [#allocation20], 0
    %32 = vsyncpa [#allocation23], 0
    %33 = vsyncpa [#allocation26], 0
    %34 = vsyncpa [#allocation29], 0
    // Predicated region
    $region2: #{concept_learner_gru_forward.1} parent=1 // pred_check
      _
    $region3: #{concept_learner_gru_forward.1} parent=1 // pred_check_branch
      %36 = sbr.rel (0) target = $region5
    $region4: #{concept_learner_gru_forward.1} parent=1 // pred_region
      _
    $region5: #{concept_learner_gru_forward.1} parent=1 // pred_fallthru
      _
    // Predicated region
    $region6: #{concept_learner_gru_forward.1} parent=1 // pred_check
      _
    $region7: #{concept_learner_gru_forward.1} parent=1 // pred_check_branch
      %38 = sbr.rel (0) target = $region9
    $region8: #{concept_learner_gru_forward.1} parent=1 // pred_region
      _
    $region9: #{concept_learner_gru_forward.1} parent=1 // pred_fallthru
      _
    // Predicated region
    $region10: #{concept_learner_gru_forward.1} parent=1 // pred_check
      _
    $region11: #{concept_learner_gru_forward.1} parent=1 // pred_check_branch
      %40 = sbr.rel (0) target = $region13
    $region12: #{concept_learner_gru_forward.1} parent=1 // pred_region
      %42 = vsyncadd [#allocation3], 0
      %s43 = sshll.u32 %s2, 4
      %s44 = int_to_ptr.hbm [resolvable:$true] %s43
      %s45 = sshll.u32 [#allocation2], 4
      %s46 = int_to_ptr.vmem [resolvable:$true] %s45
      %51 = dma.hbm_to_vmem [thread:$0]  %s44, 1536, %s46, [#allocation3], 384, 384, 24
    $region13: #{concept_learner_gru_forward.1} parent=1 // pred_fallthru
      _
    // Predicated region
    $region14: #{concept_learner_gru_forward.1} parent=1 // pred_check
      _
    $region15: #{concept_learner_gru_forward.1} parent=1 // pred_check_branch
      %53 = sbr.rel (0) target = $region17
    $region16: #{concept_learner_gru_forward.1} parent=1 // pred_region
      %55 = vsyncadd [#allocation5], 0
      %s56 = sshll.u32 %s3, 4
      %s57 = int_to_ptr.hbm [resolvable:$true] %s56
      %s58 = sshll.u32 [#allocation4], 4
      %s59 = int_to_ptr.vmem [resolvable:$true] %s58
      %64 = dma.hbm_to_vmem [thread:$0]  %s57, 6144, %s59, [#allocation5], 384, 384, 24
    $region17: #{concept_learner_gru_forward.1} parent=1 // pred_fallthru
      _
    // Predicated region
    $region18: #{concept_learner_gru_forward.1} parent=1 // pred_check
      _
    $region19: #{concept_learner_gru_forward.1} parent=1 // pred_check_branch
      %66 = sbr.rel (0) target = $region21
    $region20: #{concept_learner_gru_forward.1} parent=1 // pred_region
      %68 = vsyncadd [#allocation5], 0
      %s70 = sshll.u32 %s4, 4
      %s71 = int_to_ptr.hbm [resolvable:$true] %s70
      %s72 = sshll.u32 [#allocation6], 4
      %s73 = int_to_ptr.vmem [resolvable:$true] %s72
      %75 = dma.hbm_to_vmem [thread:$0]  %s71, 48, %s73, [#allocation5]
    $region21: #{concept_learner_gru_forward.1} parent=1 // pred_fallthru
      _
    // Predicated region
    $region22: #{concept_learner_gru_forward.1} parent=1 // pred_check
      _
    $region23: #{concept_learner_gru_forward.1} parent=1 // pred_check_branch
      %77 = sbr.rel (0) target = $region25
    $region24: #{concept_learner_gru_forward.1} parent=1 // pred_region
      %79 = vsyncadd [#allocation8], 0
      %s81 = sshll.u32 %s5, 4
      %s82 = int_to_ptr.hbm [resolvable:$true] %s81
      %s83 = sshll.u32 [#allocation7], 4
      %s84 = int_to_ptr.vmem [resolvable:$true] %s83
      %86 = dma.hbm_to_vmem [thread:$0]  %s82, 16, %s84, [#allocation8]
    $region25: #{concept_learner_gru_forward.1} parent=1 // pred_fallthru
      _
    // Predicated region
    $region26: #{concept_learner_gru_forward.1} parent=1 // pred_check
      _
    $region27: #{concept_learner_gru_forward.1} parent=1 // pred_check_branch
      %88 = sbr.rel (0) target = $region29
    $region28: #{concept_learner_gru_forward.1} parent=1 // pred_region
      %90 = vsyncadd [#allocation8], 0
      %s91 = sshll.u32 %s6, 4
      %s92 = int_to_ptr.hbm [resolvable:$true] %s91
      %s93 = sshll.u32 [#allocation9], 4
      %s94 = int_to_ptr.vmem [resolvable:$true] %s93
      %99 = dma.hbm_to_vmem [thread:$0]  %s92, 6144, %s94, [#allocation8], 384, 384, 24
    $region29: #{concept_learner_gru_forward.1} parent=1 // pred_fallthru
      _
    // Predicated region
    $region30: #{concept_learner_gru_forward.1} parent=1 // pred_check
      _
    $region31: #{concept_learner_gru_forward.1} parent=1 // pred_check_branch
      %101 = sbr.rel (0) target = $region33
    $region32: #{concept_learner_gru_forward.1} parent=1 // pred_region
      %103 = vsyncadd [#allocation11], 0
      %s104 = sshll.u32 %s7, 4
      %s105 = int_to_ptr.hbm [resolvable:$true] %s104
      %s106 = sshll.u32 [#allocation10], 4
      %s107 = int_to_ptr.vmem [resolvable:$true] %s106
      %112 = dma.hbm_to_vmem [thread:$0]  %s105, 6144, %s107, [#allocation11], 384, 384, 24
    $region33: #{concept_learner_gru_forward.1} parent=1 // pred_fallthru
      _
    // Predicated region
    $region34: #{concept_learner_gru_forward.1} parent=1 // pred_check
      _
    $region35: #{concept_learner_gru_forward.1} parent=1 // pred_check_branch
      %114 = sbr.rel (0) target = $region37
    $region36: #{concept_learner_gru_forward.1} parent=1 // pred_region
      %116 = vsyncadd [#allocation11], 0
      %s118 = sshll.u32 %s8, 4
      %s119 = int_to_ptr.hbm [resolvable:$true] %s118
      %s120 = sshll.u32 [#allocation12], 4
      %s121 = int_to_ptr.vmem [resolvable:$true] %s120
      %123 = dma.hbm_to_vmem [thread:$0]  %s119, 48, %s121, [#allocation11]
    $region37: #{concept_learner_gru_forward.1} parent=1 // pred_fallthru
      _
    // Predicated region
    $region38: #{concept_learner_gru_forward.1} parent=1 // pred_check
      _
    $region39: #{concept_learner_gru_forward.1} parent=1 // pred_check_branch
      %125 = sbr.rel (0) target = $region41
    $region40: #{concept_learner_gru_forward.1} parent=1 // pred_region
      %127 = vsyncadd [#allocation14], 0
      %s129 = sshll.u32 %s9, 4
      %s130 = int_to_ptr.hbm [resolvable:$true] %s129
      %s131 = sshll.u32 [#allocation13], 4
      %s132 = int_to_ptr.vmem [resolvable:$true] %s131
      %134 = dma.hbm_to_vmem [thread:$0]  %s130, 16, %s132, [#allocation14]
    $region41: #{concept_learner_gru_forward.1} parent=1 // pred_fallthru
      _
    // Predicated region
    $region42: #{concept_learner_gru_forward.1} parent=1 // pred_check
      _
    $region43: #{concept_learner_gru_forward.1} parent=1 // pred_check_branch
      %136 = sbr.rel (0) target = $region45
    $region44: #{concept_learner_gru_forward.1} parent=1 // pred_region
      %138 = vsyncadd [#allocation14], 0
      %s139 = sshll.u32 %s10, 4
      %s140 = int_to_ptr.hbm [resolvable:$true] %s139
      %s141 = sshll.u32 [#allocation15], 4
      %s142 = int_to_ptr.vmem [resolvable:$true] %s141
      %147 = dma.hbm_to_vmem [thread:$0]  %s140, 10240, %s142, [#allocation14], 640, 640, 40
    $region45: #{concept_learner_gru_forward.1} parent=1 // pred_fallthru
      _
    // Predicated region
    $region46: #{concept_learner_gru_forward.1} parent=1 // pred_check
      _
    $region47: #{concept_learner_gru_forward.1} parent=1 // pred_check_branch
      %149 = sbr.rel (0) target = $region49
    $region48: #{concept_learner_gru_forward.1} parent=1 // pred_region
      %151 = vsyncadd [#allocation17], 0
      %s153 = sshll.u32 %s11, 4
      %s154 = int_to_ptr.hbm [resolvable:$true] %s153
      %s155 = sshll.u32 [#allocation16], 4
      %s156 = int_to_ptr.vmem [resolvable:$true] %s155
      %158 = dma.hbm_to_vmem [thread:$0]  %s154, 80, %s156, [#allocation17]
    $region49: #{concept_learner_gru_forward.1} parent=1 // pred_fallthru
      _
    // Predicated region
    $region50: #{concept_learner_gru_forward.1} parent=1 // pred_check
      _
    $region51: #{concept_learner_gru_forward.1} parent=1 // pred_check_branch
      %160 = sbr.rel (0) target = $region53
    $region52: #{concept_learner_gru_forward.1} parent=1 // pred_region
      %162 = vsyncadd [#allocation17], 0
      %s164 = sshll.u32 %s12, 4
      %s165 = int_to_ptr.hbm [resolvable:$true] %s164
      %s166 = sshll.u32 [#allocation18], 4
      %s167 = int_to_ptr.vmem [resolvable:$true] %s166
      %169 = dma.hbm_to_vmem [thread:$0]  %s165, 80, %s167, [#allocation17]
    $region53: #{concept_learner_gru_forward.1} parent=1 // pred_fallthru
      _
    // Predicated region
    $region54: #{concept_learner_gru_forward.1} parent=1 // pred_check
      _
    $region55: #{concept_learner_gru_forward.1} parent=1 // pred_check_branch
      %171 = sbr.rel (0) target = $region57
    $region56: #{concept_learner_gru_forward.1} parent=1 // pred_region
      %173 = vsyncadd [#allocation20], 0
      %s175 = sshll.u32 %s13, 4
      %s176 = int_to_ptr.hbm [resolvable:$true] %s175
      %s177 = sshll.u32 [#allocation19], 4
      %s178 = int_to_ptr.vmem [resolvable:$true] %s177
      %180 = dma.hbm_to_vmem [thread:$0]  %s176, 80, %s178, [#allocation20]
    $region57: #{concept_learner_gru_forward.1} parent=1 // pred_fallthru
      _
    // Predicated region
    $region58: #{concept_learner_gru_forward.1} parent=1 // pred_check
      _
    $region59: #{concept_learner_gru_forward.1} parent=1 // pred_check_branch
      %182 = sbr.rel (0) target = $region61
    $region60: #{concept_learner_gru_forward.1} parent=1 // pred_region
      %184 = vsyncadd [#allocation20], 0
      %s185 = sshll.u32 %s14, 4
      %s186 = int_to_ptr.hbm [resolvable:$true] %s185
      %s187 = sshll.u32 [#allocation21], 4
      %s188 = int_to_ptr.vmem [resolvable:$true] %s187
      %193 = dma.hbm_to_vmem [thread:$0]  %s186, 51200, %s188, [#allocation20], 640, 640, 40
    $region61: #{concept_learner_gru_forward.1} parent=1 // pred_fallthru
      _
    // Predicated region
    $region62: #{concept_learner_gru_forward.1} parent=1 // pred_check
      _
    $region63: #{concept_learner_gru_forward.1} parent=1 // pred_check_branch
      %195 = sbr.rel (0) target = $region65
    $region64: #{concept_learner_gru_forward.1} parent=1 // pred_region
      %197 = vsyncadd [#allocation23], 0
      %s199 = sshll.u32 %s15, 4
      %s200 = int_to_ptr.hbm [resolvable:$true] %s199
      %s201 = sshll.u32 [#allocation22], 4
      %s202 = int_to_ptr.vmem [resolvable:$true] %s201
      %204 = dma.hbm_to_vmem [thread:$0]  %s200, 80, %s202, [#allocation23]
    $region65: #{concept_learner_gru_forward.1} parent=1 // pred_fallthru
      _
    // Predicated region
    $region66: #{concept_learner_gru_forward.1} parent=1 // pred_check
      _
    $region67: #{concept_learner_gru_forward.1} parent=1 // pred_check_branch
      %206 = sbr.rel (0) target = $region69
    $region68: #{concept_learner_gru_forward.1} parent=1 // pred_region
      %208 = vsyncadd [#allocation23], 0
      %s210 = sshll.u32 %s16, 4
      %s211 = int_to_ptr.hbm [resolvable:$true] %s210
      %s212 = sshll.u32 [#allocation24], 4
      %s213 = int_to_ptr.vmem [resolvable:$true] %s212
      %215 = dma.hbm_to_vmem [thread:$0]  %s211, 80, %s213, [#allocation23]
    $region69: #{concept_learner_gru_forward.1} parent=1 // pred_fallthru
      _
    // Predicated region
    $region70: #{concept_learner_gru_forward.1} parent=1 // pred_check
      _
    $region71: #{concept_learner_gru_forward.1} parent=1 // pred_check_branch
      %217 = sbr.rel (0) target = $region73
    $region72: #{concept_learner_gru_forward.1} parent=1 // pred_region
      %219 = vsyncadd [#allocation26], 0
      %s221 = sshll.u32 %s17, 4
      %s222 = int_to_ptr.hbm [resolvable:$true] %s221
      %s223 = sshll.u32 [#allocation25], 4
      %s224 = int_to_ptr.vmem [resolvable:$true] %s223
      %226 = dma.hbm_to_vmem [thread:$0]  %s222, 80, %s224, [#allocation26]
    $region73: #{concept_learner_gru_forward.1} parent=1 // pred_fallthru
      _
    // Predicated region
    $region74: #{concept_learner_gru_forward.1} parent=1 // pred_check
      _
    $region75: #{concept_learner_gru_forward.1} parent=1 // pred_check_branch
      %228 = sbr.rel (0) target = $region77
    $region76: #{concept_learner_gru_forward.1} parent=1 // pred_region
      %230 = vsyncadd [#allocation26], 0
      %s231 = sshll.u32 %s18, 4
      %s232 = int_to_ptr.hbm [resolvable:$true] %s231
      %s233 = sshll.u32 [#allocation27], 4
      %s234 = int_to_ptr.vmem [resolvable:$true] %s233
      %239 = dma.hbm_to_vmem [thread:$0]  %s232, 10240, %s234, [#allocation26], 128, 128, 8
    $region77: #{concept_learner_gru_forward.1} parent=1 // pred_fallthru
      _
    // Predicated region
    $region78: #{concept_learner_gru_forward.1} parent=1 // pred_check
      _
    $region79: #{concept_learner_gru_forward.1} parent=1 // pred_check_branch
      %241 = sbr.rel (0) target = $region81
    $region80: #{concept_learner_gru_forward.1} parent=1 // pred_region
      %243 = vsyncadd [#allocation29], 0
      %s245 = sshll.u32 %s19, 4
      %s246 = int_to_ptr.hbm [resolvable:$true] %s245
      %s247 = sshll.u32 [#allocation28], 4
      %s248 = int_to_ptr.vmem [resolvable:$true] %s247
      %250 = dma.hbm_to_vmem [thread:$0]  %s246, 16, %s248, [#allocation29]
    $region81: #{concept_learner_gru_forward.1} parent=1 // pred_fallthru
      _
    // Predicated region
    $region82: #{concept_learner_gru_forward.1} parent=1 // pred_check
      _
    $region83: #{concept_learner_gru_forward.1} parent=1 // pred_check_branch
      %252 = sbr.rel (0) target = $region85
    $region84: #{concept_learner_gru_forward.1} parent=1 // pred_region
      %254 = dma.done [#allocation3], 1536
    $region85: #{concept_learner_gru_forward.1} parent=1 // pred_fallthru
      _
    // Predicated region
    $region86: #{concept_learner_gru_forward.1} parent=1 // pred_check
      _
    $region87: #{concept_learner_gru_forward.1} parent=1 // pred_check_branch
      %256 = sbr.rel (0) target = $region89
    $region88: #{concept_learner_gru_forward.1} parent=1 // pred_region
      %258 = dma.done [#allocation5], 6144
    $region89: #{concept_learner_gru_forward.1} parent=1 // pred_fallthru
      _
    // Predicated region
    $region90: #{concept_learner_gru_forward.1} parent=1 // pred_check
      _
    $region91: #{concept_learner_gru_forward.1} parent=1 // pred_check_branch
      %260 = sbr.rel (0) target = $region93
    $region92: #{concept_learner_gru_forward.1} parent=1 // pred_region
      %262 = dma.done [#allocation5], 48
    $region93: #{concept_learner_gru_forward.1} parent=1 // pred_fallthru
      _
    // Predicated region
    $region94: #{concept_learner_gru_forward.1} parent=1 // pred_check
      _
    $region95: #{concept_learner_gru_forward.1} parent=1 // pred_check_branch
      %264 = sbr.rel (0) target = $region97
    $region96: #{concept_learner_gru_forward.1} parent=1 // pred_region
      %266 = dma.done [#allocation8], 16
    $region97: #{concept_learner_gru_forward.1} parent=1 // pred_fallthru
      _
    // Predicated region
    $region98: #{concept_learner_gru_forward.1} parent=1 // pred_check
      _
    $region99: #{concept_learner_gru_forward.1} parent=1 // pred_check_branch
      %268 = sbr.rel (0) target = $region101
    $region100: #{concept_learner_gru_forward.1} parent=1 // pred_region
      %270 = dma.done [#allocation8], 6144
    $region101: #{concept_learner_gru_forward.1} parent=1 // pred_fallthru
      _
    // Predicated region
    $region102: #{concept_learner_gru_forward.1} parent=1 // pred_check
      _
    $region103: #{concept_learner_gru_forward.1} parent=1 // pred_check_branch
      %272 = sbr.rel (0) target = $region105
    $region104: #{concept_learner_gru_forward.1} parent=1 // pred_region
      %274 = dma.done [#allocation11], 6144
    $region105: #{concept_learner_gru_forward.1} parent=1 // pred_fallthru
      _
    // Predicated region
    $region106: #{concept_learner_gru_forward.1} parent=1 // pred_check
      _
    $region107: #{concept_learner_gru_forward.1} parent=1 // pred_check_branch
      %276 = sbr.rel (0) target = $region109
    $region108: #{concept_learner_gru_forward.1} parent=1 // pred_region
      %278 = dma.done [#allocation11], 48
    $region109: #{concept_learner_gru_forward.1} parent=1 // pred_fallthru
      _
    // Predicated region
    $region110: #{concept_learner_gru_forward.1} parent=1 // pred_check
      _
    $region111: #{concept_learner_gru_forward.1} parent=1 // pred_check_branch
      %280 = sbr.rel (0) target = $region113
    $region112: #{concept_learner_gru_forward.1} parent=1 // pred_region
      %282 = dma.done [#allocation14], 16
    $region113: #{concept_learner_gru_forward.1} parent=1 // pred_fallthru
      _
    // Predicated region
    $region114: #{concept_learner_gru_forward.1} parent=1 // pred_check
      _
    $region115: #{concept_learner_gru_forward.1} parent=1 // pred_check_branch
      %284 = sbr.rel (0) target = $region117
    $region116: #{concept_learner_gru_forward.1} parent=1 // pred_region
      %286 = dma.done [#allocation14], 10240
    $region117: #{concept_learner_gru_forward.1} parent=1 // pred_fallthru
      _
    // Predicated region
    $region118: #{concept_learner_gru_forward.1} parent=1 // pred_check
      _
    $region119: #{concept_learner_gru_forward.1} parent=1 // pred_check_branch
      %288 = sbr.rel (0) target = $region121
    $region120: #{concept_learner_gru_forward.1} parent=1 // pred_region
      %290 = dma.done [#allocation17], 80
    $region121: #{concept_learner_gru_forward.1} parent=1 // pred_fallthru
      _
    // Predicated region
    $region122: #{concept_learner_gru_forward.1} parent=1 // pred_check
      _
    $region123: #{concept_learner_gru_forward.1} parent=1 // pred_check_branch
      %292 = sbr.rel (0) target = $region125
    $region124: #{concept_learner_gru_forward.1} parent=1 // pred_region
      %294 = dma.done [#allocation17], 80
    $region125: #{concept_learner_gru_forward.1} parent=1 // pred_fallthru
      _
    // Predicated region
    $region126: #{concept_learner_gru_forward.1} parent=1 // pred_check
      _
    $region127: #{concept_learner_gru_forward.1} parent=1 // pred_check_branch
      %296 = sbr.rel (0) target = $region129
    $region128: #{concept_learner_gru_forward.1} parent=1 // pred_region
      %298 = dma.done [#allocation20], 80
    $region129: #{concept_learner_gru_forward.1} parent=1 // pred_fallthru
      _
    // Predicated region
    $region130: #{concept_learner_gru_forward.1} parent=1 // pred_check
      _
    $region131: #{concept_learner_gru_forward.1} parent=1 // pred_check_branch
      %300 = sbr.rel (0) target = $region133
    $region132: #{concept_learner_gru_forward.1} parent=1 // pred_region
      %302 = dma.done [#allocation20], 51200
    $region133: #{concept_learner_gru_forward.1} parent=1 // pred_fallthru
      _
    // Predicated region
    $region134: #{concept_learner_gru_forward.1} parent=1 // pred_check
      _
    $region135: #{concept_learner_gru_forward.1} parent=1 // pred_check_branch
      %304 = sbr.rel (0) target = $region137
    $region136: #{concept_learner_gru_forward.1} parent=1 // pred_region
      %306 = dma.done [#allocation23], 80
    $region137: #{concept_learner_gru_forward.1} parent=1 // pred_fallthru
      _
    // Predicated region
    $region138: #{concept_learner_gru_forward.1} parent=1 // pred_check
      _
    $region139: #{concept_learner_gru_forward.1} parent=1 // pred_check_branch
      %308 = sbr.rel (0) target = $region141
    $region140: #{concept_learner_gru_forward.1} parent=1 // pred_region
      %310 = dma.done [#allocation23], 80
    $region141: #{concept_learner_gru_forward.1} parent=1 // pred_fallthru
      _
    // Predicated region
    $region142: #{concept_learner_gru_forward.1} parent=1 // pred_check
      _
    $region143: #{concept_learner_gru_forward.1} parent=1 // pred_check_branch
      %312 = sbr.rel (0) target = $region145
    $region144: #{concept_learner_gru_forward.1} parent=1 // pred_region
      %314 = dma.done [#allocation26], 80
    $region145: #{concept_learner_gru_forward.1} parent=1 // pred_fallthru
      _
    // Predicated region
    $region146: #{concept_learner_gru_forward.1} parent=1 // pred_check
      _
    $region147: #{concept_learner_gru_forward.1} parent=1 // pred_check_branch
      %316 = sbr.rel (0) target = $region149
    $region148: #{concept_learner_gru_forward.1} parent=1 // pred_region
      %318 = dma.done [#allocation26], 10240
    $region149: #{concept_learner_gru_forward.1} parent=1 // pred_fallthru
      _
    // Predicated region
    $region150: #{concept_learner_gru_forward.1} parent=1 // pred_check
      _
    $region151: #{concept_learner_gru_forward.1} parent=1 // pred_check_branch
      %320 = sbr.rel (0) target = $region153
    $region152: #{concept_learner_gru_forward.1} parent=1 // pred_region
      %322 = dma.done [#allocation29], 16
    $region153: #{concept_learner_gru_forward.1} parent=1 // pred_fallthru
      _
    %v323 = vld [vmem:[#allocation2] sm:$0xff]
    %v324 = vld [vmem:[#allocation2 + $0x8] sm:$0xff]
    %v325 = vld [vmem:[#allocation2 + $0x10] sm:$0xff]
    %v326 = vld [vmem:[#allocation2 + $0x18] sm:$0xff]
    %v327 = vld [vmem:[#allocation2 + $0x20] sm:$0xff]
    %v328 = vld [vmem:[#allocation2 + $0x28] sm:$0xff]
    %v329 = vld [vmem:[#allocation2 + $0x30] sm:$0xff]
    %v330 = vld [vmem:[#allocation2 + $0x38] sm:$0xff]
    %v331 = vld [vmem:[#allocation2 + $0x40] sm:$0xff]
    %v332 = vld [vmem:[#allocation2 + $0x48] sm:$0xff]
    %v333 = vld [vmem:[#allocation2 + $0x50] sm:$0xff]
    %v334 = vld [vmem:[#allocation2 + $0x58] sm:$0xff]
    %v335 = vld [vmem:[#allocation9] sm:$0xff]
    %v336 = vld [vmem:[#allocation9 + $0x8] sm:$0xff]
    %v337 = vld [vmem:[#allocation9 + $0x10] sm:$0xff]
    %v338 = vld [vmem:[#allocation9 + $0x18] sm:$0xff]
    %v339 = vld [vmem:[#allocation9 + $0x20] sm:$0xff]
    %v340 = vld [vmem:[#allocation9 + $0x28] sm:$0xff]
    %v341 = vld [vmem:[#allocation9 + $0x30] sm:$0xff]
    %v342 = vld [vmem:[#allocation9 + $0x38] sm:$0xff]
    %v343 = vld [vmem:[#allocation9 + $0x40] sm:$0xff]
    %v344 = vld [vmem:[#allocation9 + $0x48] sm:$0xff]
    %v345 = vld [vmem:[#allocation9 + $0x50] sm:$0xff]
    %v346 = vld [vmem:[#allocation9 + $0x58] sm:$0xff]
    %v347 = vld [vmem:[#allocation9 + $0x60] sm:$0xff]
    %v348 = vld [vmem:[#allocation9 + $0x68] sm:$0xff]
    %v349 = vld [vmem:[#allocation9 + $0x70] sm:$0xff]
    %v350 = vld [vmem:[#allocation9 + $0x78] sm:$0xff]
    %v351 = vld [vmem:[#allocation9 + $0x80] sm:$0xff]
    %v352 = vld [vmem:[#allocation9 + $0x88] sm:$0xff]
    %v353 = vld [vmem:[#allocation9 + $0x90] sm:$0xff]
    %v354 = vld [vmem:[#allocation9 + $0x98] sm:$0xff]
    %v355 = vld [vmem:[#allocation9 + $0xa0] sm:$0xff]
    %v356 = vld [vmem:[#allocation9 + $0xa8] sm:$0xff]
    %v357 = vld [vmem:[#allocation9 + $0xb0] sm:$0xff]
    %v358 = vld [vmem:[#allocation9 + $0xb8] sm:$0xff]
    %v359 = vld [vmem:[#allocation9 + $0xc0] sm:$0xff]
    %v360 = vld [vmem:[#allocation9 + $0xc8] sm:$0xff]
    %v361 = vld [vmem:[#allocation9 + $0xd0] sm:$0xff]
    %v362 = vld [vmem:[#allocation9 + $0xd8] sm:$0xff]
    %v363 = vld [vmem:[#allocation9 + $0xe0] sm:$0xff]
    %v364 = vld [vmem:[#allocation9 + $0xe8] sm:$0xff]
    %v365 = vld [vmem:[#allocation9 + $0xf0] sm:$0xff]
    %v366 = vld [vmem:[#allocation9 + $0xf8] sm:$0xff]
    %v367 = vld [vmem:[#allocation9 + $0x100] sm:$0xff]
    %v368 = vld [vmem:[#allocation9 + $0x108] sm:$0xff]
    %v369 = vld [vmem:[#allocation9 + $0x110] sm:$0xff]
    %v370 = vld [vmem:[#allocation9 + $0x118] sm:$0xff]
    %v371 = vld [vmem:[#allocation9 + $0x120] sm:$0xff]
    %v372 = vld [vmem:[#allocation9 + $0x128] sm:$0xff]
    %v373 = vld [vmem:[#allocation9 + $0x130] sm:$0xff]
    %v374 = vld [vmem:[#allocation9 + $0x138] sm:$0xff]
    %v375 = vld [vmem:[#allocation9 + $0x140] sm:$0xff]
    %v376 = vld [vmem:[#allocation9 + $0x148] sm:$0xff]
    %v377 = vld [vmem:[#allocation9 + $0x150] sm:$0xff]
    %v378 = vld [vmem:[#allocation9 + $0x158] sm:$0xff]
    %v379 = vld [vmem:[#allocation9 + $0x160] sm:$0xff]
    %v380 = vld [vmem:[#allocation9 + $0x168] sm:$0xff]
    %v381 = vld [vmem:[#allocation9 + $0x170] sm:$0xff]
    %v382 = vld [vmem:[#allocation9 + $0x178] sm:$0xff]
    %v383 = vld [vmem:[#allocation4] sm:$0xff]
    %v384 = vld [vmem:[#allocation4 + $0x8] sm:$0xff]
    %v385 = vld [vmem:[#allocation4 + $0x10] sm:$0xff]
    %v386 = vld [vmem:[#allocation4 + $0x18] sm:$0xff]
    %v387 = vld [vmem:[#allocation4 + $0x20] sm:$0xff]
    %v388 = vld [vmem:[#allocation4 + $0x28] sm:$0xff]
    %v389 = vld [vmem:[#allocation4 + $0x30] sm:$0xff]
    %v390 = vld [vmem:[#allocation4 + $0x38] sm:$0xff]
    %v391 = vld [vmem:[#allocation4 + $0x40] sm:$0xff]
    %v392 = vld [vmem:[#allocation4 + $0x48] sm:$0xff]
    %v393 = vld [vmem:[#allocation4 + $0x50] sm:$0xff]
    %v394 = vld [vmem:[#allocation4 + $0x58] sm:$0xff]
    %v395 = vld [vmem:[#allocation4 + $0x60] sm:$0xff]
    %v396 = vld [vmem:[#allocation4 + $0x68] sm:$0xff]
    %v397 = vld [vmem:[#allocation4 + $0x70] sm:$0xff]
    %v398 = vld [vmem:[#allocation4 + $0x78] sm:$0xff]
    %v399 = vld [vmem:[#allocation4 + $0x80] sm:$0xff]
    %v400 = vld [vmem:[#allocation4 + $0x88] sm:$0xff]
    %v401 = vld [vmem:[#allocation4 + $0x90] sm:$0xff]
    %v402 = vld [vmem:[#allocation4 + $0x98] sm:$0xff]
    %v403 = vld [vmem:[#allocation4 + $0xa0] sm:$0xff]
    %v404 = vld [vmem:[#allocation4 + $0xa8] sm:$0xff]
    %v405 = vld [vmem:[#allocation4 + $0xb0] sm:$0xff]
    %v406 = vld [vmem:[#allocation4 + $0xb8] sm:$0xff]
    %v407 = vld [vmem:[#allocation4 + $0xc0] sm:$0xff]
    %v408 = vld [vmem:[#allocation4 + $0xc8] sm:$0xff]
    %v409 = vld [vmem:[#allocation4 + $0xd0] sm:$0xff]
    %v410 = vld [vmem:[#allocation4 + $0xd8] sm:$0xff]
    %v411 = vld [vmem:[#allocation4 + $0xe0] sm:$0xff]
    %v412 = vld [vmem:[#allocation4 + $0xe8] sm:$0xff]
    %v413 = vld [vmem:[#allocation4 + $0xf0] sm:$0xff]
    %v414 = vld [vmem:[#allocation4 + $0xf8] sm:$0xff]
    %v415 = vld [vmem:[#allocation4 + $0x100] sm:$0xff]
    %v416 = vld [vmem:[#allocation4 + $0x108] sm:$0xff]
    %v417 = vld [vmem:[#allocation4 + $0x110] sm:$0xff]
    %v418 = vld [vmem:[#allocation4 + $0x118] sm:$0xff]
    %v419 = vld [vmem:[#allocation4 + $0x120] sm:$0xff]
    %v420 = vld [vmem:[#allocation4 + $0x128] sm:$0xff]
    %v421 = vld [vmem:[#allocation4 + $0x130] sm:$0xff]
    %v422 = vld [vmem:[#allocation4 + $0x138] sm:$0xff]
    %v423 = vld [vmem:[#allocation4 + $0x140] sm:$0xff]
    %v424 = vld [vmem:[#allocation4 + $0x148] sm:$0xff]
    %v425 = vld [vmem:[#allocation4 + $0x150] sm:$0xff]
    %v426 = vld [vmem:[#allocation4 + $0x158] sm:$0xff]
    %v427 = vld [vmem:[#allocation4 + $0x160] sm:$0xff]
    %v428 = vld [vmem:[#allocation4 + $0x168] sm:$0xff]
    %v429 = vld [vmem:[#allocation4 + $0x170] sm:$0xff]
    %v430 = vld [vmem:[#allocation4 + $0x178] sm:$0xff]
    %v431 = vld [vmem:[#allocation10] sm:$0xff]
    %v432 = vld [vmem:[#allocation10 + $0x8] sm:$0xff]
    %v433 = vld [vmem:[#allocation10 + $0x10] sm:$0xff]
    %v434 = vld [vmem:[#allocation10 + $0x18] sm:$0xff]
    %v435 = vld [vmem:[#allocation10 + $0x20] sm:$0xff]
    %v436 = vld [vmem:[#allocation10 + $0x28] sm:$0xff]
    %v437 = vld [vmem:[#allocation10 + $0x30] sm:$0xff]
    %v438 = vld [vmem:[#allocation10 + $0x38] sm:$0xff]
    %v439 = vld [vmem:[#allocation10 + $0x40] sm:$0xff]
    %v440 = vld [vmem:[#allocation10 + $0x48] sm:$0xff]
    %v441 = vld [vmem:[#allocation10 + $0x50] sm:$0xff]
    %v442 = vld [vmem:[#allocation10 + $0x58] sm:$0xff]
    %v443 = vld [vmem:[#allocation10 + $0x60] sm:$0xff]
    %v444 = vld [vmem:[#allocation10 + $0x68] sm:$0xff]
    %v445 = vld [vmem:[#allocation10 + $0x70] sm:$0xff]
    %v446 = vld [vmem:[#allocation10 + $0x78] sm:$0xff]
    %v447 = vld [vmem:[#allocation10 + $0x80] sm:$0xff]
    %v448 = vld [vmem:[#allocation10 + $0x88] sm:$0xff]
    %v449 = vld [vmem:[#allocation10 + $0x90] sm:$0xff]
    %v450 = vld [vmem:[#allocation10 + $0x98] sm:$0xff]
    %v451 = vld [vmem:[#allocation10 + $0xa0] sm:$0xff]
    %v452 = vld [vmem:[#allocation10 + $0xa8] sm:$0xff]
    %v453 = vld [vmem:[#allocation10 + $0xb0] sm:$0xff]
    %v454 = vld [vmem:[#allocation10 + $0xb8] sm:$0xff]
    %v455 = vld [vmem:[#allocation10 + $0xc0] sm:$0xff]
    %v456 = vld [vmem:[#allocation10 + $0xc8] sm:$0xff]
    %v457 = vld [vmem:[#allocation10 + $0xd0] sm:$0xff]
    %v458 = vld [vmem:[#allocation10 + $0xd8] sm:$0xff]
    %v459 = vld [vmem:[#allocation10 + $0xe0] sm:$0xff]
    %v460 = vld [vmem:[#allocation10 + $0xe8] sm:$0xff]
    %v461 = vld [vmem:[#allocation10 + $0xf0] sm:$0xff]
    %v462 = vld [vmem:[#allocation10 + $0xf8] sm:$0xff]
    %v463 = vld [vmem:[#allocation10 + $0x100] sm:$0xff]
    %v464 = vld [vmem:[#allocation10 + $0x108] sm:$0xff]
    %v465 = vld [vmem:[#allocation10 + $0x110] sm:$0xff]
    %v466 = vld [vmem:[#allocation10 + $0x118] sm:$0xff]
    %v467 = vld [vmem:[#allocation10 + $0x120] sm:$0xff]
    %v468 = vld [vmem:[#allocation10 + $0x128] sm:$0xff]
    %v469 = vld [vmem:[#allocation10 + $0x130] sm:$0xff]
    %v470 = vld [vmem:[#allocation10 + $0x138] sm:$0xff]
    %v471 = vld [vmem:[#allocation10 + $0x140] sm:$0xff]
    %v472 = vld [vmem:[#allocation10 + $0x148] sm:$0xff]
    %v473 = vld [vmem:[#allocation10 + $0x150] sm:$0xff]
    %v474 = vld [vmem:[#allocation10 + $0x158] sm:$0xff]
    %v475 = vld [vmem:[#allocation10 + $0x160] sm:$0xff]
    %v476 = vld [vmem:[#allocation10 + $0x168] sm:$0xff]
    %v477 = vld [vmem:[#allocation10 + $0x170] sm:$0xff]
    %v478 = vld [vmem:[#allocation10 + $0x178] sm:$0xff]
    %v479 = vld [vmem:[#allocation6] sm:$0x7]
    %v480 = vld [vmem:[#allocation12] sm:$0x7]
    %v481 = vld [vmem:[#allocation7] sm:$0x1]
    %v482 = vld [vmem:[#allocation13] sm:$0x1]
    %v483 = vld [vmem:[%s0] sm:$0xff]
    %v484 = vld [vmem:[%s0 + $0x8] sm:$0xff]
    %v485 = vld [vmem:[%s0 + $0x10] sm:$0xff]
    %v486 = vld [vmem:[%s0 + $0x18] sm:$0xff]
    %v487 = vld [vmem:[%s0 + $0x20] sm:$0xff]
    %v488 = vld [vmem:[%s0 + $0x28] sm:$0xff]
    %v489 = vld [vmem:[%s0 + $0x30] sm:$0xff]
    %v490 = vld [vmem:[%s0 + $0x38] sm:$0xff]
    %v492 = vperm.slane %v479, 0
    %v493 = vperm.slane %v479, 1
    %v494 = vperm.slane %v479, 2
    %vm498 = vcmask 261120
    %v500 = vsel %vm498, %v483, 0
    %v503 = vsel %vm498, %v484, 0
    %v506 = vsel %vm498, %v485, 0
    %v509 = vsel %vm498, %v486, 0
    %v512 = vsel %vm498, %v487, 0
    %v515 = vsel %vm498, %v488, 0
    %v518 = vsel %vm498, %v489, 0
    %v521 = vsel %vm498, %v490, 0
    %523 = vmatpush.msra.mxu0 0.0
    %524 = vmatpush.msra.mxu0 0.0
    %525 = vmatpush.msra.mxu0 0.0
    %526 = vmatpush.msra.mxu0 0.0
    %527 = vmatpush.msra.mxu0 0.0
    %528 = vmatpush.msra.mxu0 0.0
    %529 = vmatpush.msra.mxu0 0.0
    %530 = vmatpush.msra.mxu0 0.0
    %531 = vmatpush.msra.mxu0 0.0
    %532 = vmatpush.msra.mxu0 0.0
    %533 = vmatpush.msra.mxu0 0.0
    %534 = vmatpush.msra.mxu0 0.0
    %535 = vmatpush.msra.mxu0 %v332
    %536 = vmatpush.msra.mxu0 %v329
    %537 = vmatpush.msra.mxu0 %v326
    %538 = vmatpush.msra.mxu0 %v323
    %539 = vmatmul.f32.gmra.mxu0 %v500
    %v540 = vpop.f32.mrf.mxu0
    %v541 = vadd.f32 %v492, %v540
    %542 = vmatmul.f32.gmra.mxu0 %v503
    %v543 = vpop.f32.mrf.mxu0
    %v544 = vadd.f32 %v492, %v543
    %545 = vmatmul.f32.gmra.mxu0 %v506
    %v546 = vpop.f32.mrf.mxu0
    %v547 = vadd.f32 %v492, %v546
    %548 = vmatmul.f32.gmra.mxu0 %v509
    %v549 = vpop.f32.mrf.mxu0
    %v550 = vadd.f32 %v492, %v549
    %551 = vmatmul.f32.gmra.mxu0 %v512
    %v552 = vpop.f32.mrf.mxu0
    %v553 = vadd.f32 %v492, %v552
    %554 = vmatmul.f32.gmra.mxu0 %v515
    %v555 = vpop.f32.mrf.mxu0
    %v556 = vadd.f32 %v492, %v555
    %557 = vmatmul.f32.gmra.mxu0 %v518
    %v558 = vpop.f32.mrf.mxu0
    %v559 = vadd.f32 %v492, %v558
    %560 = vmatmul.f32.gmra.mxu0 %v521
    %v561 = vpop.f32.mrf.mxu0
    %v562 = vadd.f32 %v492, %v561
    %563 = vdwg.mxu0
    %564 = vmatpush.msra.mxu0 0.0
    %565 = vmatpush.msra.mxu0 0.0
    %566 = vmatpush.msra.mxu0 0.0
    %567 = vmatpush.msra.mxu0 0.0
    %568 = vmatpush.msra.mxu0 0.0
    %569 = vmatpush.msra.mxu0 0.0
    %570 = vmatpush.msra.mxu0 0.0
    %571 = vmatpush.msra.mxu0 0.0
    %572 = vmatpush.msra.mxu0 0.0
    %573 = vmatpush.msra.mxu0 0.0
    %574 = vmatpush.msra.mxu0 0.0
    %575 = vmatpush.msra.mxu0 0.0
    %576 = vmatpush.msra.mxu0 %v333
    %577 = vmatpush.msra.mxu0 %v330
    %578 = vmatpush.msra.mxu0 %v327
    %579 = vmatpush.msra.mxu0 %v324
    %580 = vmatmul.f32.gmra.mxu0 %v500
    %v581 = vpop.f32.mrf.mxu0
    %v582 = vadd.f32 %v493, %v581
    %583 = vmatmul.f32.gmra.mxu0 %v503
    %v584 = vpop.f32.mrf.mxu0
    %v585 = vadd.f32 %v493, %v584
    %586 = vmatmul.f32.gmra.mxu0 %v506
    %v587 = vpop.f32.mrf.mxu0
    %v588 = vadd.f32 %v493, %v587
    %589 = vmatmul.f32.gmra.mxu0 %v509
    %v590 = vpop.f32.mrf.mxu0
    %v591 = vadd.f32 %v493, %v590
    %592 = vmatmul.f32.gmra.mxu0 %v512
    %v593 = vpop.f32.mrf.mxu0
    %v594 = vadd.f32 %v493, %v593
    %595 = vmatmul.f32.gmra.mxu0 %v515
    %v596 = vpop.f32.mrf.mxu0
    %v597 = vadd.f32 %v493, %v596
    %598 = vmatmul.f32.gmra.mxu0 %v518
    %v599 = vpop.f32.mrf.mxu0
    %v600 = vadd.f32 %v493, %v599
    %601 = vmatmul.f32.gmra.mxu0 %v521
    %v602 = vpop.f32.mrf.mxu0
    %v603 = vadd.f32 %v493, %v602
    %604 = vdwg.mxu0
    %605 = vmatpush.msra.mxu0 0.0
    %606 = vmatpush.msra.mxu0 0.0
    %607 = vmatpush.msra.mxu0 0.0
    %608 = vmatpush.msra.mxu0 0.0
    %609 = vmatpush.msra.mxu0 0.0
    %610 = vmatpush.msra.mxu0 0.0
    %611 = vmatpush.msra.mxu0 0.0
    %612 = vmatpush.msra.mxu0 0.0
    %613 = vmatpush.msra.mxu0 0.0
    %614 = vmatpush.msra.mxu0 0.0
    %615 = vmatpush.msra.mxu0 0.0
    %616 = vmatpush.msra.mxu0 0.0
    %617 = vmatpush.msra.mxu0 %v334
    %618 = vmatpush.msra.mxu0 %v331
    %619 = vmatpush.msra.mxu0 %v328
    %620 = vmatpush.msra.mxu0 %v325
    %621 = vmatmul.f32.gmra.mxu0 %v500
    %v622 = vpop.f32.mrf.mxu0
    %v623 = vadd.f32 %v494, %v622
    %624 = vmatmul.f32.gmra.mxu0 %v503
    %v625 = vpop.f32.mrf.mxu0
    %v626 = vadd.f32 %v494, %v625
    %627 = vmatmul.f32.gmra.mxu0 %v506
    %v628 = vpop.f32.mrf.mxu0
    %v629 = vadd.f32 %v494, %v628
    %630 = vmatmul.f32.gmra.mxu0 %v509
    %v631 = vpop.f32.mrf.mxu0
    %v632 = vadd.f32 %v494, %v631
    %633 = vmatmul.f32.gmra.mxu0 %v512
    %v634 = vpop.f32.mrf.mxu0
    %v635 = vadd.f32 %v494, %v634
    %636 = vmatmul.f32.gmra.mxu0 %v515
    %v637 = vpop.f32.mrf.mxu0
    %v638 = vadd.f32 %v494, %v637
    %639 = vmatmul.f32.gmra.mxu0 %v518
    %v640 = vpop.f32.mrf.mxu0
    %v641 = vadd.f32 %v494, %v640
    %642 = vmatmul.f32.gmra.mxu0 %v521
    %v643 = vpop.f32.mrf.mxu0
    %v644 = vadd.f32 %v494, %v643
    %645 = vdwg.mxu0
    %646 = vmatpush.msra.mxu0 %v428
    %647 = vmatpush.msra.mxu0 %v425
    %648 = vmatpush.msra.mxu0 %v422
    %649 = vmatpush.msra.mxu0 %v419
    %650 = vmatpush.msra.mxu0 %v416
    %651 = vmatpush.msra.mxu0 %v413
    %652 = vmatpush.msra.mxu0 %v410
    %653 = vmatpush.msra.mxu0 %v407
    %654 = vmatpush.msra.mxu0 %v404
    %655 = vmatpush.msra.mxu0 %v401
    %656 = vmatpush.msra.mxu0 %v398
    %657 = vmatpush.msra.mxu0 %v395
    %658 = vmatpush.msra.mxu0 %v392
    %659 = vmatpush.msra.mxu0 %v389
    %660 = vmatpush.msra.mxu0 %v386
    %661 = vmatpush.msra.mxu0 %v383
    %662 = vmatmul.f32.gmra.mxu0 0.0
    %v663 = vpop.f32.mrf.mxu0
    %v664 = vadd.f32 0.0, %v663
    %665 = vdwg.mxu0
    %666 = vmatpush.msra.mxu0 %v429
    %667 = vmatpush.msra.mxu0 %v426
    %668 = vmatpush.msra.mxu0 %v423
    %669 = vmatpush.msra.mxu0 %v420
    %670 = vmatpush.msra.mxu0 %v417
    %671 = vmatpush.msra.mxu0 %v414
    %672 = vmatpush.msra.mxu0 %v411
    %673 = vmatpush.msra.mxu0 %v408
    %674 = vmatpush.msra.mxu0 %v405
    %675 = vmatpush.msra.mxu0 %v402
    %676 = vmatpush.msra.mxu0 %v399
    %677 = vmatpush.msra.mxu0 %v396
    %678 = vmatpush.msra.mxu0 %v393
    %679 = vmatpush.msra.mxu0 %v390
    %680 = vmatpush.msra.mxu0 %v387
    %681 = vmatpush.msra.mxu0 %v384
    %682 = vmatmul.f32.gmra.mxu0 0.0
    %v683 = vpop.f32.mrf.mxu0
    %v684 = vadd.f32 0.0, %v683
    %685 = vdwg.mxu0
    %686 = vmatpush.msra.mxu0 %v430
    %687 = vmatpush.msra.mxu0 %v427
    %688 = vmatpush.msra.mxu0 %v424
    %689 = vmatpush.msra.mxu0 %v421
    %690 = vmatpush.msra.mxu0 %v418
    %691 = vmatpush.msra.mxu0 %v415
    %692 = vmatpush.msra.mxu0 %v412
    %693 = vmatpush.msra.mxu0 %v409
    %694 = vmatpush.msra.mxu0 %v406
    %695 = vmatpush.msra.mxu0 %v403
    %696 = vmatpush.msra.mxu0 %v400
    %697 = vmatpush.msra.mxu0 %v397
    %698 = vmatpush.msra.mxu0 %v394
    %699 = vmatpush.msra.mxu0 %v391
    %700 = vmatpush.msra.mxu0 %v388
    %701 = vmatpush.msra.mxu0 %v385
    %702 = vmatmul.f32.gmra.mxu0 0.0
    %v703 = vpop.f32.mrf.mxu0
    %v704 = vadd.f32 0.0, %v703
    %705 = vdwg.mxu0
    %v706 = vadd.f32 %v541, %v664
    %v707 = vxor.u32 %v706, 2147483648
    %v708 = vmul.f32 %v707, 1.442695
    %v709 = vpow.pop %v708
    %v710 = vadd.f32 %v709, 1.0
    %v711 = vrcp.pop %v710
    %v712 = vmul.f32 %v710, %v711
    %v713 = vsub.f32 1.0, %v712
    %v714 = vmul.f32 %v711, %v713
    %v715 = vadd.f32 %v711, %v714
    %vm716 = vweird.f32 %v710
    %vm717 = vweird.f32 %v711
    %vm718 = vmor %vm716, %vm717
    %v719 = vsel %vm718, %v711, %v715
    %v720 = vand.u32 2147483647, %v710
    %vm721 = vcmp.eq.f32.partialorder %v720, 8.507059e+37
    %v722 = vand.u32 %v710, 2147483648
    %v723 = vor.u32 1.1754944e-38, %v722
    %v724 = vsel %vm721, %v723, %v719
    %v725 = vmul.f32 1.0, %v724
    %v726 = vadd.f32 %v582, %v684
    %v727 = vxor.u32 %v726, 2147483648
    %v728 = vmul.f32 %v727, 1.442695
    %v729 = vpow.pop %v728
    %v730 = vadd.f32 %v729, 1.0
    %v731 = vrcp.pop %v730
    %v732 = vmul.f32 %v730, %v731
    %v733 = vsub.f32 1.0, %v732
    %v734 = vmul.f32 %v731, %v733
    %v735 = vadd.f32 %v731, %v734
    %vm736 = vweird.f32 %v730
    %vm737 = vweird.f32 %v731
    %vm738 = vmor %vm736, %vm737
    %v739 = vsel %vm738, %v731, %v735
    %v740 = vand.u32 2147483647, %v730
    %vm741 = vcmp.eq.f32.partialorder %v740, 8.507059e+37
    %v742 = vand.u32 %v730, 2147483648
    %v743 = vor.u32 1.1754944e-38, %v742
    %v744 = vsel %vm741, %v743, %v739
    %v745 = vmul.f32 1.0, %v744
    %v747 = vperm.slane %v481, 0
    %v749 = vadd.f32 %v704, %v747
    %v750 = vmul.f32 %v725, %v749
    %v751 = vadd.f32 %v623, %v750
    %v752 = vtanh.pop %v751
    %v753 = vsub.f32 1.0, %v745
    %v754 = vmul.f32 %v753, %v752
    %v755 = vmul.f32 %v745, 0.0
    %v756 = vadd.f32 %v754, %v755
    %v758 = vperm.slane %v480, 0
    %v759 = vperm.slane %v480, 1
    %v760 = vperm.slane %v480, 2
    %764 = vmatpush.msra.mxu0 %v380
    %765 = vmatpush.msra.mxu0 %v377
    %766 = vmatpush.msra.mxu0 %v374
    %767 = vmatpush.msra.mxu0 %v371
    %768 = vmatpush.msra.mxu0 %v368
    %769 = vmatpush.msra.mxu0 %v365
    %770 = vmatpush.msra.mxu0 %v362
    %771 = vmatpush.msra.mxu0 %v359
    %772 = vmatpush.msra.mxu0 %v356
    %773 = vmatpush.msra.mxu0 %v353
    %774 = vmatpush.msra.mxu0 %v350
    %775 = vmatpush.msra.mxu0 %v347
    %776 = vmatpush.msra.mxu0 %v344
    %777 = vmatpush.msra.mxu0 %v341
    %778 = vmatpush.msra.mxu0 %v338
    %779 = vmatpush.msra.mxu0 %v335
    %780 = vmatmul.f32.gmra.mxu0 %v756
    %v781 = vpop.f32.mrf.mxu0
    %v782 = vadd.f32 %v758, %v781
    %783 = vdwg.mxu0
    %784 = vmatpush.msra.mxu0 %v381
    %785 = vmatpush.msra.mxu0 %v378
    %786 = vmatpush.msra.mxu0 %v375
    %787 = vmatpush.msra.mxu0 %v372
    %788 = vmatpush.msra.mxu0 %v369
    %789 = vmatpush.msra.mxu0 %v366
    %790 = vmatpush.msra.mxu0 %v363
    %791 = vmatpush.msra.mxu0 %v360
    %792 = vmatpush.msra.mxu0 %v357
    %793 = vmatpush.msra.mxu0 %v354
    %794 = vmatpush.msra.mxu0 %v351
    %795 = vmatpush.msra.mxu0 %v348
    %796 = vmatpush.msra.mxu0 %v345
    %797 = vmatpush.msra.mxu0 %v342
    %798 = vmatpush.msra.mxu0 %v339
    %799 = vmatpush.msra.mxu0 %v336
    %800 = vmatmul.f32.gmra.mxu0 %v756
    %v801 = vpop.f32.mrf.mxu0
    %v802 = vadd.f32 %v759, %v801
    %803 = vdwg.mxu0
    %804 = vmatpush.msra.mxu0 %v382
    %805 = vmatpush.msra.mxu0 %v379
    %806 = vmatpush.msra.mxu0 %v376
    %807 = vmatpush.msra.mxu0 %v373
    %808 = vmatpush.msra.mxu0 %v370
    %809 = vmatpush.msra.mxu0 %v367
    %810 = vmatpush.msra.mxu0 %v364
    %811 = vmatpush.msra.mxu0 %v361
    %812 = vmatpush.msra.mxu0 %v358
    %813 = vmatpush.msra.mxu0 %v355
    %814 = vmatpush.msra.mxu0 %v352
    %815 = vmatpush.msra.mxu0 %v349
    %816 = vmatpush.msra.mxu0 %v346
    %817 = vmatpush.msra.mxu0 %v343
    %818 = vmatpush.msra.mxu0 %v340
    %819 = vmatpush.msra.mxu0 %v337
    %820 = vmatmul.f32.gmra.mxu0 %v756
    %v821 = vpop.f32.mrf.mxu0
    %v822 = vadd.f32 %v760, %v821
    %823 = vdwg.mxu0
    %824 = vmatpush.msra.mxu0 %v476
    %825 = vmatpush.msra.mxu0 %v473
    %826 = vmatpush.msra.mxu0 %v470
    %827 = vmatpush.msra.mxu0 %v467
    %828 = vmatpush.msra.mxu0 %v464
    %829 = vmatpush.msra.mxu0 %v461
    %830 = vmatpush.msra.mxu0 %v458
    %831 = vmatpush.msra.mxu0 %v455
    %832 = vmatpush.msra.mxu0 %v452
    %833 = vmatpush.msra.mxu0 %v449
    %834 = vmatpush.msra.mxu0 %v446
    %835 = vmatpush.msra.mxu0 %v443
    %836 = vmatpush.msra.mxu0 %v440
    %837 = vmatpush.msra.mxu0 %v437
    %838 = vmatpush.msra.mxu0 %v434
    %839 = vmatpush.msra.mxu0 %v431
    %840 = vmatmul.f32.gmra.mxu0 0.0
    %v841 = vpop.f32.mrf.mxu0
    %v842 = vadd.f32 0.0, %v841
    %843 = vdwg.mxu0
    %844 = vmatpush.msra.mxu0 %v477
    %845 = vmatpush.msra.mxu0 %v474
    %846 = vmatpush.msra.mxu0 %v471
    %847 = vmatpush.msra.mxu0 %v468
    %848 = vmatpush.msra.mxu0 %v465
    %849 = vmatpush.msra.mxu0 %v462
    %850 = vmatpush.msra.mxu0 %v459
    %851 = vmatpush.msra.mxu0 %v456
    %852 = vmatpush.msra.mxu0 %v453
    %853 = vmatpush.msra.mxu0 %v450
    %854 = vmatpush.msra.mxu0 %v447
    %855 = vmatpush.msra.mxu0 %v444
    %856 = vmatpush.msra.mxu0 %v441
    %857 = vmatpush.msra.mxu0 %v438
    %858 = vmatpush.msra.mxu0 %v435
    %859 = vmatpush.msra.mxu0 %v432
    %860 = vmatmul.f32.gmra.mxu0 0.0
    %v861 = vpop.f32.mrf.mxu0
    %v862 = vadd.f32 0.0, %v861
    %863 = vdwg.mxu0
    %864 = vmatpush.msra.mxu0 %v478
    %865 = vmatpush.msra.mxu0 %v475
    %866 = vmatpush.msra.mxu0 %v472
    %867 = vmatpush.msra.mxu0 %v469
    %868 = vmatpush.msra.mxu0 %v466
    %869 = vmatpush.msra.mxu0 %v463
    %870 = vmatpush.msra.mxu0 %v460
    %871 = vmatpush.msra.mxu0 %v457
    %872 = vmatpush.msra.mxu0 %v454
    %873 = vmatpush.msra.mxu0 %v451
    %874 = vmatpush.msra.mxu0 %v448
    %875 = vmatpush.msra.mxu0 %v445
    %876 = vmatpush.msra.mxu0 %v442
    %877 = vmatpush.msra.mxu0 %v439
    %878 = vmatpush.msra.mxu0 %v436
    %879 = vmatpush.msra.mxu0 %v433
    %880 = vmatmul.f32.gmra.mxu0 0.0
    %v881 = vpop.f32.mrf.mxu0
    %v882 = vadd.f32 0.0, %v881
    %883 = vdwg.mxu0
    %v884 = vadd.f32 %v782, %v842
    %v885 = vxor.u32 %v884, 2147483648
    %v886 = vmul.f32 %v885, 1.442695
    %v887 = vpow.pop %v886
    %v888 = vadd.f32 %v887, 1.0
    %v889 = vrcp.pop %v888
    %v890 = vmul.f32 %v888, %v889
    %v891 = vsub.f32 1.0, %v890
    %v892 = vmul.f32 %v889, %v891
    %v893 = vadd.f32 %v889, %v892
    %vm894 = vweird.f32 %v888
    %vm895 = vweird.f32 %v889
    %vm896 = vmor %vm894, %vm895
    %v897 = vsel %vm896, %v889, %v893
    %v898 = vand.u32 2147483647, %v888
    %vm899 = vcmp.eq.f32.partialorder %v898, 8.507059e+37
    %v900 = vand.u32 %v888, 2147483648
    %v901 = vor.u32 1.1754944e-38, %v900
    %v902 = vsel %vm899, %v901, %v897
    %v903 = vmul.f32 1.0, %v902
    %v904 = vadd.f32 %v802, %v862
    %v905 = vxor.u32 %v904, 2147483648
    %v906 = vmul.f32 %v905, 1.442695
    %v907 = vpow.pop %v906
    %v908 = vadd.f32 %v907, 1.0
    %v909 = vrcp.pop %v908
    %v910 = vmul.f32 %v908, %v909
    %v911 = vsub.f32 1.0, %v910
    %v912 = vmul.f32 %v909, %v911
    %v913 = vadd.f32 %v909, %v912
    %vm914 = vweird.f32 %v908
    %vm915 = vweird.f32 %v909
    %vm916 = vmor %vm914, %vm915
    %v917 = vsel %vm916, %v909, %v913
    %v918 = vand.u32 2147483647, %v908
    %vm919 = vcmp.eq.f32.partialorder %v918, 8.507059e+37
    %v920 = vand.u32 %v908, 2147483648
    %v921 = vor.u32 1.1754944e-38, %v920
    %v922 = vsel %vm919, %v921, %v917
    %v923 = vmul.f32 1.0, %v922
    %v925 = vperm.slane %v482, 0
    %v927 = vadd.f32 %v882, %v925
    %v928 = vmul.f32 %v903, %v927
    %v929 = vadd.f32 %v822, %v928
    %v930 = vtanh.pop %v929
    %v931 = vsub.f32 1.0, %v923
    %v932 = vmul.f32 %v931, %v930
    %v933 = vmul.f32 %v923, 0.0
    %v934 = vadd.f32 %v932, %v933
    %v935 = vadd.f32 %v934, 0.0
    %936 = vmatpush.msra.mxu0 %v428
    %937 = vmatpush.msra.mxu0 %v425
    %938 = vmatpush.msra.mxu0 %v422
    %939 = vmatpush.msra.mxu0 %v419
    %940 = vmatpush.msra.mxu0 %v416
    %941 = vmatpush.msra.mxu0 %v413
    %942 = vmatpush.msra.mxu0 %v410
    %943 = vmatpush.msra.mxu0 %v407
    %944 = vmatpush.msra.mxu0 %v404
    %945 = vmatpush.msra.mxu0 %v401
    %946 = vmatpush.msra.mxu0 %v398
    %947 = vmatpush.msra.mxu0 %v395
    %948 = vmatpush.msra.mxu0 %v392
    %949 = vmatpush.msra.mxu0 %v389
    %950 = vmatpush.msra.mxu0 %v386
    %951 = vmatpush.msra.mxu0 %v383
    %952 = vmatmul.f32.gmra.mxu0 %v756
    %v953 = vpop.f32.mrf.mxu0
    %v954 = vadd.f32 0.0, %v953
    %955 = vdwg.mxu0
    %956 = vmatpush.msra.mxu0 %v429
    %957 = vmatpush.msra.mxu0 %v426
    %958 = vmatpush.msra.mxu0 %v423
    %959 = vmatpush.msra.mxu0 %v420
    %960 = vmatpush.msra.mxu0 %v417
    %961 = vmatpush.msra.mxu0 %v414
    %962 = vmatpush.msra.mxu0 %v411
    %963 = vmatpush.msra.mxu0 %v408
    %964 = vmatpush.msra.mxu0 %v405
    %965 = vmatpush.msra.mxu0 %v402
    %966 = vmatpush.msra.mxu0 %v399
    %967 = vmatpush.msra.mxu0 %v396
    %968 = vmatpush.msra.mxu0 %v393
    %969 = vmatpush.msra.mxu0 %v390
    %970 = vmatpush.msra.mxu0 %v387
    %971 = vmatpush.msra.mxu0 %v384
    %972 = vmatmul.f32.gmra.mxu0 %v756
    %v973 = vpop.f32.mrf.mxu0
    %v974 = vadd.f32 0.0, %v973
    %975 = vdwg.mxu0
    %976 = vmatpush.msra.mxu0 %v430
    %977 = vmatpush.msra.mxu0 %v427
    %978 = vmatpush.msra.mxu0 %v424
    %979 = vmatpush.msra.mxu0 %v421
    %980 = vmatpush.msra.mxu0 %v418
    %981 = vmatpush.msra.mxu0 %v415
    %982 = vmatpush.msra.mxu0 %v412
    %983 = vmatpush.msra.mxu0 %v409
    %984 = vmatpush.msra.mxu0 %v406
    %985 = vmatpush.msra.mxu0 %v403
    %986 = vmatpush.msra.mxu0 %v400
    %987 = vmatpush.msra.mxu0 %v397
    %988 = vmatpush.msra.mxu0 %v394
    %989 = vmatpush.msra.mxu0 %v391
    %990 = vmatpush.msra.mxu0 %v388
    %991 = vmatpush.msra.mxu0 %v385
    %992 = vmatmul.f32.gmra.mxu0 %v756
    %v993 = vpop.f32.mrf.mxu0
    %v994 = vadd.f32 0.0, %v993
    %995 = vdwg.mxu0
    %v996 = vadd.f32 %v544, %v954
    %v997 = vxor.u32 %v996, 2147483648
    %v998 = vmul.f32 %v997, 1.442695
    %v999 = vpow.pop %v998
    %v1000 = vadd.f32 %v999, 1.0
    %v1001 = vrcp.pop %v1000
    %v1002 = vmul.f32 %v1000, %v1001
    %v1003 = vsub.f32 1.0, %v1002
    %v1004 = vmul.f32 %v1001, %v1003
    %v1005 = vadd.f32 %v1001, %v1004
    %vm1006 = vweird.f32 %v1000
    %vm1007 = vweird.f32 %v1001
    %vm1008 = vmor %vm1006, %vm1007
    %v1009 = vsel %vm1008, %v1001, %v1005
    %v1010 = vand.u32 2147483647, %v1000
    %vm1011 = vcmp.eq.f32.partialorder %v1010, 8.507059e+37
    %v1012 = vand.u32 %v1000, 2147483648
    %v1013 = vor.u32 1.1754944e-38, %v1012
    %v1014 = vsel %vm1011, %v1013, %v1009
    %v1015 = vmul.f32 1.0, %v1014
    %v1016 = vadd.f32 %v585, %v974
    %v1017 = vxor.u32 %v1016, 2147483648
    %v1018 = vmul.f32 %v1017, 1.442695
    %v1019 = vpow.pop %v1018
    %v1020 = vadd.f32 %v1019, 1.0
    %v1021 = vrcp.pop %v1020
    %v1022 = vmul.f32 %v1020, %v1021
    %v1023 = vsub.f32 1.0, %v1022
    %v1024 = vmul.f32 %v1021, %v1023
    %v1025 = vadd.f32 %v1021, %v1024
    %vm1026 = vweird.f32 %v1020
    %vm1027 = vweird.f32 %v1021
    %vm1028 = vmor %vm1026, %vm1027
    %v1029 = vsel %vm1028, %v1021, %v1025
    %v1030 = vand.u32 2147483647, %v1020
    %vm1031 = vcmp.eq.f32.partialorder %v1030, 8.507059e+37
    %v1032 = vand.u32 %v1020, 2147483648
    %v1033 = vor.u32 1.1754944e-38, %v1032
    %v1034 = vsel %vm1031, %v1033, %v1029
    %v1035 = vmul.f32 1.0, %v1034
    %v1036 = vadd.f32 %v994, %v747
    %v1037 = vmul.f32 %v1015, %v1036
    %v1038 = vadd.f32 %v626, %v1037
    %v1039 = vtanh.pop %v1038
    %v1040 = vsub.f32 1.0, %v1035
    %v1041 = vmul.f32 %v1040, %v1039
    %v1042 = vmul.f32 %v1035, %v756
    %v1043 = vadd.f32 %v1041, %v1042
    %1044 = vmatpush.msra.mxu0 %v380
    %1045 = vmatpush.msra.mxu0 %v377
    %1046 = vmatpush.msra.mxu0 %v374
    %1047 = vmatpush.msra.mxu0 %v371
    %1048 = vmatpush.msra.mxu0 %v368
    %1049 = vmatpush.msra.mxu0 %v365
    %1050 = vmatpush.msra.mxu0 %v362
    %1051 = vmatpush.msra.mxu0 %v359
    %1052 = vmatpush.msra.mxu0 %v356
    %1053 = vmatpush.msra.mxu0 %v353
    %1054 = vmatpush.msra.mxu0 %v350
    %1055 = vmatpush.msra.mxu0 %v347
    %1056 = vmatpush.msra.mxu0 %v344
    %1057 = vmatpush.msra.mxu0 %v341
    %1058 = vmatpush.msra.mxu0 %v338
    %1059 = vmatpush.msra.mxu0 %v335
    %1060 = vmatmul.f32.gmra.mxu0 %v1043
    %v1061 = vpop.f32.mrf.mxu0
    %v1062 = vadd.f32 %v758, %v1061
    %1063 = vdwg.mxu0
    %1064 = vmatpush.msra.mxu0 %v381
    %1065 = vmatpush.msra.mxu0 %v378
    %1066 = vmatpush.msra.mxu0 %v375
    %1067 = vmatpush.msra.mxu0 %v372
    %1068 = vmatpush.msra.mxu0 %v369
    %1069 = vmatpush.msra.mxu0 %v366
    %1070 = vmatpush.msra.mxu0 %v363
    %1071 = vmatpush.msra.mxu0 %v360
    %1072 = vmatpush.msra.mxu0 %v357
    %1073 = vmatpush.msra.mxu0 %v354
    %1074 = vmatpush.msra.mxu0 %v351
    %1075 = vmatpush.msra.mxu0 %v348
    %1076 = vmatpush.msra.mxu0 %v345
    %1077 = vmatpush.msra.mxu0 %v342
    %1078 = vmatpush.msra.mxu0 %v339
    %1079 = vmatpush.msra.mxu0 %v336
    %1080 = vmatmul.f32.gmra.mxu0 %v1043
    %v1081 = vpop.f32.mrf.mxu0
    %v1082 = vadd.f32 %v759, %v1081
    %1083 = vdwg.mxu0
    %1084 = vmatpush.msra.mxu0 %v382
    %1085 = vmatpush.msra.mxu0 %v379
    %1086 = vmatpush.msra.mxu0 %v376
    %1087 = vmatpush.msra.mxu0 %v373
    %1088 = vmatpush.msra.mxu0 %v370
    %1089 = vmatpush.msra.mxu0 %v367
    %1090 = vmatpush.msra.mxu0 %v364
    %1091 = vmatpush.msra.mxu0 %v361
    %1092 = vmatpush.msra.mxu0 %v358
    %1093 = vmatpush.msra.mxu0 %v355
    %1094 = vmatpush.msra.mxu0 %v352
    %1095 = vmatpush.msra.mxu0 %v349
    %1096 = vmatpush.msra.mxu0 %v346
    %1097 = vmatpush.msra.mxu0 %v343
    %1098 = vmatpush.msra.mxu0 %v340
    %1099 = vmatpush.msra.mxu0 %v337
    %1100 = vmatmul.f32.gmra.mxu0 %v1043
    %v1101 = vpop.f32.mrf.mxu0
    %v1102 = vadd.f32 %v760, %v1101
    %1103 = vdwg.mxu0
    %1104 = vmatpush.msra.mxu0 %v476
    %1105 = vmatpush.msra.mxu0 %v473
    %1106 = vmatpush.msra.mxu0 %v470
    %1107 = vmatpush.msra.mxu0 %v467
    %1108 = vmatpush.msra.mxu0 %v464
    %1109 = vmatpush.msra.mxu0 %v461
    %1110 = vmatpush.msra.mxu0 %v458
    %1111 = vmatpush.msra.mxu0 %v455
    %1112 = vmatpush.msra.mxu0 %v452
    %1113 = vmatpush.msra.mxu0 %v449
    %1114 = vmatpush.msra.mxu0 %v446
    %1115 = vmatpush.msra.mxu0 %v443
    %1116 = vmatpush.msra.mxu0 %v440
    %1117 = vmatpush.msra.mxu0 %v437
    %1118 = vmatpush.msra.mxu0 %v434
    %1119 = vmatpush.msra.mxu0 %v431
    %1120 = vmatmul.f32.gmra.mxu0 %v934
    %v1121 = vpop.f32.mrf.mxu0
    %v1122 = vadd.f32 0.0, %v1121
    %1123 = vdwg.mxu0
    %1124 = vmatpush.msra.mxu0 %v477
    %1125 = vmatpush.msra.mxu0 %v474
    %1126 = vmatpush.msra.mxu0 %v471
    %1127 = vmatpush.msra.mxu0 %v468
    %1128 = vmatpush.msra.mxu0 %v465
    %1129 = vmatpush.msra.mxu0 %v462
    %1130 = vmatpush.msra.mxu0 %v459
    %1131 = vmatpush.msra.mxu0 %v456
    %1132 = vmatpush.msra.mxu0 %v453
    %1133 = vmatpush.msra.mxu0 %v450
    %1134 = vmatpush.msra.mxu0 %v447
    %1135 = vmatpush.msra.mxu0 %v444
    %1136 = vmatpush.msra.mxu0 %v441
    %1137 = vmatpush.msra.mxu0 %v438
    %1138 = vmatpush.msra.mxu0 %v435
    %1139 = vmatpush.msra.mxu0 %v432
    %1140 = vmatmul.f32.gmra.mxu0 %v934
    %v1141 = vpop.f32.mrf.mxu0
    %v1142 = vadd.f32 0.0, %v1141
    %1143 = vdwg.mxu0
    %1144 = vmatpush.msra.mxu0 %v478
    %1145 = vmatpush.msra.mxu0 %v475
    %1146 = vmatpush.msra.mxu0 %v472
    %1147 = vmatpush.msra.mxu0 %v469
    %1148 = vmatpush.msra.mxu0 %v466
    %1149 = vmatpush.msra.mxu0 %v463
    %1150 = vmatpush.msra.mxu0 %v460
    %1151 = vmatpush.msra.mxu0 %v457
    %1152 = vmatpush.msra.mxu0 %v454
    %1153 = vmatpush.msra.mxu0 %v451
    %1154 = vmatpush.msra.mxu0 %v448
    %1155 = vmatpush.msra.mxu0 %v445
    %1156 = vmatpush.msra.mxu0 %v442
    %1157 = vmatpush.msra.mxu0 %v439
    %1158 = vmatpush.msra.mxu0 %v436
    %1159 = vmatpush.msra.mxu0 %v433
    %1160 = vmatmul.f32.gmra.mxu0 %v934
    %v1161 = vpop.f32.mrf.mxu0
    %v1162 = vadd.f32 0.0, %v1161
    %1163 = vdwg.mxu0
    %v1164 = vadd.f32 %v1062, %v1122
    %v1165 = vxor.u32 %v1164, 2147483648
    %v1166 = vmul.f32 %v1165, 1.442695
    %v1167 = vpow.pop %v1166
    %v1168 = vadd.f32 %v1167, 1.0
    %v1169 = vrcp.pop %v1168
    %v1170 = vmul.f32 %v1168, %v1169
    %v1171 = vsub.f32 1.0, %v1170
    %v1172 = vmul.f32 %v1169, %v1171
    %v1173 = vadd.f32 %v1169, %v1172
    %vm1174 = vweird.f32 %v1168
    %vm1175 = vweird.f32 %v1169
    %vm1176 = vmor %vm1174, %vm1175
    %v1177 = vsel %vm1176, %v1169, %v1173
    %v1178 = vand.u32 2147483647, %v1168
    %vm1179 = vcmp.eq.f32.partialorder %v1178, 8.507059e+37
    %v1180 = vand.u32 %v1168, 2147483648
    %v1181 = vor.u32 1.1754944e-38, %v1180
    %v1182 = vsel %vm1179, %v1181, %v1177
    %v1183 = vmul.f32 1.0, %v1182
    %v1184 = vadd.f32 %v1082, %v1142
    %v1185 = vxor.u32 %v1184, 2147483648
    %v1186 = vmul.f32 %v1185, 1.442695
    %v1187 = vpow.pop %v1186
    %v1188 = vadd.f32 %v1187, 1.0
    %v1189 = vrcp.pop %v1188
    %v1190 = vmul.f32 %v1188, %v1189
    %v1191 = vsub.f32 1.0, %v1190
    %v1192 = vmul.f32 %v1189, %v1191
    %v1193 = vadd.f32 %v1189, %v1192
    %vm1194 = vweird.f32 %v1188
    %vm1195 = vweird.f32 %v1189
    %vm1196 = vmor %vm1194, %vm1195
    %v1197 = vsel %vm1196, %v1189, %v1193
    %v1198 = vand.u32 2147483647, %v1188
    %vm1199 = vcmp.eq.f32.partialorder %v1198, 8.507059e+37
    %v1200 = vand.u32 %v1188, 2147483648
    %v1201 = vor.u32 1.1754944e-38, %v1200
    %v1202 = vsel %vm1199, %v1201, %v1197
    %v1203 = vmul.f32 1.0, %v1202
    %v1204 = vadd.f32 %v1162, %v925
    %v1205 = vmul.f32 %v1183, %v1204
    %v1206 = vadd.f32 %v1102, %v1205
    %v1207 = vtanh.pop %v1206
    %v1208 = vsub.f32 1.0, %v1203
    %v1209 = vmul.f32 %v1208, %v1207
    %v1210 = vmul.f32 %v1203, %v934
    %v1211 = vadd.f32 %v1209, %v1210
    %v1212 = vadd.f32 %v935, %v1211
    %1213 = vmatpush.msra.mxu0 %v428
    %1214 = vmatpush.msra.mxu0 %v425
    %1215 = vmatpush.msra.mxu0 %v422
    %1216 = vmatpush.msra.mxu0 %v419
    %1217 = vmatpush.msra.mxu0 %v416
    %1218 = vmatpush.msra.mxu0 %v413
    %1219 = vmatpush.msra.mxu0 %v410
    %1220 = vmatpush.msra.mxu0 %v407
    %1221 = vmatpush.msra.mxu0 %v404
    %1222 = vmatpush.msra.mxu0 %v401
    %1223 = vmatpush.msra.mxu0 %v398
    %1224 = vmatpush.msra.mxu0 %v395
    %1225 = vmatpush.msra.mxu0 %v392
    %1226 = vmatpush.msra.mxu0 %v389
    %1227 = vmatpush.msra.mxu0 %v386
    %1228 = vmatpush.msra.mxu0 %v383
    %1229 = vmatmul.f32.gmra.mxu0 %v1043
    %v1230 = vpop.f32.mrf.mxu0
    %v1231 = vadd.f32 0.0, %v1230
    %1232 = vdwg.mxu0
    %1233 = vmatpush.msra.mxu0 %v429
    %1234 = vmatpush.msra.mxu0 %v426
    %1235 = vmatpush.msra.mxu0 %v423
    %1236 = vmatpush.msra.mxu0 %v420
    %1237 = vmatpush.msra.mxu0 %v417
    %1238 = vmatpush.msra.mxu0 %v414
    %1239 = vmatpush.msra.mxu0 %v411
    %1240 = vmatpush.msra.mxu0 %v408
    %1241 = vmatpush.msra.mxu0 %v405
    %1242 = vmatpush.msra.mxu0 %v402
    %1243 = vmatpush.msra.mxu0 %v399
    %1244 = vmatpush.msra.mxu0 %v396
    %1245 = vmatpush.msra.mxu0 %v393
    %1246 = vmatpush.msra.mxu0 %v390
    %1247 = vmatpush.msra.mxu0 %v387
    %1248 = vmatpush.msra.mxu0 %v384
    %1249 = vmatmul.f32.gmra.mxu0 %v1043
    %v1250 = vpop.f32.mrf.mxu0
    %v1251 = vadd.f32 0.0, %v1250
    %1252 = vdwg.mxu0
    %1253 = vmatpush.msra.mxu0 %v430
    %1254 = vmatpush.msra.mxu0 %v427
    %1255 = vmatpush.msra.mxu0 %v424
    %1256 = vmatpush.msra.mxu0 %v421
    %1257 = vmatpush.msra.mxu0 %v418
    %1258 = vmatpush.msra.mxu0 %v415
    %1259 = vmatpush.msra.mxu0 %v412
    %1260 = vmatpush.msra.mxu0 %v409
    %1261 = vmatpush.msra.mxu0 %v406
    %1262 = vmatpush.msra.mxu0 %v403
    %1263 = vmatpush.msra.mxu0 %v400
    %1264 = vmatpush.msra.mxu0 %v397
    %1265 = vmatpush.msra.mxu0 %v394
    %1266 = vmatpush.msra.mxu0 %v391
    %1267 = vmatpush.msra.mxu0 %v388
    %1268 = vmatpush.msra.mxu0 %v385
    %1269 = vmatmul.f32.gmra.mxu0 %v1043
    %v1270 = vpop.f32.mrf.mxu0
    %v1271 = vadd.f32 0.0, %v1270
    %1272 = vdwg.mxu0
    %v1273 = vadd.f32 %v547, %v1231
    %v1274 = vxor.u32 %v1273, 2147483648
    %v1275 = vmul.f32 %v1274, 1.442695
    %v1276 = vpow.pop %v1275
    %v1277 = vadd.f32 %v1276, 1.0
    %v1278 = vrcp.pop %v1277
    %v1279 = vmul.f32 %v1277, %v1278
    %v1280 = vsub.f32 1.0, %v1279
    %v1281 = vmul.f32 %v1278, %v1280
    %v1282 = vadd.f32 %v1278, %v1281
    %vm1283 = vweird.f32 %v1277
    %vm1284 = vweird.f32 %v1278
    %vm1285 = vmor %vm1283, %vm1284
    %v1286 = vsel %vm1285, %v1278, %v1282
    %v1287 = vand.u32 2147483647, %v1277
    %vm1288 = vcmp.eq.f32.partialorder %v1287, 8.507059e+37
    %v1289 = vand.u32 %v1277, 2147483648
    %v1290 = vor.u32 1.1754944e-38, %v1289
    %v1291 = vsel %vm1288, %v1290, %v1286
    %v1292 = vmul.f32 1.0, %v1291
    %v1293 = vadd.f32 %v588, %v1251
    %v1294 = vxor.u32 %v1293, 2147483648
    %v1295 = vmul.f32 %v1294, 1.442695
    %v1296 = vpow.pop %v1295
    %v1297 = vadd.f32 %v1296, 1.0
    %v1298 = vrcp.pop %v1297
    %v1299 = vmul.f32 %v1297, %v1298
    %v1300 = vsub.f32 1.0, %v1299
    %v1301 = vmul.f32 %v1298, %v1300
    %v1302 = vadd.f32 %v1298, %v1301
    %vm1303 = vweird.f32 %v1297
    %vm1304 = vweird.f32 %v1298
    %vm1305 = vmor %vm1303, %vm1304
    %v1306 = vsel %vm1305, %v1298, %v1302
    %v1307 = vand.u32 2147483647, %v1297
    %vm1308 = vcmp.eq.f32.partialorder %v1307, 8.507059e+37
    %v1309 = vand.u32 %v1297, 2147483648
    %v1310 = vor.u32 1.1754944e-38, %v1309
    %v1311 = vsel %vm1308, %v1310, %v1306
    %v1312 = vmul.f32 1.0, %v1311
    %v1313 = vadd.f32 %v1271, %v747
    %v1314 = vmul.f32 %v1292, %v1313
    %v1315 = vadd.f32 %v629, %v1314
    %v1316 = vtanh.pop %v1315
    %v1317 = vsub.f32 1.0, %v1312
    %v1318 = vmul.f32 %v1317, %v1316
    %v1319 = vmul.f32 %v1312, %v1043
    %v1320 = vadd.f32 %v1318, %v1319
    %1321 = vmatpush.msra.mxu0 %v380
    %1322 = vmatpush.msra.mxu0 %v377
    %1323 = vmatpush.msra.mxu0 %v374
    %1324 = vmatpush.msra.mxu0 %v371
    %1325 = vmatpush.msra.mxu0 %v368
    %1326 = vmatpush.msra.mxu0 %v365
    %1327 = vmatpush.msra.mxu0 %v362
    %1328 = vmatpush.msra.mxu0 %v359
    %1329 = vmatpush.msra.mxu0 %v356
    %1330 = vmatpush.msra.mxu0 %v353
    %1331 = vmatpush.msra.mxu0 %v350
    %1332 = vmatpush.msra.mxu0 %v347
    %1333 = vmatpush.msra.mxu0 %v344
    %1334 = vmatpush.msra.mxu0 %v341
    %1335 = vmatpush.msra.mxu0 %v338
    %1336 = vmatpush.msra.mxu0 %v335
    %1337 = vmatmul.f32.gmra.mxu0 %v1320
    %v1338 = vpop.f32.mrf.mxu0
    %v1339 = vadd.f32 %v758, %v1338
    %1340 = vdwg.mxu0
    %1341 = vmatpush.msra.mxu0 %v381
    %1342 = vmatpush.msra.mxu0 %v378
    %1343 = vmatpush.msra.mxu0 %v375
    %1344 = vmatpush.msra.mxu0 %v372
    %1345 = vmatpush.msra.mxu0 %v369
    %1346 = vmatpush.msra.mxu0 %v366
    %1347 = vmatpush.msra.mxu0 %v363
    %1348 = vmatpush.msra.mxu0 %v360
    %1349 = vmatpush.msra.mxu0 %v357
    %1350 = vmatpush.msra.mxu0 %v354
    %1351 = vmatpush.msra.mxu0 %v351
    %1352 = vmatpush.msra.mxu0 %v348
    %1353 = vmatpush.msra.mxu0 %v345
    %1354 = vmatpush.msra.mxu0 %v342
    %1355 = vmatpush.msra.mxu0 %v339
    %1356 = vmatpush.msra.mxu0 %v336
    %1357 = vmatmul.f32.gmra.mxu0 %v1320
    %v1358 = vpop.f32.mrf.mxu0
    %v1359 = vadd.f32 %v759, %v1358
    %1360 = vdwg.mxu0
    %1361 = vmatpush.msra.mxu0 %v382
    %1362 = vmatpush.msra.mxu0 %v379
    %1363 = vmatpush.msra.mxu0 %v376
    %1364 = vmatpush.msra.mxu0 %v373
    %1365 = vmatpush.msra.mxu0 %v370
    %1366 = vmatpush.msra.mxu0 %v367
    %1367 = vmatpush.msra.mxu0 %v364
    %1368 = vmatpush.msra.mxu0 %v361
    %1369 = vmatpush.msra.mxu0 %v358
    %1370 = vmatpush.msra.mxu0 %v355
    %1371 = vmatpush.msra.mxu0 %v352
    %1372 = vmatpush.msra.mxu0 %v349
    %1373 = vmatpush.msra.mxu0 %v346
    %1374 = vmatpush.msra.mxu0 %v343
    %1375 = vmatpush.msra.mxu0 %v340
    %1376 = vmatpush.msra.mxu0 %v337
    %1377 = vmatmul.f32.gmra.mxu0 %v1320
    %v1378 = vpop.f32.mrf.mxu0
    %v1379 = vadd.f32 %v760, %v1378
    %1380 = vdwg.mxu0
    %1381 = vmatpush.msra.mxu0 %v476
    %1382 = vmatpush.msra.mxu0 %v473
    %1383 = vmatpush.msra.mxu0 %v470
    %1384 = vmatpush.msra.mxu0 %v467
    %1385 = vmatpush.msra.mxu0 %v464
    %1386 = vmatpush.msra.mxu0 %v461
    %1387 = vmatpush.msra.mxu0 %v458
    %1388 = vmatpush.msra.mxu0 %v455
    %1389 = vmatpush.msra.mxu0 %v452
    %1390 = vmatpush.msra.mxu0 %v449
    %1391 = vmatpush.msra.mxu0 %v446
    %1392 = vmatpush.msra.mxu0 %v443
    %1393 = vmatpush.msra.mxu0 %v440
    %1394 = vmatpush.msra.mxu0 %v437
    %1395 = vmatpush.msra.mxu0 %v434
    %1396 = vmatpush.msra.mxu0 %v431
    %1397 = vmatmul.f32.gmra.mxu0 %v1211
    %v1398 = vpop.f32.mrf.mxu0
    %v1399 = vadd.f32 0.0, %v1398
    %1400 = vdwg.mxu0
    %1401 = vmatpush.msra.mxu0 %v477
    %1402 = vmatpush.msra.mxu0 %v474
    %1403 = vmatpush.msra.mxu0 %v471
    %1404 = vmatpush.msra.mxu0 %v468
    %1405 = vmatpush.msra.mxu0 %v465
    %1406 = vmatpush.msra.mxu0 %v462
    %1407 = vmatpush.msra.mxu0 %v459
    %1408 = vmatpush.msra.mxu0 %v456
    %1409 = vmatpush.msra.mxu0 %v453
    %1410 = vmatpush.msra.mxu0 %v450
    %1411 = vmatpush.msra.mxu0 %v447
    %1412 = vmatpush.msra.mxu0 %v444
    %1413 = vmatpush.msra.mxu0 %v441
    %1414 = vmatpush.msra.mxu0 %v438
    %1415 = vmatpush.msra.mxu0 %v435
    %1416 = vmatpush.msra.mxu0 %v432
    %1417 = vmatmul.f32.gmra.mxu0 %v1211
    %v1418 = vpop.f32.mrf.mxu0
    %v1419 = vadd.f32 0.0, %v1418
    %1420 = vdwg.mxu0
    %1421 = vmatpush.msra.mxu0 %v478
    %1422 = vmatpush.msra.mxu0 %v475
    %1423 = vmatpush.msra.mxu0 %v472
    %1424 = vmatpush.msra.mxu0 %v469
    %1425 = vmatpush.msra.mxu0 %v466
    %1426 = vmatpush.msra.mxu0 %v463
    %1427 = vmatpush.msra.mxu0 %v460
    %1428 = vmatpush.msra.mxu0 %v457
    %1429 = vmatpush.msra.mxu0 %v454
    %1430 = vmatpush.msra.mxu0 %v451
    %1431 = vmatpush.msra.mxu0 %v448
    %1432 = vmatpush.msra.mxu0 %v445
    %1433 = vmatpush.msra.mxu0 %v442
    %1434 = vmatpush.msra.mxu0 %v439
    %1435 = vmatpush.msra.mxu0 %v436
    %1436 = vmatpush.msra.mxu0 %v433
    %1437 = vmatmul.f32.gmra.mxu0 %v1211
    %v1438 = vpop.f32.mrf.mxu0
    %v1439 = vadd.f32 0.0, %v1438
    %1440 = vdwg.mxu0
    %v1441 = vadd.f32 %v1339, %v1399
    %v1442 = vxor.u32 %v1441, 2147483648
    %v1443 = vmul.f32 %v1442, 1.442695
    %v1444 = vpow.pop %v1443
    %v1445 = vadd.f32 %v1444, 1.0
    %v1446 = vrcp.pop %v1445
    %v1447 = vmul.f32 %v1445, %v1446
    %v1448 = vsub.f32 1.0, %v1447
    %v1449 = vmul.f32 %v1446, %v1448
    %v1450 = vadd.f32 %v1446, %v1449
    %vm1451 = vweird.f32 %v1445
    %vm1452 = vweird.f32 %v1446
    %vm1453 = vmor %vm1451, %vm1452
    %v1454 = vsel %vm1453, %v1446, %v1450
    %v1455 = vand.u32 2147483647, %v1445
    %vm1456 = vcmp.eq.f32.partialorder %v1455, 8.507059e+37
    %v1457 = vand.u32 %v1445, 2147483648
    %v1458 = vor.u32 1.1754944e-38, %v1457
    %v1459 = vsel %vm1456, %v1458, %v1454
    %v1460 = vmul.f32 1.0, %v1459
    %v1461 = vadd.f32 %v1359, %v1419
    %v1462 = vxor.u32 %v1461, 2147483648
    %v1463 = vmul.f32 %v1462, 1.442695
    %v1464 = vpow.pop %v1463
    %v1465 = vadd.f32 %v1464, 1.0
    %v1466 = vrcp.pop %v1465
    %v1467 = vmul.f32 %v1465, %v1466
    %v1468 = vsub.f32 1.0, %v1467
    %v1469 = vmul.f32 %v1466, %v1468
    %v1470 = vadd.f32 %v1466, %v1469
    %vm1471 = vweird.f32 %v1465
    %vm1472 = vweird.f32 %v1466
    %vm1473 = vmor %vm1471, %vm1472
    %v1474 = vsel %vm1473, %v1466, %v1470
    %v1475 = vand.u32 2147483647, %v1465
    %vm1476 = vcmp.eq.f32.partialorder %v1475, 8.507059e+37
    %v1477 = vand.u32 %v1465, 2147483648
    %v1478 = vor.u32 1.1754944e-38, %v1477
    %v1479 = vsel %vm1476, %v1478, %v1474
    %v1480 = vmul.f32 1.0, %v1479
    %v1481 = vadd.f32 %v1439, %v925
    %v1482 = vmul.f32 %v1460, %v1481
    %v1483 = vadd.f32 %v1379, %v1482
    %v1484 = vtanh.pop %v1483
    %v1485 = vsub.f32 1.0, %v1480
    %v1486 = vmul.f32 %v1485, %v1484
    %v1487 = vmul.f32 %v1480, %v1211
    %v1488 = vadd.f32 %v1486, %v1487
    %v1489 = vadd.f32 %v1212, %v1488
    %1490 = vmatpush.msra.mxu0 %v428
    %1491 = vmatpush.msra.mxu0 %v425
    %1492 = vmatpush.msra.mxu0 %v422
    %1493 = vmatpush.msra.mxu0 %v419
    %1494 = vmatpush.msra.mxu0 %v416
    %1495 = vmatpush.msra.mxu0 %v413
    %1496 = vmatpush.msra.mxu0 %v410
    %1497 = vmatpush.msra.mxu0 %v407
    %1498 = vmatpush.msra.mxu0 %v404
    %1499 = vmatpush.msra.mxu0 %v401
    %1500 = vmatpush.msra.mxu0 %v398
    %1501 = vmatpush.msra.mxu0 %v395
    %1502 = vmatpush.msra.mxu0 %v392
    %1503 = vmatpush.msra.mxu0 %v389
    %1504 = vmatpush.msra.mxu0 %v386
    %1505 = vmatpush.msra.mxu0 %v383
    %1506 = vmatmul.f32.gmra.mxu0 %v1320
    %v1507 = vpop.f32.mrf.mxu0
    %v1508 = vadd.f32 0.0, %v1507
    %1509 = vdwg.mxu0
    %1510 = vmatpush.msra.mxu0 %v429
    %1511 = vmatpush.msra.mxu0 %v426
    %1512 = vmatpush.msra.mxu0 %v423
    %1513 = vmatpush.msra.mxu0 %v420
    %1514 = vmatpush.msra.mxu0 %v417
    %1515 = vmatpush.msra.mxu0 %v414
    %1516 = vmatpush.msra.mxu0 %v411
    %1517 = vmatpush.msra.mxu0 %v408
    %1518 = vmatpush.msra.mxu0 %v405
    %1519 = vmatpush.msra.mxu0 %v402
    %1520 = vmatpush.msra.mxu0 %v399
    %1521 = vmatpush.msra.mxu0 %v396
    %1522 = vmatpush.msra.mxu0 %v393
    %1523 = vmatpush.msra.mxu0 %v390
    %1524 = vmatpush.msra.mxu0 %v387
    %1525 = vmatpush.msra.mxu0 %v384
    %1526 = vmatmul.f32.gmra.mxu0 %v1320
    %v1527 = vpop.f32.mrf.mxu0
    %v1528 = vadd.f32 0.0, %v1527
    %1529 = vdwg.mxu0
    %1530 = vmatpush.msra.mxu0 %v430
    %1531 = vmatpush.msra.mxu0 %v427
    %1532 = vmatpush.msra.mxu0 %v424
    %1533 = vmatpush.msra.mxu0 %v421
    %1534 = vmatpush.msra.mxu0 %v418
    %1535 = vmatpush.msra.mxu0 %v415
    %1536 = vmatpush.msra.mxu0 %v412
    %1537 = vmatpush.msra.mxu0 %v409
    %1538 = vmatpush.msra.mxu0 %v406
    %1539 = vmatpush.msra.mxu0 %v403
    %1540 = vmatpush.msra.mxu0 %v400
    %1541 = vmatpush.msra.mxu0 %v397
    %1542 = vmatpush.msra.mxu0 %v394
    %1543 = vmatpush.msra.mxu0 %v391
    %1544 = vmatpush.msra.mxu0 %v388
    %1545 = vmatpush.msra.mxu0 %v385
    %1546 = vmatmul.f32.gmra.mxu0 %v1320
    %v1547 = vpop.f32.mrf.mxu0
    %v1548 = vadd.f32 0.0, %v1547
    %1549 = vdwg.mxu0
    %v1550 = vadd.f32 %v550, %v1508
    %v1551 = vxor.u32 %v1550, 2147483648
    %v1552 = vmul.f32 %v1551, 1.442695
    %v1553 = vpow.pop %v1552
    %v1554 = vadd.f32 %v1553, 1.0
    %v1555 = vrcp.pop %v1554
    %v1556 = vmul.f32 %v1554, %v1555
    %v1557 = vsub.f32 1.0, %v1556
    %v1558 = vmul.f32 %v1555, %v1557
    %v1559 = vadd.f32 %v1555, %v1558
    %vm1560 = vweird.f32 %v1554
    %vm1561 = vweird.f32 %v1555
    %vm1562 = vmor %vm1560, %vm1561
    %v1563 = vsel %vm1562, %v1555, %v1559
    %v1564 = vand.u32 2147483647, %v1554
    %vm1565 = vcmp.eq.f32.partialorder %v1564, 8.507059e+37
    %v1566 = vand.u32 %v1554, 2147483648
    %v1567 = vor.u32 1.1754944e-38, %v1566
    %v1568 = vsel %vm1565, %v1567, %v1563
    %v1569 = vmul.f32 1.0, %v1568
    %v1570 = vadd.f32 %v591, %v1528
    %v1571 = vxor.u32 %v1570, 2147483648
    %v1572 = vmul.f32 %v1571, 1.442695
    %v1573 = vpow.pop %v1572
    %v1574 = vadd.f32 %v1573, 1.0
    %v1575 = vrcp.pop %v1574
    %v1576 = vmul.f32 %v1574, %v1575
    %v1577 = vsub.f32 1.0, %v1576
    %v1578 = vmul.f32 %v1575, %v1577
    %v1579 = vadd.f32 %v1575, %v1578
    %vm1580 = vweird.f32 %v1574
    %vm1581 = vweird.f32 %v1575
    %vm1582 = vmor %vm1580, %vm1581
    %v1583 = vsel %vm1582, %v1575, %v1579
    %v1584 = vand.u32 2147483647, %v1574
    %vm1585 = vcmp.eq.f32.partialorder %v1584, 8.507059e+37
    %v1586 = vand.u32 %v1574, 2147483648
    %v1587 = vor.u32 1.1754944e-38, %v1586
    %v1588 = vsel %vm1585, %v1587, %v1583
    %v1589 = vmul.f32 1.0, %v1588
    %v1590 = vadd.f32 %v1548, %v747
    %v1591 = vmul.f32 %v1569, %v1590
    %v1592 = vadd.f32 %v632, %v1591
    %v1593 = vtanh.pop %v1592
    %v1594 = vsub.f32 1.0, %v1589
    %v1595 = vmul.f32 %v1594, %v1593
    %v1596 = vmul.f32 %v1589, %v1320
    %v1597 = vadd.f32 %v1595, %v1596
    %1598 = vmatpush.msra.mxu0 %v380
    %1599 = vmatpush.msra.mxu0 %v377
    %1600 = vmatpush.msra.mxu0 %v374
    %1601 = vmatpush.msra.mxu0 %v371
    %1602 = vmatpush.msra.mxu0 %v368
    %1603 = vmatpush.msra.mxu0 %v365
    %1604 = vmatpush.msra.mxu0 %v362
    %1605 = vmatpush.msra.mxu0 %v359
    %1606 = vmatpush.msra.mxu0 %v356
    %1607 = vmatpush.msra.mxu0 %v353
    %1608 = vmatpush.msra.mxu0 %v350
    %1609 = vmatpush.msra.mxu0 %v347
    %1610 = vmatpush.msra.mxu0 %v344
    %1611 = vmatpush.msra.mxu0 %v341
    %1612 = vmatpush.msra.mxu0 %v338
    %1613 = vmatpush.msra.mxu0 %v335
    %1614 = vmatmul.f32.gmra.mxu0 %v1597
    %v1615 = vpop.f32.mrf.mxu0
    %v1616 = vadd.f32 %v758, %v1615
    %1617 = vdwg.mxu0
    %1618 = vmatpush.msra.mxu0 %v381
    %1619 = vmatpush.msra.mxu0 %v378
    %1620 = vmatpush.msra.mxu0 %v375
    %1621 = vmatpush.msra.mxu0 %v372
    %1622 = vmatpush.msra.mxu0 %v369
    %1623 = vmatpush.msra.mxu0 %v366
    %1624 = vmatpush.msra.mxu0 %v363
    %1625 = vmatpush.msra.mxu0 %v360
    %1626 = vmatpush.msra.mxu0 %v357
    %1627 = vmatpush.msra.mxu0 %v354
    %1628 = vmatpush.msra.mxu0 %v351
    %1629 = vmatpush.msra.mxu0 %v348
    %1630 = vmatpush.msra.mxu0 %v345
    %1631 = vmatpush.msra.mxu0 %v342
    %1632 = vmatpush.msra.mxu0 %v339
    %1633 = vmatpush.msra.mxu0 %v336
    %1634 = vmatmul.f32.gmra.mxu0 %v1597
    %v1635 = vpop.f32.mrf.mxu0
    %v1636 = vadd.f32 %v759, %v1635
    %1637 = vdwg.mxu0
    %1638 = vmatpush.msra.mxu0 %v382
    %1639 = vmatpush.msra.mxu0 %v379
    %1640 = vmatpush.msra.mxu0 %v376
    %1641 = vmatpush.msra.mxu0 %v373
    %1642 = vmatpush.msra.mxu0 %v370
    %1643 = vmatpush.msra.mxu0 %v367
    %1644 = vmatpush.msra.mxu0 %v364
    %1645 = vmatpush.msra.mxu0 %v361
    %1646 = vmatpush.msra.mxu0 %v358
    %1647 = vmatpush.msra.mxu0 %v355
    %1648 = vmatpush.msra.mxu0 %v352
    %1649 = vmatpush.msra.mxu0 %v349
    %1650 = vmatpush.msra.mxu0 %v346
    %1651 = vmatpush.msra.mxu0 %v343
    %1652 = vmatpush.msra.mxu0 %v340
    %1653 = vmatpush.msra.mxu0 %v337
    %1654 = vmatmul.f32.gmra.mxu0 %v1597
    %v1655 = vpop.f32.mrf.mxu0
    %v1656 = vadd.f32 %v760, %v1655
    %1657 = vdwg.mxu0
    %1658 = vmatpush.msra.mxu0 %v476
    %1659 = vmatpush.msra.mxu0 %v473
    %1660 = vmatpush.msra.mxu0 %v470
    %1661 = vmatpush.msra.mxu0 %v467
    %1662 = vmatpush.msra.mxu0 %v464
    %1663 = vmatpush.msra.mxu0 %v461
    %1664 = vmatpush.msra.mxu0 %v458
    %1665 = vmatpush.msra.mxu0 %v455
    %1666 = vmatpush.msra.mxu0 %v452
    %1667 = vmatpush.msra.mxu0 %v449
    %1668 = vmatpush.msra.mxu0 %v446
    %1669 = vmatpush.msra.mxu0 %v443
    %1670 = vmatpush.msra.mxu0 %v440
    %1671 = vmatpush.msra.mxu0 %v437
    %1672 = vmatpush.msra.mxu0 %v434
    %1673 = vmatpush.msra.mxu0 %v431
    %1674 = vmatmul.f32.gmra.mxu0 %v1488
    %v1675 = vpop.f32.mrf.mxu0
    %v1676 = vadd.f32 0.0, %v1675
    %1677 = vdwg.mxu0
    %1678 = vmatpush.msra.mxu0 %v477
    %1679 = vmatpush.msra.mxu0 %v474
    %1680 = vmatpush.msra.mxu0 %v471
    %1681 = vmatpush.msra.mxu0 %v468
    %1682 = vmatpush.msra.mxu0 %v465
    %1683 = vmatpush.msra.mxu0 %v462
    %1684 = vmatpush.msra.mxu0 %v459
    %1685 = vmatpush.msra.mxu0 %v456
    %1686 = vmatpush.msra.mxu0 %v453
    %1687 = vmatpush.msra.mxu0 %v450
    %1688 = vmatpush.msra.mxu0 %v447
    %1689 = vmatpush.msra.mxu0 %v444
    %1690 = vmatpush.msra.mxu0 %v441
    %1691 = vmatpush.msra.mxu0 %v438
    %1692 = vmatpush.msra.mxu0 %v435
    %1693 = vmatpush.msra.mxu0 %v432
    %1694 = vmatmul.f32.gmra.mxu0 %v1488
    %v1695 = vpop.f32.mrf.mxu0
    %v1696 = vadd.f32 0.0, %v1695
    %1697 = vdwg.mxu0
    %1698 = vmatpush.msra.mxu0 %v478
    %1699 = vmatpush.msra.mxu0 %v475
    %1700 = vmatpush.msra.mxu0 %v472
    %1701 = vmatpush.msra.mxu0 %v469
    %1702 = vmatpush.msra.mxu0 %v466
    %1703 = vmatpush.msra.mxu0 %v463
    %1704 = vmatpush.msra.mxu0 %v460
    %1705 = vmatpush.msra.mxu0 %v457
    %1706 = vmatpush.msra.mxu0 %v454
    %1707 = vmatpush.msra.mxu0 %v451
    %1708 = vmatpush.msra.mxu0 %v448
    %1709 = vmatpush.msra.mxu0 %v445
    %1710 = vmatpush.msra.mxu0 %v442
    %1711 = vmatpush.msra.mxu0 %v439
    %1712 = vmatpush.msra.mxu0 %v436
    %1713 = vmatpush.msra.mxu0 %v433
    %1714 = vmatmul.f32.gmra.mxu0 %v1488
    %v1715 = vpop.f32.mrf.mxu0
    %v1716 = vadd.f32 0.0, %v1715
    %1717 = vdwg.mxu0
    %v1718 = vadd.f32 %v1616, %v1676
    %v1719 = vxor.u32 %v1718, 2147483648
    %v1720 = vmul.f32 %v1719, 1.442695
    %v1721 = vpow.pop %v1720
    %v1722 = vadd.f32 %v1721, 1.0
    %v1723 = vrcp.pop %v1722
    %v1724 = vmul.f32 %v1722, %v1723
    %v1725 = vsub.f32 1.0, %v1724
    %v1726 = vmul.f32 %v1723, %v1725
    %v1727 = vadd.f32 %v1723, %v1726
    %vm1728 = vweird.f32 %v1722
    %vm1729 = vweird.f32 %v1723
    %vm1730 = vmor %vm1728, %vm1729
    %v1731 = vsel %vm1730, %v1723, %v1727
    %v1732 = vand.u32 2147483647, %v1722
    %vm1733 = vcmp.eq.f32.partialorder %v1732, 8.507059e+37
    %v1734 = vand.u32 %v1722, 2147483648
    %v1735 = vor.u32 1.1754944e-38, %v1734
    %v1736 = vsel %vm1733, %v1735, %v1731
    %v1737 = vmul.f32 1.0, %v1736
    %v1738 = vadd.f32 %v1636, %v1696
    %v1739 = vxor.u32 %v1738, 2147483648
    %v1740 = vmul.f32 %v1739, 1.442695
    %v1741 = vpow.pop %v1740
    %v1742 = vadd.f32 %v1741, 1.0
    %v1743 = vrcp.pop %v1742
    %v1744 = vmul.f32 %v1742, %v1743
    %v1745 = vsub.f32 1.0, %v1744
    %v1746 = vmul.f32 %v1743, %v1745
    %v1747 = vadd.f32 %v1743, %v1746
    %vm1748 = vweird.f32 %v1742
    %vm1749 = vweird.f32 %v1743
    %vm1750 = vmor %vm1748, %vm1749
    %v1751 = vsel %vm1750, %v1743, %v1747
    %v1752 = vand.u32 2147483647, %v1742
    %vm1753 = vcmp.eq.f32.partialorder %v1752, 8.507059e+37
    %v1754 = vand.u32 %v1742, 2147483648
    %v1755 = vor.u32 1.1754944e-38, %v1754
    %v1756 = vsel %vm1753, %v1755, %v1751
    %v1757 = vmul.f32 1.0, %v1756
    %v1758 = vadd.f32 %v1716, %v925
    %v1759 = vmul.f32 %v1737, %v1758
    %v1760 = vadd.f32 %v1656, %v1759
    %v1761 = vtanh.pop %v1760
    %v1762 = vsub.f32 1.0, %v1757
    %v1763 = vmul.f32 %v1762, %v1761
    %v1764 = vmul.f32 %v1757, %v1488
    %v1765 = vadd.f32 %v1763, %v1764
    %v1766 = vadd.f32 %v1489, %v1765
    %1767 = vmatpush.msra.mxu0 %v428
    %1768 = vmatpush.msra.mxu0 %v425
    %1769 = vmatpush.msra.mxu0 %v422
    %1770 = vmatpush.msra.mxu0 %v419
    %1771 = vmatpush.msra.mxu0 %v416
    %1772 = vmatpush.msra.mxu0 %v413
    %1773 = vmatpush.msra.mxu0 %v410
    %1774 = vmatpush.msra.mxu0 %v407
    %1775 = vmatpush.msra.mxu0 %v404
    %1776 = vmatpush.msra.mxu0 %v401
    %1777 = vmatpush.msra.mxu0 %v398
    %1778 = vmatpush.msra.mxu0 %v395
    %1779 = vmatpush.msra.mxu0 %v392
    %1780 = vmatpush.msra.mxu0 %v389
    %1781 = vmatpush.msra.mxu0 %v386
    %1782 = vmatpush.msra.mxu0 %v383
    %1783 = vmatmul.f32.gmra.mxu0 %v1597
    %v1784 = vpop.f32.mrf.mxu0
    %v1785 = vadd.f32 0.0, %v1784
    %1786 = vdwg.mxu0
    %1787 = vmatpush.msra.mxu0 %v429
    %1788 = vmatpush.msra.mxu0 %v426
    %1789 = vmatpush.msra.mxu0 %v423
    %1790 = vmatpush.msra.mxu0 %v420
    %1791 = vmatpush.msra.mxu0 %v417
    %1792 = vmatpush.msra.mxu0 %v414
    %1793 = vmatpush.msra.mxu0 %v411
    %1794 = vmatpush.msra.mxu0 %v408
    %1795 = vmatpush.msra.mxu0 %v405
    %1796 = vmatpush.msra.mxu0 %v402
    %1797 = vmatpush.msra.mxu0 %v399
    %1798 = vmatpush.msra.mxu0 %v396
    %1799 = vmatpush.msra.mxu0 %v393
    %1800 = vmatpush.msra.mxu0 %v390
    %1801 = vmatpush.msra.mxu0 %v387
    %1802 = vmatpush.msra.mxu0 %v384
    %1803 = vmatmul.f32.gmra.mxu0 %v1597
    %v1804 = vpop.f32.mrf.mxu0
    %v1805 = vadd.f32 0.0, %v1804
    %1806 = vdwg.mxu0
    %1807 = vmatpush.msra.mxu0 %v430
    %1808 = vmatpush.msra.mxu0 %v427
    %1809 = vmatpush.msra.mxu0 %v424
    %1810 = vmatpush.msra.mxu0 %v421
    %1811 = vmatpush.msra.mxu0 %v418
    %1812 = vmatpush.msra.mxu0 %v415
    %1813 = vmatpush.msra.mxu0 %v412
    %1814 = vmatpush.msra.mxu0 %v409
    %1815 = vmatpush.msra.mxu0 %v406
    %1816 = vmatpush.msra.mxu0 %v403
    %1817 = vmatpush.msra.mxu0 %v400
    %1818 = vmatpush.msra.mxu0 %v397
    %1819 = vmatpush.msra.mxu0 %v394
    %1820 = vmatpush.msra.mxu0 %v391
    %1821 = vmatpush.msra.mxu0 %v388
    %1822 = vmatpush.msra.mxu0 %v385
    %1823 = vmatmul.f32.gmra.mxu0 %v1597
    %v1824 = vpop.f32.mrf.mxu0
    %v1825 = vadd.f32 0.0, %v1824
    %1826 = vdwg.mxu0
    %v1827 = vadd.f32 %v553, %v1785
    %v1828 = vxor.u32 %v1827, 2147483648
    %v1829 = vmul.f32 %v1828, 1.442695
    %v1830 = vpow.pop %v1829
    %v1831 = vadd.f32 %v1830, 1.0
    %v1832 = vrcp.pop %v1831
    %v1833 = vmul.f32 %v1831, %v1832
    %v1834 = vsub.f32 1.0, %v1833
    %v1835 = vmul.f32 %v1832, %v1834
    %v1836 = vadd.f32 %v1832, %v1835
    %vm1837 = vweird.f32 %v1831
    %vm1838 = vweird.f32 %v1832
    %vm1839 = vmor %vm1837, %vm1838
    %v1840 = vsel %vm1839, %v1832, %v1836
    %v1841 = vand.u32 2147483647, %v1831
    %vm1842 = vcmp.eq.f32.partialorder %v1841, 8.507059e+37
    %v1843 = vand.u32 %v1831, 2147483648
    %v1844 = vor.u32 1.1754944e-38, %v1843
    %v1845 = vsel %vm1842, %v1844, %v1840
    %v1846 = vmul.f32 1.0, %v1845
    %v1847 = vadd.f32 %v594, %v1805
    %v1848 = vxor.u32 %v1847, 2147483648
    %v1849 = vmul.f32 %v1848, 1.442695
    %v1850 = vpow.pop %v1849
    %v1851 = vadd.f32 %v1850, 1.0
    %v1852 = vrcp.pop %v1851
    %v1853 = vmul.f32 %v1851, %v1852
    %v1854 = vsub.f32 1.0, %v1853
    %v1855 = vmul.f32 %v1852, %v1854
    %v1856 = vadd.f32 %v1852, %v1855
    %vm1857 = vweird.f32 %v1851
    %vm1858 = vweird.f32 %v1852
    %vm1859 = vmor %vm1857, %vm1858
    %v1860 = vsel %vm1859, %v1852, %v1856
    %v1861 = vand.u32 2147483647, %v1851
    %vm1862 = vcmp.eq.f32.partialorder %v1861, 8.507059e+37
    %v1863 = vand.u32 %v1851, 2147483648
    %v1864 = vor.u32 1.1754944e-38, %v1863
    %v1865 = vsel %vm1862, %v1864, %v1860
    %v1866 = vmul.f32 1.0, %v1865
    %v1867 = vadd.f32 %v1825, %v747
    %v1868 = vmul.f32 %v1846, %v1867
    %v1869 = vadd.f32 %v635, %v1868
    %v1870 = vtanh.pop %v1869
    %v1871 = vsub.f32 1.0, %v1866
    %v1872 = vmul.f32 %v1871, %v1870
    %v1873 = vmul.f32 %v1866, %v1597
    %v1874 = vadd.f32 %v1872, %v1873
    %1875 = vmatpush.msra.mxu0 %v380
    %1876 = vmatpush.msra.mxu0 %v377
    %1877 = vmatpush.msra.mxu0 %v374
    %1878 = vmatpush.msra.mxu0 %v371
    %1879 = vmatpush.msra.mxu0 %v368
    %1880 = vmatpush.msra.mxu0 %v365
    %1881 = vmatpush.msra.mxu0 %v362
    %1882 = vmatpush.msra.mxu0 %v359
    %1883 = vmatpush.msra.mxu0 %v356
    %1884 = vmatpush.msra.mxu0 %v353
    %1885 = vmatpush.msra.mxu0 %v350
    %1886 = vmatpush.msra.mxu0 %v347
    %1887 = vmatpush.msra.mxu0 %v344
    %1888 = vmatpush.msra.mxu0 %v341
    %1889 = vmatpush.msra.mxu0 %v338
    %1890 = vmatpush.msra.mxu0 %v335
    %1891 = vmatmul.f32.gmra.mxu0 %v1874
    %v1892 = vpop.f32.mrf.mxu0
    %v1893 = vadd.f32 %v758, %v1892
    %1894 = vdwg.mxu0
    %1895 = vmatpush.msra.mxu0 %v381
    %1896 = vmatpush.msra.mxu0 %v378
    %1897 = vmatpush.msra.mxu0 %v375
    %1898 = vmatpush.msra.mxu0 %v372
    %1899 = vmatpush.msra.mxu0 %v369
    %1900 = vmatpush.msra.mxu0 %v366
    %1901 = vmatpush.msra.mxu0 %v363
    %1902 = vmatpush.msra.mxu0 %v360
    %1903 = vmatpush.msra.mxu0 %v357
    %1904 = vmatpush.msra.mxu0 %v354
    %1905 = vmatpush.msra.mxu0 %v351
    %1906 = vmatpush.msra.mxu0 %v348
    %1907 = vmatpush.msra.mxu0 %v345
    %1908 = vmatpush.msra.mxu0 %v342
    %1909 = vmatpush.msra.mxu0 %v339
    %1910 = vmatpush.msra.mxu0 %v336
    %1911 = vmatmul.f32.gmra.mxu0 %v1874
    %v1912 = vpop.f32.mrf.mxu0
    %v1913 = vadd.f32 %v759, %v1912
    %1914 = vdwg.mxu0
    %1915 = vmatpush.msra.mxu0 %v382
    %1916 = vmatpush.msra.mxu0 %v379
    %1917 = vmatpush.msra.mxu0 %v376
    %1918 = vmatpush.msra.mxu0 %v373
    %1919 = vmatpush.msra.mxu0 %v370
    %1920 = vmatpush.msra.mxu0 %v367
    %1921 = vmatpush.msra.mxu0 %v364
    %1922 = vmatpush.msra.mxu0 %v361
    %1923 = vmatpush.msra.mxu0 %v358
    %1924 = vmatpush.msra.mxu0 %v355
    %1925 = vmatpush.msra.mxu0 %v352
    %1926 = vmatpush.msra.mxu0 %v349
    %1927 = vmatpush.msra.mxu0 %v346
    %1928 = vmatpush.msra.mxu0 %v343
    %1929 = vmatpush.msra.mxu0 %v340
    %1930 = vmatpush.msra.mxu0 %v337
    %1931 = vmatmul.f32.gmra.mxu0 %v1874
    %v1932 = vpop.f32.mrf.mxu0
    %v1933 = vadd.f32 %v760, %v1932
    %1934 = vdwg.mxu0
    %1935 = vmatpush.msra.mxu0 %v476
    %1936 = vmatpush.msra.mxu0 %v473
    %1937 = vmatpush.msra.mxu0 %v470
    %1938 = vmatpush.msra.mxu0 %v467
    %1939 = vmatpush.msra.mxu0 %v464
    %1940 = vmatpush.msra.mxu0 %v461
    %1941 = vmatpush.msra.mxu0 %v458
    %1942 = vmatpush.msra.mxu0 %v455
    %1943 = vmatpush.msra.mxu0 %v452
    %1944 = vmatpush.msra.mxu0 %v449
    %1945 = vmatpush.msra.mxu0 %v446
    %1946 = vmatpush.msra.mxu0 %v443
    %1947 = vmatpush.msra.mxu0 %v440
    %1948 = vmatpush.msra.mxu0 %v437
    %1949 = vmatpush.msra.mxu0 %v434
    %1950 = vmatpush.msra.mxu0 %v431
    %1951 = vmatmul.f32.gmra.mxu0 %v1765
    %v1952 = vpop.f32.mrf.mxu0
    %v1953 = vadd.f32 0.0, %v1952
    %1954 = vdwg.mxu0
    %1955 = vmatpush.msra.mxu0 %v477
    %1956 = vmatpush.msra.mxu0 %v474
    %1957 = vmatpush.msra.mxu0 %v471
    %1958 = vmatpush.msra.mxu0 %v468
    %1959 = vmatpush.msra.mxu0 %v465
    %1960 = vmatpush.msra.mxu0 %v462
    %1961 = vmatpush.msra.mxu0 %v459
    %1962 = vmatpush.msra.mxu0 %v456
    %1963 = vmatpush.msra.mxu0 %v453
    %1964 = vmatpush.msra.mxu0 %v450
    %1965 = vmatpush.msra.mxu0 %v447
    %1966 = vmatpush.msra.mxu0 %v444
    %1967 = vmatpush.msra.mxu0 %v441
    %1968 = vmatpush.msra.mxu0 %v438
    %1969 = vmatpush.msra.mxu0 %v435
    %1970 = vmatpush.msra.mxu0 %v432
    %1971 = vmatmul.f32.gmra.mxu0 %v1765
    %v1972 = vpop.f32.mrf.mxu0
    %v1973 = vadd.f32 0.0, %v1972
    %1974 = vdwg.mxu0
    %1975 = vmatpush.msra.mxu0 %v478
    %1976 = vmatpush.msra.mxu0 %v475
    %1977 = vmatpush.msra.mxu0 %v472
    %1978 = vmatpush.msra.mxu0 %v469
    %1979 = vmatpush.msra.mxu0 %v466
    %1980 = vmatpush.msra.mxu0 %v463
    %1981 = vmatpush.msra.mxu0 %v460
    %1982 = vmatpush.msra.mxu0 %v457
    %1983 = vmatpush.msra.mxu0 %v454
    %1984 = vmatpush.msra.mxu0 %v451
    %1985 = vmatpush.msra.mxu0 %v448
    %1986 = vmatpush.msra.mxu0 %v445
    %1987 = vmatpush.msra.mxu0 %v442
    %1988 = vmatpush.msra.mxu0 %v439
    %1989 = vmatpush.msra.mxu0 %v436
    %1990 = vmatpush.msra.mxu0 %v433
    %1991 = vmatmul.f32.gmra.mxu0 %v1765
    %v1992 = vpop.f32.mrf.mxu0
    %v1993 = vadd.f32 0.0, %v1992
    %1994 = vdwg.mxu0
    %v1995 = vadd.f32 %v1893, %v1953
    %v1996 = vxor.u32 %v1995, 2147483648
    %v1997 = vmul.f32 %v1996, 1.442695
    %v1998 = vpow.pop %v1997
    %v1999 = vadd.f32 %v1998, 1.0
    %v2000 = vrcp.pop %v1999
    %v2001 = vmul.f32 %v1999, %v2000
    %v2002 = vsub.f32 1.0, %v2001
    %v2003 = vmul.f32 %v2000, %v2002
    %v2004 = vadd.f32 %v2000, %v2003
    %vm2005 = vweird.f32 %v1999
    %vm2006 = vweird.f32 %v2000
    %vm2007 = vmor %vm2005, %vm2006
    %v2008 = vsel %vm2007, %v2000, %v2004
    %v2009 = vand.u32 2147483647, %v1999
    %vm2010 = vcmp.eq.f32.partialorder %v2009, 8.507059e+37
    %v2011 = vand.u32 %v1999, 2147483648
    %v2012 = vor.u32 1.1754944e-38, %v2011
    %v2013 = vsel %vm2010, %v2012, %v2008
    %v2014 = vmul.f32 1.0, %v2013
    %v2015 = vadd.f32 %v1913, %v1973
    %v2016 = vxor.u32 %v2015, 2147483648
    %v2017 = vmul.f32 %v2016, 1.442695
    %v2018 = vpow.pop %v2017
    %v2019 = vadd.f32 %v2018, 1.0
    %v2020 = vrcp.pop %v2019
    %v2021 = vmul.f32 %v2019, %v2020
    %v2022 = vsub.f32 1.0, %v2021
    %v2023 = vmul.f32 %v2020, %v2022
    %v2024 = vadd.f32 %v2020, %v2023
    %vm2025 = vweird.f32 %v2019
    %vm2026 = vweird.f32 %v2020
    %vm2027 = vmor %vm2025, %vm2026
    %v2028 = vsel %vm2027, %v2020, %v2024
    %v2029 = vand.u32 2147483647, %v2019
    %vm2030 = vcmp.eq.f32.partialorder %v2029, 8.507059e+37
    %v2031 = vand.u32 %v2019, 2147483648
    %v2032 = vor.u32 1.1754944e-38, %v2031
    %v2033 = vsel %vm2030, %v2032, %v2028
    %v2034 = vmul.f32 1.0, %v2033
    %v2035 = vadd.f32 %v1993, %v925
    %v2036 = vmul.f32 %v2014, %v2035
    %v2037 = vadd.f32 %v1933, %v2036
    %v2038 = vtanh.pop %v2037
    %v2039 = vsub.f32 1.0, %v2034
    %v2040 = vmul.f32 %v2039, %v2038
    %v2041 = vmul.f32 %v2034, %v1765
    %v2042 = vadd.f32 %v2040, %v2041
    %v2043 = vadd.f32 %v1766, %v2042
    %2044 = vmatpush.msra.mxu0 %v428
    %2045 = vmatpush.msra.mxu0 %v425
    %2046 = vmatpush.msra.mxu0 %v422
    %2047 = vmatpush.msra.mxu0 %v419
    %2048 = vmatpush.msra.mxu0 %v416
    %2049 = vmatpush.msra.mxu0 %v413
    %2050 = vmatpush.msra.mxu0 %v410
    %2051 = vmatpush.msra.mxu0 %v407
    %2052 = vmatpush.msra.mxu0 %v404
    %2053 = vmatpush.msra.mxu0 %v401
    %2054 = vmatpush.msra.mxu0 %v398
    %2055 = vmatpush.msra.mxu0 %v395
    %2056 = vmatpush.msra.mxu0 %v392
    %2057 = vmatpush.msra.mxu0 %v389
    %2058 = vmatpush.msra.mxu0 %v386
    %2059 = vmatpush.msra.mxu0 %v383
    %2060 = vmatmul.f32.gmra.mxu0 %v1874
    %v2061 = vpop.f32.mrf.mxu0
    %v2062 = vadd.f32 0.0, %v2061
    %2063 = vdwg.mxu0
    %2064 = vmatpush.msra.mxu0 %v429
    %2065 = vmatpush.msra.mxu0 %v426
    %2066 = vmatpush.msra.mxu0 %v423
    %2067 = vmatpush.msra.mxu0 %v420
    %2068 = vmatpush.msra.mxu0 %v417
    %2069 = vmatpush.msra.mxu0 %v414
    %2070 = vmatpush.msra.mxu0 %v411
    %2071 = vmatpush.msra.mxu0 %v408
    %2072 = vmatpush.msra.mxu0 %v405
    %2073 = vmatpush.msra.mxu0 %v402
    %2074 = vmatpush.msra.mxu0 %v399
    %2075 = vmatpush.msra.mxu0 %v396
    %2076 = vmatpush.msra.mxu0 %v393
    %2077 = vmatpush.msra.mxu0 %v390
    %2078 = vmatpush.msra.mxu0 %v387
    %2079 = vmatpush.msra.mxu0 %v384
    %2080 = vmatmul.f32.gmra.mxu0 %v1874
    %v2081 = vpop.f32.mrf.mxu0
    %v2082 = vadd.f32 0.0, %v2081
    %2083 = vdwg.mxu0
    %2084 = vmatpush.msra.mxu0 %v430
    %2085 = vmatpush.msra.mxu0 %v427
    %2086 = vmatpush.msra.mxu0 %v424
    %2087 = vmatpush.msra.mxu0 %v421
    %2088 = vmatpush.msra.mxu0 %v418
    %2089 = vmatpush.msra.mxu0 %v415
    %2090 = vmatpush.msra.mxu0 %v412
    %2091 = vmatpush.msra.mxu0 %v409
    %2092 = vmatpush.msra.mxu0 %v406
    %2093 = vmatpush.msra.mxu0 %v403
    %2094 = vmatpush.msra.mxu0 %v400
    %2095 = vmatpush.msra.mxu0 %v397
    %2096 = vmatpush.msra.mxu0 %v394
    %2097 = vmatpush.msra.mxu0 %v391
    %2098 = vmatpush.msra.mxu0 %v388
    %2099 = vmatpush.msra.mxu0 %v385
    %2100 = vmatmul.f32.gmra.mxu0 %v1874
    %v2101 = vpop.f32.mrf.mxu0
    %v2102 = vadd.f32 0.0, %v2101
    %2103 = vdwg.mxu0
    %v2104 = vadd.f32 %v556, %v2062
    %v2105 = vxor.u32 %v2104, 2147483648
    %v2106 = vmul.f32 %v2105, 1.442695
    %v2107 = vpow.pop %v2106
    %v2108 = vadd.f32 %v2107, 1.0
    %v2109 = vrcp.pop %v2108
    %v2110 = vmul.f32 %v2108, %v2109
    %v2111 = vsub.f32 1.0, %v2110
    %v2112 = vmul.f32 %v2109, %v2111
    %v2113 = vadd.f32 %v2109, %v2112
    %vm2114 = vweird.f32 %v2108
    %vm2115 = vweird.f32 %v2109
    %vm2116 = vmor %vm2114, %vm2115
    %v2117 = vsel %vm2116, %v2109, %v2113
    %v2118 = vand.u32 2147483647, %v2108
    %vm2119 = vcmp.eq.f32.partialorder %v2118, 8.507059e+37
    %v2120 = vand.u32 %v2108, 2147483648
    %v2121 = vor.u32 1.1754944e-38, %v2120
    %v2122 = vsel %vm2119, %v2121, %v2117
    %v2123 = vmul.f32 1.0, %v2122
    %v2124 = vadd.f32 %v597, %v2082
    %v2125 = vxor.u32 %v2124, 2147483648
    %v2126 = vmul.f32 %v2125, 1.442695
    %v2127 = vpow.pop %v2126
    %v2128 = vadd.f32 %v2127, 1.0
    %v2129 = vrcp.pop %v2128
    %v2130 = vmul.f32 %v2128, %v2129
    %v2131 = vsub.f32 1.0, %v2130
    %v2132 = vmul.f32 %v2129, %v2131
    %v2133 = vadd.f32 %v2129, %v2132
    %vm2134 = vweird.f32 %v2128
    %vm2135 = vweird.f32 %v2129
    %vm2136 = vmor %vm2134, %vm2135
    %v2137 = vsel %vm2136, %v2129, %v2133
    %v2138 = vand.u32 2147483647, %v2128
    %vm2139 = vcmp.eq.f32.partialorder %v2138, 8.507059e+37
    %v2140 = vand.u32 %v2128, 2147483648
    %v2141 = vor.u32 1.1754944e-38, %v2140
    %v2142 = vsel %vm2139, %v2141, %v2137
    %v2143 = vmul.f32 1.0, %v2142
    %v2144 = vadd.f32 %v2102, %v747
    %v2145 = vmul.f32 %v2123, %v2144
    %v2146 = vadd.f32 %v638, %v2145
    %v2147 = vtanh.pop %v2146
    %v2148 = vsub.f32 1.0, %v2143
    %v2149 = vmul.f32 %v2148, %v2147
    %v2150 = vmul.f32 %v2143, %v1874
    %v2151 = vadd.f32 %v2149, %v2150
    %2152 = vmatpush.msra.mxu0 %v380
    %2153 = vmatpush.msra.mxu0 %v377
    %2154 = vmatpush.msra.mxu0 %v374
    %2155 = vmatpush.msra.mxu0 %v371
    %2156 = vmatpush.msra.mxu0 %v368
    %2157 = vmatpush.msra.mxu0 %v365
    %2158 = vmatpush.msra.mxu0 %v362
    %2159 = vmatpush.msra.mxu0 %v359
    %2160 = vmatpush.msra.mxu0 %v356
    %2161 = vmatpush.msra.mxu0 %v353
    %2162 = vmatpush.msra.mxu0 %v350
    %2163 = vmatpush.msra.mxu0 %v347
    %2164 = vmatpush.msra.mxu0 %v344
    %2165 = vmatpush.msra.mxu0 %v341
    %2166 = vmatpush.msra.mxu0 %v338
    %2167 = vmatpush.msra.mxu0 %v335
    %2168 = vmatmul.f32.gmra.mxu0 %v2151
    %v2169 = vpop.f32.mrf.mxu0
    %v2170 = vadd.f32 %v758, %v2169
    %2171 = vdwg.mxu0
    %2172 = vmatpush.msra.mxu0 %v381
    %2173 = vmatpush.msra.mxu0 %v378
    %2174 = vmatpush.msra.mxu0 %v375
    %2175 = vmatpush.msra.mxu0 %v372
    %2176 = vmatpush.msra.mxu0 %v369
    %2177 = vmatpush.msra.mxu0 %v366
    %2178 = vmatpush.msra.mxu0 %v363
    %2179 = vmatpush.msra.mxu0 %v360
    %2180 = vmatpush.msra.mxu0 %v357
    %2181 = vmatpush.msra.mxu0 %v354
    %2182 = vmatpush.msra.mxu0 %v351
    %2183 = vmatpush.msra.mxu0 %v348
    %2184 = vmatpush.msra.mxu0 %v345
    %2185 = vmatpush.msra.mxu0 %v342
    %2186 = vmatpush.msra.mxu0 %v339
    %2187 = vmatpush.msra.mxu0 %v336
    %2188 = vmatmul.f32.gmra.mxu0 %v2151
    %v2189 = vpop.f32.mrf.mxu0
    %v2190 = vadd.f32 %v759, %v2189
    %2191 = vdwg.mxu0
    %2192 = vmatpush.msra.mxu0 %v382
    %2193 = vmatpush.msra.mxu0 %v379
    %2194 = vmatpush.msra.mxu0 %v376
    %2195 = vmatpush.msra.mxu0 %v373
    %2196 = vmatpush.msra.mxu0 %v370
    %2197 = vmatpush.msra.mxu0 %v367
    %2198 = vmatpush.msra.mxu0 %v364
    %2199 = vmatpush.msra.mxu0 %v361
    %2200 = vmatpush.msra.mxu0 %v358
    %2201 = vmatpush.msra.mxu0 %v355
    %2202 = vmatpush.msra.mxu0 %v352
    %2203 = vmatpush.msra.mxu0 %v349
    %2204 = vmatpush.msra.mxu0 %v346
    %2205 = vmatpush.msra.mxu0 %v343
    %2206 = vmatpush.msra.mxu0 %v340
    %2207 = vmatpush.msra.mxu0 %v337
    %2208 = vmatmul.f32.gmra.mxu0 %v2151
    %v2209 = vpop.f32.mrf.mxu0
    %v2210 = vadd.f32 %v760, %v2209
    %2211 = vdwg.mxu0
    %2212 = vmatpush.msra.mxu0 %v476
    %2213 = vmatpush.msra.mxu0 %v473
    %2214 = vmatpush.msra.mxu0 %v470
    %2215 = vmatpush.msra.mxu0 %v467
    %2216 = vmatpush.msra.mxu0 %v464
    %2217 = vmatpush.msra.mxu0 %v461
    %2218 = vmatpush.msra.mxu0 %v458
    %2219 = vmatpush.msra.mxu0 %v455
    %2220 = vmatpush.msra.mxu0 %v452
    %2221 = vmatpush.msra.mxu0 %v449
    %2222 = vmatpush.msra.mxu0 %v446
    %2223 = vmatpush.msra.mxu0 %v443
    %2224 = vmatpush.msra.mxu0 %v440
    %2225 = vmatpush.msra.mxu0 %v437
    %2226 = vmatpush.msra.mxu0 %v434
    %2227 = vmatpush.msra.mxu0 %v431
    %2228 = vmatmul.f32.gmra.mxu0 %v2042
    %v2229 = vpop.f32.mrf.mxu0
    %v2230 = vadd.f32 0.0, %v2229
    %2231 = vdwg.mxu0
    %2232 = vmatpush.msra.mxu0 %v477
    %2233 = vmatpush.msra.mxu0 %v474
    %2234 = vmatpush.msra.mxu0 %v471
    %2235 = vmatpush.msra.mxu0 %v468
    %2236 = vmatpush.msra.mxu0 %v465
    %2237 = vmatpush.msra.mxu0 %v462
    %2238 = vmatpush.msra.mxu0 %v459
    %2239 = vmatpush.msra.mxu0 %v456
    %2240 = vmatpush.msra.mxu0 %v453
    %2241 = vmatpush.msra.mxu0 %v450
    %2242 = vmatpush.msra.mxu0 %v447
    %2243 = vmatpush.msra.mxu0 %v444
    %2244 = vmatpush.msra.mxu0 %v441
    %2245 = vmatpush.msra.mxu0 %v438
    %2246 = vmatpush.msra.mxu0 %v435
    %2247 = vmatpush.msra.mxu0 %v432
    %2248 = vmatmul.f32.gmra.mxu0 %v2042
    %v2249 = vpop.f32.mrf.mxu0
    %v2250 = vadd.f32 0.0, %v2249
    %2251 = vdwg.mxu0
    %2252 = vmatpush.msra.mxu0 %v478
    %2253 = vmatpush.msra.mxu0 %v475
    %2254 = vmatpush.msra.mxu0 %v472
    %2255 = vmatpush.msra.mxu0 %v469
    %2256 = vmatpush.msra.mxu0 %v466
    %2257 = vmatpush.msra.mxu0 %v463
    %2258 = vmatpush.msra.mxu0 %v460
    %2259 = vmatpush.msra.mxu0 %v457
    %2260 = vmatpush.msra.mxu0 %v454
    %2261 = vmatpush.msra.mxu0 %v451
    %2262 = vmatpush.msra.mxu0 %v448
    %2263 = vmatpush.msra.mxu0 %v445
    %2264 = vmatpush.msra.mxu0 %v442
    %2265 = vmatpush.msra.mxu0 %v439
    %2266 = vmatpush.msra.mxu0 %v436
    %2267 = vmatpush.msra.mxu0 %v433
    %2268 = vmatmul.f32.gmra.mxu0 %v2042
    %v2269 = vpop.f32.mrf.mxu0
    %v2270 = vadd.f32 0.0, %v2269
    %2271 = vdwg.mxu0
    %v2272 = vadd.f32 %v2170, %v2230
    %v2273 = vxor.u32 %v2272, 2147483648
    %v2274 = vmul.f32 %v2273, 1.442695
    %v2275 = vpow.pop %v2274
    %v2276 = vadd.f32 %v2275, 1.0
    %v2277 = vrcp.pop %v2276
    %v2278 = vmul.f32 %v2276, %v2277
    %v2279 = vsub.f32 1.0, %v2278
    %v2280 = vmul.f32 %v2277, %v2279
    %v2281 = vadd.f32 %v2277, %v2280
    %vm2282 = vweird.f32 %v2276
    %vm2283 = vweird.f32 %v2277
    %vm2284 = vmor %vm2282, %vm2283
    %v2285 = vsel %vm2284, %v2277, %v2281
    %v2286 = vand.u32 2147483647, %v2276
    %vm2287 = vcmp.eq.f32.partialorder %v2286, 8.507059e+37
    %v2288 = vand.u32 %v2276, 2147483648
    %v2289 = vor.u32 1.1754944e-38, %v2288
    %v2290 = vsel %vm2287, %v2289, %v2285
    %v2291 = vmul.f32 1.0, %v2290
    %v2292 = vadd.f32 %v2190, %v2250
    %v2293 = vxor.u32 %v2292, 2147483648
    %v2294 = vmul.f32 %v2293, 1.442695
    %v2295 = vpow.pop %v2294
    %v2296 = vadd.f32 %v2295, 1.0
    %v2297 = vrcp.pop %v2296
    %v2298 = vmul.f32 %v2296, %v2297
    %v2299 = vsub.f32 1.0, %v2298
    %v2300 = vmul.f32 %v2297, %v2299
    %v2301 = vadd.f32 %v2297, %v2300
    %vm2302 = vweird.f32 %v2296
    %vm2303 = vweird.f32 %v2297
    %vm2304 = vmor %vm2302, %vm2303
    %v2305 = vsel %vm2304, %v2297, %v2301
    %v2306 = vand.u32 2147483647, %v2296
    %vm2307 = vcmp.eq.f32.partialorder %v2306, 8.507059e+37
    %v2308 = vand.u32 %v2296, 2147483648
    %v2309 = vor.u32 1.1754944e-38, %v2308
    %v2310 = vsel %vm2307, %v2309, %v2305
    %v2311 = vmul.f32 1.0, %v2310
    %v2312 = vadd.f32 %v2270, %v925
    %v2313 = vmul.f32 %v2291, %v2312
    %v2314 = vadd.f32 %v2210, %v2313
    %v2315 = vtanh.pop %v2314
    %v2316 = vsub.f32 1.0, %v2311
    %v2317 = vmul.f32 %v2316, %v2315
    %v2318 = vmul.f32 %v2311, %v2042
    %v2319 = vadd.f32 %v2317, %v2318
    %v2320 = vadd.f32 %v2043, %v2319
    %2321 = vmatpush.msra.mxu0 %v428
    %2322 = vmatpush.msra.mxu0 %v425
    %2323 = vmatpush.msra.mxu0 %v422
    %2324 = vmatpush.msra.mxu0 %v419
    %2325 = vmatpush.msra.mxu0 %v416
    %2326 = vmatpush.msra.mxu0 %v413
    %2327 = vmatpush.msra.mxu0 %v410
    %2328 = vmatpush.msra.mxu0 %v407
    %2329 = vmatpush.msra.mxu0 %v404
    %2330 = vmatpush.msra.mxu0 %v401
    %2331 = vmatpush.msra.mxu0 %v398
    %2332 = vmatpush.msra.mxu0 %v395
    %2333 = vmatpush.msra.mxu0 %v392
    %2334 = vmatpush.msra.mxu0 %v389
    %2335 = vmatpush.msra.mxu0 %v386
    %2336 = vmatpush.msra.mxu0 %v383
    %2337 = vmatmul.f32.gmra.mxu0 %v2151
    %v2338 = vpop.f32.mrf.mxu0
    %v2339 = vadd.f32 0.0, %v2338
    %2340 = vdwg.mxu0
    %2341 = vmatpush.msra.mxu0 %v429
    %2342 = vmatpush.msra.mxu0 %v426
    %2343 = vmatpush.msra.mxu0 %v423
    %2344 = vmatpush.msra.mxu0 %v420
    %2345 = vmatpush.msra.mxu0 %v417
    %2346 = vmatpush.msra.mxu0 %v414
    %2347 = vmatpush.msra.mxu0 %v411
    %2348 = vmatpush.msra.mxu0 %v408
    %2349 = vmatpush.msra.mxu0 %v405
    %2350 = vmatpush.msra.mxu0 %v402
    %2351 = vmatpush.msra.mxu0 %v399
    %2352 = vmatpush.msra.mxu0 %v396
    %2353 = vmatpush.msra.mxu0 %v393
    %2354 = vmatpush.msra.mxu0 %v390
    %2355 = vmatpush.msra.mxu0 %v387
    %2356 = vmatpush.msra.mxu0 %v384
    %2357 = vmatmul.f32.gmra.mxu0 %v2151
    %v2358 = vpop.f32.mrf.mxu0
    %v2359 = vadd.f32 0.0, %v2358
    %2360 = vdwg.mxu0
    %2361 = vmatpush.msra.mxu0 %v430
    %2362 = vmatpush.msra.mxu0 %v427
    %2363 = vmatpush.msra.mxu0 %v424
    %2364 = vmatpush.msra.mxu0 %v421
    %2365 = vmatpush.msra.mxu0 %v418
    %2366 = vmatpush.msra.mxu0 %v415
    %2367 = vmatpush.msra.mxu0 %v412
    %2368 = vmatpush.msra.mxu0 %v409
    %2369 = vmatpush.msra.mxu0 %v406
    %2370 = vmatpush.msra.mxu0 %v403
    %2371 = vmatpush.msra.mxu0 %v400
    %2372 = vmatpush.msra.mxu0 %v397
    %2373 = vmatpush.msra.mxu0 %v394
    %2374 = vmatpush.msra.mxu0 %v391
    %2375 = vmatpush.msra.mxu0 %v388
    %2376 = vmatpush.msra.mxu0 %v385
    %2377 = vmatmul.f32.gmra.mxu0 %v2151
    %v2378 = vpop.f32.mrf.mxu0
    %v2379 = vadd.f32 0.0, %v2378
    %2380 = vdwg.mxu0
    %v2381 = vadd.f32 %v559, %v2339
    %v2382 = vxor.u32 %v2381, 2147483648
    %v2383 = vmul.f32 %v2382, 1.442695
    %v2384 = vpow.pop %v2383
    %v2385 = vadd.f32 %v2384, 1.0
    %v2386 = vrcp.pop %v2385
    %v2387 = vmul.f32 %v2385, %v2386
    %v2388 = vsub.f32 1.0, %v2387
    %v2389 = vmul.f32 %v2386, %v2388
    %v2390 = vadd.f32 %v2386, %v2389
    %vm2391 = vweird.f32 %v2385
    %vm2392 = vweird.f32 %v2386
    %vm2393 = vmor %vm2391, %vm2392
    %v2394 = vsel %vm2393, %v2386, %v2390
    %v2395 = vand.u32 2147483647, %v2385
    %vm2396 = vcmp.eq.f32.partialorder %v2395, 8.507059e+37
    %v2397 = vand.u32 %v2385, 2147483648
    %v2398 = vor.u32 1.1754944e-38, %v2397
    %v2399 = vsel %vm2396, %v2398, %v2394
    %v2400 = vmul.f32 1.0, %v2399
    %v2401 = vadd.f32 %v600, %v2359
    %v2402 = vxor.u32 %v2401, 2147483648
    %v2403 = vmul.f32 %v2402, 1.442695
    %v2404 = vpow.pop %v2403
    %v2405 = vadd.f32 %v2404, 1.0
    %v2406 = vrcp.pop %v2405
    %v2407 = vmul.f32 %v2405, %v2406
    %v2408 = vsub.f32 1.0, %v2407
    %v2409 = vmul.f32 %v2406, %v2408
    %v2410 = vadd.f32 %v2406, %v2409
    %vm2411 = vweird.f32 %v2405
    %vm2412 = vweird.f32 %v2406
    %vm2413 = vmor %vm2411, %vm2412
    %v2414 = vsel %vm2413, %v2406, %v2410
    %v2415 = vand.u32 2147483647, %v2405
    %vm2416 = vcmp.eq.f32.partialorder %v2415, 8.507059e+37
    %v2417 = vand.u32 %v2405, 2147483648
    %v2418 = vor.u32 1.1754944e-38, %v2417
    %v2419 = vsel %vm2416, %v2418, %v2414
    %v2420 = vmul.f32 1.0, %v2419
    %v2421 = vadd.f32 %v2379, %v747
    %v2422 = vmul.f32 %v2400, %v2421
    %v2423 = vadd.f32 %v641, %v2422
    %v2424 = vtanh.pop %v2423
    %v2425 = vsub.f32 1.0, %v2420
    %v2426 = vmul.f32 %v2425, %v2424
    %v2427 = vmul.f32 %v2420, %v2151
    %v2428 = vadd.f32 %v2426, %v2427
    %2429 = vmatpush.msra.mxu0 %v380
    %2430 = vmatpush.msra.mxu0 %v377
    %2431 = vmatpush.msra.mxu0 %v374
    %2432 = vmatpush.msra.mxu0 %v371
    %2433 = vmatpush.msra.mxu0 %v368
    %2434 = vmatpush.msra.mxu0 %v365
    %2435 = vmatpush.msra.mxu0 %v362
    %2436 = vmatpush.msra.mxu0 %v359
    %2437 = vmatpush.msra.mxu0 %v356
    %2438 = vmatpush.msra.mxu0 %v353
    %2439 = vmatpush.msra.mxu0 %v350
    %2440 = vmatpush.msra.mxu0 %v347
    %2441 = vmatpush.msra.mxu0 %v344
    %2442 = vmatpush.msra.mxu0 %v341
    %2443 = vmatpush.msra.mxu0 %v338
    %2444 = vmatpush.msra.mxu0 %v335
    %2445 = vmatmul.f32.gmra.mxu0 %v2428
    %v2446 = vpop.f32.mrf.mxu0
    %v2447 = vadd.f32 %v758, %v2446
    %2448 = vdwg.mxu0
    %2449 = vmatpush.msra.mxu0 %v381
    %2450 = vmatpush.msra.mxu0 %v378
    %2451 = vmatpush.msra.mxu0 %v375
    %2452 = vmatpush.msra.mxu0 %v372
    %2453 = vmatpush.msra.mxu0 %v369
    %2454 = vmatpush.msra.mxu0 %v366
    %2455 = vmatpush.msra.mxu0 %v363
    %2456 = vmatpush.msra.mxu0 %v360
    %2457 = vmatpush.msra.mxu0 %v357
    %2458 = vmatpush.msra.mxu0 %v354
    %2459 = vmatpush.msra.mxu0 %v351
    %2460 = vmatpush.msra.mxu0 %v348
    %2461 = vmatpush.msra.mxu0 %v345
    %2462 = vmatpush.msra.mxu0 %v342
    %2463 = vmatpush.msra.mxu0 %v339
    %2464 = vmatpush.msra.mxu0 %v336
    %2465 = vmatmul.f32.gmra.mxu0 %v2428
    %v2466 = vpop.f32.mrf.mxu0
    %v2467 = vadd.f32 %v759, %v2466
    %2468 = vdwg.mxu0
    %2469 = vmatpush.msra.mxu0 %v382
    %2470 = vmatpush.msra.mxu0 %v379
    %2471 = vmatpush.msra.mxu0 %v376
    %2472 = vmatpush.msra.mxu0 %v373
    %2473 = vmatpush.msra.mxu0 %v370
    %2474 = vmatpush.msra.mxu0 %v367
    %2475 = vmatpush.msra.mxu0 %v364
    %2476 = vmatpush.msra.mxu0 %v361
    %2477 = vmatpush.msra.mxu0 %v358
    %2478 = vmatpush.msra.mxu0 %v355
    %2479 = vmatpush.msra.mxu0 %v352
    %2480 = vmatpush.msra.mxu0 %v349
    %2481 = vmatpush.msra.mxu0 %v346
    %2482 = vmatpush.msra.mxu0 %v343
    %2483 = vmatpush.msra.mxu0 %v340
    %2484 = vmatpush.msra.mxu0 %v337
    %2485 = vmatmul.f32.gmra.mxu0 %v2428
    %v2486 = vpop.f32.mrf.mxu0
    %v2487 = vadd.f32 %v760, %v2486
    %2488 = vdwg.mxu0
    %2489 = vmatpush.msra.mxu0 %v476
    %2490 = vmatpush.msra.mxu0 %v473
    %2491 = vmatpush.msra.mxu0 %v470
    %2492 = vmatpush.msra.mxu0 %v467
    %2493 = vmatpush.msra.mxu0 %v464
    %2494 = vmatpush.msra.mxu0 %v461
    %2495 = vmatpush.msra.mxu0 %v458
    %2496 = vmatpush.msra.mxu0 %v455
    %2497 = vmatpush.msra.mxu0 %v452
    %2498 = vmatpush.msra.mxu0 %v449
    %2499 = vmatpush.msra.mxu0 %v446
    %2500 = vmatpush.msra.mxu0 %v443
    %2501 = vmatpush.msra.mxu0 %v440
    %2502 = vmatpush.msra.mxu0 %v437
    %2503 = vmatpush.msra.mxu0 %v434
    %2504 = vmatpush.msra.mxu0 %v431
    %2505 = vmatmul.f32.gmra.mxu0 %v2319
    %v2506 = vpop.f32.mrf.mxu0
    %v2507 = vadd.f32 0.0, %v2506
    %2508 = vdwg.mxu0
    %2509 = vmatpush.msra.mxu0 %v477
    %2510 = vmatpush.msra.mxu0 %v474
    %2511 = vmatpush.msra.mxu0 %v471
    %2512 = vmatpush.msra.mxu0 %v468
    %2513 = vmatpush.msra.mxu0 %v465
    %2514 = vmatpush.msra.mxu0 %v462
    %2515 = vmatpush.msra.mxu0 %v459
    %2516 = vmatpush.msra.mxu0 %v456
    %2517 = vmatpush.msra.mxu0 %v453
    %2518 = vmatpush.msra.mxu0 %v450
    %2519 = vmatpush.msra.mxu0 %v447
    %2520 = vmatpush.msra.mxu0 %v444
    %2521 = vmatpush.msra.mxu0 %v441
    %2522 = vmatpush.msra.mxu0 %v438
    %2523 = vmatpush.msra.mxu0 %v435
    %2524 = vmatpush.msra.mxu0 %v432
    %2525 = vmatmul.f32.gmra.mxu0 %v2319
    %v2526 = vpop.f32.mrf.mxu0
    %v2527 = vadd.f32 0.0, %v2526
    %2528 = vdwg.mxu0
    %2529 = vmatpush.msra.mxu0 %v478
    %2530 = vmatpush.msra.mxu0 %v475
    %2531 = vmatpush.msra.mxu0 %v472
    %2532 = vmatpush.msra.mxu0 %v469
    %2533 = vmatpush.msra.mxu0 %v466
    %2534 = vmatpush.msra.mxu0 %v463
    %2535 = vmatpush.msra.mxu0 %v460
    %2536 = vmatpush.msra.mxu0 %v457
    %2537 = vmatpush.msra.mxu0 %v454
    %2538 = vmatpush.msra.mxu0 %v451
    %2539 = vmatpush.msra.mxu0 %v448
    %2540 = vmatpush.msra.mxu0 %v445
    %2541 = vmatpush.msra.mxu0 %v442
    %2542 = vmatpush.msra.mxu0 %v439
    %2543 = vmatpush.msra.mxu0 %v436
    %2544 = vmatpush.msra.mxu0 %v433
    %2545 = vmatmul.f32.gmra.mxu0 %v2319
    %v2546 = vpop.f32.mrf.mxu0
    %v2547 = vadd.f32 0.0, %v2546
    %2548 = vdwg.mxu0
    %v2549 = vadd.f32 %v2447, %v2507
    %v2550 = vxor.u32 %v2549, 2147483648
    %v2551 = vmul.f32 %v2550, 1.442695
    %v2552 = vpow.pop %v2551
    %v2553 = vadd.f32 %v2552, 1.0
    %v2554 = vrcp.pop %v2553
    %v2555 = vmul.f32 %v2553, %v2554
    %v2556 = vsub.f32 1.0, %v2555
    %v2557 = vmul.f32 %v2554, %v2556
    %v2558 = vadd.f32 %v2554, %v2557
    %vm2559 = vweird.f32 %v2553
    %vm2560 = vweird.f32 %v2554
    %vm2561 = vmor %vm2559, %vm2560
    %v2562 = vsel %vm2561, %v2554, %v2558
    %v2563 = vand.u32 2147483647, %v2553
    %vm2564 = vcmp.eq.f32.partialorder %v2563, 8.507059e+37
    %v2565 = vand.u32 %v2553, 2147483648
    %v2566 = vor.u32 1.1754944e-38, %v2565
    %v2567 = vsel %vm2564, %v2566, %v2562
    %v2568 = vmul.f32 1.0, %v2567
    %v2569 = vadd.f32 %v2467, %v2527
    %v2570 = vxor.u32 %v2569, 2147483648
    %v2571 = vmul.f32 %v2570, 1.442695
    %v2572 = vpow.pop %v2571
    %v2573 = vadd.f32 %v2572, 1.0
    %v2574 = vrcp.pop %v2573
    %v2575 = vmul.f32 %v2573, %v2574
    %v2576 = vsub.f32 1.0, %v2575
    %v2577 = vmul.f32 %v2574, %v2576
    %v2578 = vadd.f32 %v2574, %v2577
    %vm2579 = vweird.f32 %v2573
    %vm2580 = vweird.f32 %v2574
    %vm2581 = vmor %vm2579, %vm2580
    %v2582 = vsel %vm2581, %v2574, %v2578
    %v2583 = vand.u32 2147483647, %v2573
    %vm2584 = vcmp.eq.f32.partialorder %v2583, 8.507059e+37
    %v2585 = vand.u32 %v2573, 2147483648
    %v2586 = vor.u32 1.1754944e-38, %v2585
    %v2587 = vsel %vm2584, %v2586, %v2582
    %v2588 = vmul.f32 1.0, %v2587
    %v2589 = vadd.f32 %v2547, %v925
    %v2590 = vmul.f32 %v2568, %v2589
    %v2591 = vadd.f32 %v2487, %v2590
    %v2592 = vtanh.pop %v2591
    %v2593 = vsub.f32 1.0, %v2588
    %v2594 = vmul.f32 %v2593, %v2592
    %v2595 = vmul.f32 %v2588, %v2319
    %v2596 = vadd.f32 %v2594, %v2595
    %v2597 = vadd.f32 %v2320, %v2596
    %2598 = vmatpush.msra.mxu0 %v428
    %2599 = vmatpush.msra.mxu0 %v425
    %2600 = vmatpush.msra.mxu0 %v422
    %2601 = vmatpush.msra.mxu0 %v419
    %2602 = vmatpush.msra.mxu0 %v416
    %2603 = vmatpush.msra.mxu0 %v413
    %2604 = vmatpush.msra.mxu0 %v410
    %2605 = vmatpush.msra.mxu0 %v407
    %2606 = vmatpush.msra.mxu0 %v404
    %2607 = vmatpush.msra.mxu0 %v401
    %2608 = vmatpush.msra.mxu0 %v398
    %2609 = vmatpush.msra.mxu0 %v395
    %2610 = vmatpush.msra.mxu0 %v392
    %2611 = vmatpush.msra.mxu0 %v389
    %2612 = vmatpush.msra.mxu0 %v386
    %2613 = vmatpush.msra.mxu0 %v383
    %2614 = vmatmul.f32.gmra.mxu0 %v2428
    %v2615 = vpop.f32.mrf.mxu0
    %v2616 = vadd.f32 0.0, %v2615
    %2617 = vdwg.mxu0
    %2618 = vmatpush.msra.mxu0 %v429
    %2619 = vmatpush.msra.mxu0 %v426
    %2620 = vmatpush.msra.mxu0 %v423
    %2621 = vmatpush.msra.mxu0 %v420
    %2622 = vmatpush.msra.mxu0 %v417
    %2623 = vmatpush.msra.mxu0 %v414
    %2624 = vmatpush.msra.mxu0 %v411
    %2625 = vmatpush.msra.mxu0 %v408
    %2626 = vmatpush.msra.mxu0 %v405
    %2627 = vmatpush.msra.mxu0 %v402
    %2628 = vmatpush.msra.mxu0 %v399
    %2629 = vmatpush.msra.mxu0 %v396
    %2630 = vmatpush.msra.mxu0 %v393
    %2631 = vmatpush.msra.mxu0 %v390
    %2632 = vmatpush.msra.mxu0 %v387
    %2633 = vmatpush.msra.mxu0 %v384
    %2634 = vmatmul.f32.gmra.mxu0 %v2428
    %v2635 = vpop.f32.mrf.mxu0
    %v2636 = vadd.f32 0.0, %v2635
    %2637 = vdwg.mxu0
    %2638 = vmatpush.msra.mxu0 %v430
    %2639 = vmatpush.msra.mxu0 %v427
    %2640 = vmatpush.msra.mxu0 %v424
    %2641 = vmatpush.msra.mxu0 %v421
    %2642 = vmatpush.msra.mxu0 %v418
    %2643 = vmatpush.msra.mxu0 %v415
    %2644 = vmatpush.msra.mxu0 %v412
    %2645 = vmatpush.msra.mxu0 %v409
    %2646 = vmatpush.msra.mxu0 %v406
    %2647 = vmatpush.msra.mxu0 %v403
    %2648 = vmatpush.msra.mxu0 %v400
    %2649 = vmatpush.msra.mxu0 %v397
    %2650 = vmatpush.msra.mxu0 %v394
    %2651 = vmatpush.msra.mxu0 %v391
    %2652 = vmatpush.msra.mxu0 %v388
    %2653 = vmatpush.msra.mxu0 %v385
    %2654 = vmatmul.f32.gmra.mxu0 %v2428
    %v2655 = vpop.f32.mrf.mxu0
    %v2656 = vadd.f32 0.0, %v2655
    %2657 = vdwg.mxu0
    %v2658 = vadd.f32 %v562, %v2616
    %v2659 = vxor.u32 %v2658, 2147483648
    %v2660 = vmul.f32 %v2659, 1.442695
    %v2661 = vpow.pop %v2660
    %v2662 = vadd.f32 %v2661, 1.0
    %v2663 = vrcp.pop %v2662
    %v2664 = vmul.f32 %v2662, %v2663
    %v2665 = vsub.f32 1.0, %v2664
    %v2666 = vmul.f32 %v2663, %v2665
    %v2667 = vadd.f32 %v2663, %v2666
    %vm2668 = vweird.f32 %v2662
    %vm2669 = vweird.f32 %v2663
    %vm2670 = vmor %vm2668, %vm2669
    %v2671 = vsel %vm2670, %v2663, %v2667
    %v2672 = vand.u32 2147483647, %v2662
    %vm2673 = vcmp.eq.f32.partialorder %v2672, 8.507059e+37
    %v2674 = vand.u32 %v2662, 2147483648
    %v2675 = vor.u32 1.1754944e-38, %v2674
    %v2676 = vsel %vm2673, %v2675, %v2671
    %v2677 = vmul.f32 1.0, %v2676
    %v2678 = vadd.f32 %v603, %v2636
    %v2679 = vxor.u32 %v2678, 2147483648
    %v2680 = vmul.f32 %v2679, 1.442695
    %v2681 = vpow.pop %v2680
    %v2682 = vadd.f32 %v2681, 1.0
    %v2683 = vrcp.pop %v2682
    %v2684 = vmul.f32 %v2682, %v2683
    %v2685 = vsub.f32 1.0, %v2684
    %v2686 = vmul.f32 %v2683, %v2685
    %v2687 = vadd.f32 %v2683, %v2686
    %vm2688 = vweird.f32 %v2682
    %vm2689 = vweird.f32 %v2683
    %vm2690 = vmor %vm2688, %vm2689
    %v2691 = vsel %vm2690, %v2683, %v2687
    %v2692 = vand.u32 2147483647, %v2682
    %vm2693 = vcmp.eq.f32.partialorder %v2692, 8.507059e+37
    %v2694 = vand.u32 %v2682, 2147483648
    %v2695 = vor.u32 1.1754944e-38, %v2694
    %v2696 = vsel %vm2693, %v2695, %v2691
    %v2697 = vmul.f32 1.0, %v2696
    %v2698 = vadd.f32 %v2656, %v747
    %v2699 = vmul.f32 %v2677, %v2698
    %v2700 = vadd.f32 %v644, %v2699
    %v2701 = vtanh.pop %v2700
    %v2702 = vsub.f32 1.0, %v2697
    %v2703 = vmul.f32 %v2702, %v2701
    %v2704 = vmul.f32 %v2697, %v2428
    %v2705 = vadd.f32 %v2703, %v2704
    %2706 = vmatpush.msra.mxu0 %v380
    %2707 = vmatpush.msra.mxu0 %v377
    %2708 = vmatpush.msra.mxu0 %v374
    %2709 = vmatpush.msra.mxu0 %v371
    %2710 = vmatpush.msra.mxu0 %v368
    %2711 = vmatpush.msra.mxu0 %v365
    %2712 = vmatpush.msra.mxu0 %v362
    %2713 = vmatpush.msra.mxu0 %v359
    %2714 = vmatpush.msra.mxu0 %v356
    %2715 = vmatpush.msra.mxu0 %v353
    %2716 = vmatpush.msra.mxu0 %v350
    %2717 = vmatpush.msra.mxu0 %v347
    %2718 = vmatpush.msra.mxu0 %v344
    %2719 = vmatpush.msra.mxu0 %v341
    %2720 = vmatpush.msra.mxu0 %v338
    %2721 = vmatpush.msra.mxu0 %v335
    %2722 = vmatmul.f32.gmra.mxu0 %v2705
    %v2723 = vpop.f32.mrf.mxu0
    %v2724 = vadd.f32 %v758, %v2723
    %2725 = vdwg.mxu0
    %2726 = vmatpush.msra.mxu0 %v381
    %2727 = vmatpush.msra.mxu0 %v378
    %2728 = vmatpush.msra.mxu0 %v375
    %2729 = vmatpush.msra.mxu0 %v372
    %2730 = vmatpush.msra.mxu0 %v369
    %2731 = vmatpush.msra.mxu0 %v366
    %2732 = vmatpush.msra.mxu0 %v363
    %2733 = vmatpush.msra.mxu0 %v360
    %2734 = vmatpush.msra.mxu0 %v357
    %2735 = vmatpush.msra.mxu0 %v354
    %2736 = vmatpush.msra.mxu0 %v351
    %2737 = vmatpush.msra.mxu0 %v348
    %2738 = vmatpush.msra.mxu0 %v345
    %2739 = vmatpush.msra.mxu0 %v342
    %2740 = vmatpush.msra.mxu0 %v339
    %2741 = vmatpush.msra.mxu0 %v336
    %2742 = vmatmul.f32.gmra.mxu0 %v2705
    %v2743 = vpop.f32.mrf.mxu0
    %v2744 = vadd.f32 %v759, %v2743
    %2745 = vdwg.mxu0
    %2746 = vmatpush.msra.mxu0 %v382
    %2747 = vmatpush.msra.mxu0 %v379
    %2748 = vmatpush.msra.mxu0 %v376
    %2749 = vmatpush.msra.mxu0 %v373
    %2750 = vmatpush.msra.mxu0 %v370
    %2751 = vmatpush.msra.mxu0 %v367
    %2752 = vmatpush.msra.mxu0 %v364
    %2753 = vmatpush.msra.mxu0 %v361
    %2754 = vmatpush.msra.mxu0 %v358
    %2755 = vmatpush.msra.mxu0 %v355
    %2756 = vmatpush.msra.mxu0 %v352
    %2757 = vmatpush.msra.mxu0 %v349
    %2758 = vmatpush.msra.mxu0 %v346
    %2759 = vmatpush.msra.mxu0 %v343
    %2760 = vmatpush.msra.mxu0 %v340
    %2761 = vmatpush.msra.mxu0 %v337
    %2762 = vmatmul.f32.gmra.mxu0 %v2705
    %v2763 = vpop.f32.mrf.mxu0
    %v2764 = vadd.f32 %v760, %v2763
    %2765 = vdwg.mxu0
    %2766 = vmatpush.msra.mxu0 %v476
    %2767 = vmatpush.msra.mxu0 %v473
    %2768 = vmatpush.msra.mxu0 %v470
    %2769 = vmatpush.msra.mxu0 %v467
    %2770 = vmatpush.msra.mxu0 %v464
    %2771 = vmatpush.msra.mxu0 %v461
    %2772 = vmatpush.msra.mxu0 %v458
    %2773 = vmatpush.msra.mxu0 %v455
    %2774 = vmatpush.msra.mxu0 %v452
    %2775 = vmatpush.msra.mxu0 %v449
    %2776 = vmatpush.msra.mxu0 %v446
    %2777 = vmatpush.msra.mxu0 %v443
    %2778 = vmatpush.msra.mxu0 %v440
    %2779 = vmatpush.msra.mxu0 %v437
    %2780 = vmatpush.msra.mxu0 %v434
    %2781 = vmatpush.msra.mxu0 %v431
    %2782 = vmatmul.f32.gmra.mxu0 %v2596
    %v2783 = vpop.f32.mrf.mxu0
    %v2784 = vadd.f32 0.0, %v2783
    %2785 = vdwg.mxu0
    %2786 = vmatpush.msra.mxu0 %v477
    %2787 = vmatpush.msra.mxu0 %v474
    %2788 = vmatpush.msra.mxu0 %v471
    %2789 = vmatpush.msra.mxu0 %v468
    %2790 = vmatpush.msra.mxu0 %v465
    %2791 = vmatpush.msra.mxu0 %v462
    %2792 = vmatpush.msra.mxu0 %v459
    %2793 = vmatpush.msra.mxu0 %v456
    %2794 = vmatpush.msra.mxu0 %v453
    %2795 = vmatpush.msra.mxu0 %v450
    %2796 = vmatpush.msra.mxu0 %v447
    %2797 = vmatpush.msra.mxu0 %v444
    %2798 = vmatpush.msra.mxu0 %v441
    %2799 = vmatpush.msra.mxu0 %v438
    %2800 = vmatpush.msra.mxu0 %v435
    %2801 = vmatpush.msra.mxu0 %v432
    %2802 = vmatmul.f32.gmra.mxu0 %v2596
    %v2803 = vpop.f32.mrf.mxu0
    %v2804 = vadd.f32 0.0, %v2803
    %2805 = vdwg.mxu0
    %2806 = vmatpush.msra.mxu0 %v478
    %2807 = vmatpush.msra.mxu0 %v475
    %2808 = vmatpush.msra.mxu0 %v472
    %2809 = vmatpush.msra.mxu0 %v469
    %2810 = vmatpush.msra.mxu0 %v466
    %2811 = vmatpush.msra.mxu0 %v463
    %2812 = vmatpush.msra.mxu0 %v460
    %2813 = vmatpush.msra.mxu0 %v457
    %2814 = vmatpush.msra.mxu0 %v454
    %2815 = vmatpush.msra.mxu0 %v451
    %2816 = vmatpush.msra.mxu0 %v448
    %2817 = vmatpush.msra.mxu0 %v445
    %2818 = vmatpush.msra.mxu0 %v442
    %2819 = vmatpush.msra.mxu0 %v439
    %2820 = vmatpush.msra.mxu0 %v436
    %2821 = vmatpush.msra.mxu0 %v433
    %2822 = vmatmul.f32.gmra.mxu0 %v2596
    %v2823 = vpop.f32.mrf.mxu0
    %v2824 = vadd.f32 0.0, %v2823
    %2825 = vdwg.mxu0
    %v2826 = vadd.f32 %v2724, %v2784
    %v2827 = vxor.u32 %v2826, 2147483648
    %v2828 = vmul.f32 %v2827, 1.442695
    %v2829 = vpow.pop %v2828
    %v2830 = vadd.f32 %v2829, 1.0
    %v2831 = vrcp.pop %v2830
    %v2832 = vmul.f32 %v2830, %v2831
    %v2833 = vsub.f32 1.0, %v2832
    %v2834 = vmul.f32 %v2831, %v2833
    %v2835 = vadd.f32 %v2831, %v2834
    %vm2836 = vweird.f32 %v2830
    %vm2837 = vweird.f32 %v2831
    %vm2838 = vmor %vm2836, %vm2837
    %v2839 = vsel %vm2838, %v2831, %v2835
    %v2840 = vand.u32 2147483647, %v2830
    %vm2841 = vcmp.eq.f32.partialorder %v2840, 8.507059e+37
    %v2842 = vand.u32 %v2830, 2147483648
    %v2843 = vor.u32 1.1754944e-38, %v2842
    %v2844 = vsel %vm2841, %v2843, %v2839
    %v2845 = vmul.f32 1.0, %v2844
    %v2846 = vadd.f32 %v2744, %v2804
    %v2847 = vxor.u32 %v2846, 2147483648
    %v2848 = vmul.f32 %v2847, 1.442695
    %v2849 = vpow.pop %v2848
    %v2850 = vadd.f32 %v2849, 1.0
    %v2851 = vrcp.pop %v2850
    %v2852 = vmul.f32 %v2850, %v2851
    %v2853 = vsub.f32 1.0, %v2852
    %v2854 = vmul.f32 %v2851, %v2853
    %v2855 = vadd.f32 %v2851, %v2854
    %vm2856 = vweird.f32 %v2850
    %vm2857 = vweird.f32 %v2851
    %vm2858 = vmor %vm2856, %vm2857
    %v2859 = vsel %vm2858, %v2851, %v2855
    %v2860 = vand.u32 2147483647, %v2850
    %vm2861 = vcmp.eq.f32.partialorder %v2860, 8.507059e+37
    %v2862 = vand.u32 %v2850, 2147483648
    %v2863 = vor.u32 1.1754944e-38, %v2862
    %v2864 = vsel %vm2861, %v2863, %v2859
    %v2865 = vmul.f32 1.0, %v2864
    %v2866 = vadd.f32 %v2824, %v925
    %v2867 = vmul.f32 %v2845, %v2866
    %v2868 = vadd.f32 %v2764, %v2867
    %v2869 = vtanh.pop %v2868
    %v2870 = vsub.f32 1.0, %v2865
    %v2871 = vmul.f32 %v2870, %v2869
    %v2872 = vmul.f32 %v2865, %v2596
    %v2873 = vadd.f32 %v2871, %v2872
    %v2874 = vadd.f32 %v2597, %v2873
    %v2875 = vld [vmem:[%s1] sm:$0xff]
    %v2876 = vld [vmem:[#allocation15] sm:$0xff]
    %v2877 = vld [vmem:[#allocation15 + $0x8] sm:$0xff]
    %v2878 = vld [vmem:[#allocation15 + $0x10] sm:$0xff]
    %v2879 = vld [vmem:[#allocation15 + $0x18] sm:$0xff]
    %v2880 = vld [vmem:[#allocation15 + $0x20] sm:$0xff]
    %v2881 = vld [vmem:[#allocation15 + $0x28] sm:$0xff]
    %v2882 = vld [vmem:[#allocation15 + $0x30] sm:$0xff]
    %v2883 = vld [vmem:[#allocation15 + $0x38] sm:$0xff]
    %v2884 = vld [vmem:[#allocation15 + $0x40] sm:$0xff]
    %v2885 = vld [vmem:[#allocation15 + $0x48] sm:$0xff]
    %v2886 = vld [vmem:[#allocation15 + $0x50] sm:$0xff]
    %v2887 = vld [vmem:[#allocation15 + $0x58] sm:$0xff]
    %v2888 = vld [vmem:[#allocation15 + $0x60] sm:$0xff]
    %v2889 = vld [vmem:[#allocation15 + $0x68] sm:$0xff]
    %v2890 = vld [vmem:[#allocation15 + $0x70] sm:$0xff]
    %v2891 = vld [vmem:[#allocation15 + $0x78] sm:$0xff]
    %v2892 = vld [vmem:[#allocation15 + $0x80] sm:$0xff]
    %v2893 = vld [vmem:[#allocation15 + $0x88] sm:$0xff]
    %v2894 = vld [vmem:[#allocation15 + $0x90] sm:$0xff]
    %v2895 = vld [vmem:[#allocation15 + $0x98] sm:$0xff]
    %v2896 = vld [vmem:[#allocation15 + $0xa0] sm:$0xff]
    %v2897 = vld [vmem:[#allocation15 + $0xa8] sm:$0xff]
    %v2898 = vld [vmem:[#allocation15 + $0xb0] sm:$0xff]
    %v2899 = vld [vmem:[#allocation15 + $0xb8] sm:$0xff]
    %v2900 = vld [vmem:[#allocation15 + $0xc0] sm:$0xff]
    %v2901 = vld [vmem:[#allocation15 + $0xc8] sm:$0xff]
    %v2902 = vld [vmem:[#allocation15 + $0xd0] sm:$0xff]
    %v2903 = vld [vmem:[#allocation15 + $0xd8] sm:$0xff]
    %v2904 = vld [vmem:[#allocation15 + $0xe0] sm:$0xff]
    %v2905 = vld [vmem:[#allocation15 + $0xe8] sm:$0xff]
    %v2906 = vld [vmem:[#allocation15 + $0xf0] sm:$0xff]
    %v2907 = vld [vmem:[#allocation15 + $0xf8] sm:$0xff]
    %v2908 = vld [vmem:[#allocation15 + $0x100] sm:$0xff]
    %v2909 = vld [vmem:[#allocation15 + $0x108] sm:$0xff]
    %v2910 = vld [vmem:[#allocation15 + $0x110] sm:$0xff]
    %v2911 = vld [vmem:[#allocation15 + $0x118] sm:$0xff]
    %v2912 = vld [vmem:[#allocation15 + $0x120] sm:$0xff]
    %v2913 = vld [vmem:[#allocation15 + $0x128] sm:$0xff]
    %v2914 = vld [vmem:[#allocation15 + $0x130] sm:$0xff]
    %v2915 = vld [vmem:[#allocation15 + $0x138] sm:$0xff]
    %v2916 = vld [vmem:[#allocation15 + $0x140] sm:$0xff]
    %v2917 = vld [vmem:[#allocation15 + $0x148] sm:$0xff]
    %v2918 = vld [vmem:[#allocation15 + $0x150] sm:$0xff]
    %v2919 = vld [vmem:[#allocation15 + $0x158] sm:$0xff]
    %v2920 = vld [vmem:[#allocation15 + $0x160] sm:$0xff]
    %v2921 = vld [vmem:[#allocation15 + $0x168] sm:$0xff]
    %v2922 = vld [vmem:[#allocation15 + $0x170] sm:$0xff]
    %v2923 = vld [vmem:[#allocation15 + $0x178] sm:$0xff]
    %v2924 = vld [vmem:[#allocation15 + $0x180] sm:$0xff]
    %v2925 = vld [vmem:[#allocation15 + $0x188] sm:$0xff]
    %v2926 = vld [vmem:[#allocation15 + $0x190] sm:$0xff]
    %v2927 = vld [vmem:[#allocation15 + $0x198] sm:$0xff]
    %v2928 = vld [vmem:[#allocation15 + $0x1a0] sm:$0xff]
    %v2929 = vld [vmem:[#allocation15 + $0x1a8] sm:$0xff]
    %v2930 = vld [vmem:[#allocation15 + $0x1b0] sm:$0xff]
    %v2931 = vld [vmem:[#allocation15 + $0x1b8] sm:$0xff]
    %v2932 = vld [vmem:[#allocation15 + $0x1c0] sm:$0xff]
    %v2933 = vld [vmem:[#allocation15 + $0x1c8] sm:$0xff]
    %v2934 = vld [vmem:[#allocation15 + $0x1d0] sm:$0xff]
    %v2935 = vld [vmem:[#allocation15 + $0x1d8] sm:$0xff]
    %v2936 = vld [vmem:[#allocation15 + $0x1e0] sm:$0xff]
    %v2937 = vld [vmem:[#allocation15 + $0x1e8] sm:$0xff]
    %v2938 = vld [vmem:[#allocation15 + $0x1f0] sm:$0xff]
    %v2939 = vld [vmem:[#allocation15 + $0x1f8] sm:$0xff]
    %v2940 = vld [vmem:[#allocation15 + $0x200] sm:$0xff]
    %v2941 = vld [vmem:[#allocation15 + $0x208] sm:$0xff]
    %v2942 = vld [vmem:[#allocation15 + $0x210] sm:$0xff]
    %v2943 = vld [vmem:[#allocation15 + $0x218] sm:$0xff]
    %v2944 = vld [vmem:[#allocation15 + $0x220] sm:$0xff]
    %v2945 = vld [vmem:[#allocation15 + $0x228] sm:$0xff]
    %v2946 = vld [vmem:[#allocation15 + $0x230] sm:$0xff]
    %v2947 = vld [vmem:[#allocation15 + $0x238] sm:$0xff]
    %v2948 = vld [vmem:[#allocation15 + $0x240] sm:$0xff]
    %v2949 = vld [vmem:[#allocation15 + $0x248] sm:$0xff]
    %v2950 = vld [vmem:[#allocation15 + $0x250] sm:$0xff]
    %v2951 = vld [vmem:[#allocation15 + $0x258] sm:$0xff]
    %v2952 = vld [vmem:[#allocation15 + $0x260] sm:$0xff]
    %v2953 = vld [vmem:[#allocation15 + $0x268] sm:$0xff]
    %v2954 = vld [vmem:[#allocation15 + $0x270] sm:$0xff]
    %v2955 = vld [vmem:[#allocation15 + $0x278] sm:$0xff]
    %v2956 = vld [vmem:[#allocation16] sm:$0x1f]
    %v2958 = vperm.slane %v2956, 0
    %v2959 = vperm.slane %v2956, 1
    %v2960 = vperm.slane %v2956, 2
    %v2961 = vperm.slane %v2956, 3
    %v2962 = vperm.slane %v2956, 4
    %2968 = vmatpush.msra.mxu0 %v2951
    %2969 = vmatpush.msra.mxu0 %v2946
    %2970 = vmatpush.msra.mxu0 %v2941
    %2971 = vmatpush.msra.mxu0 %v2936
    %2972 = vmatpush.msra.mxu0 %v2931
    %2973 = vmatpush.msra.mxu0 %v2926
    %2974 = vmatpush.msra.mxu0 %v2921
    %2975 = vmatpush.msra.mxu0 %v2916
    %2976 = vmatpush.msra.mxu0 %v2911
    %2977 = vmatpush.msra.mxu0 %v2906
    %2978 = vmatpush.msra.mxu0 %v2901
    %2979 = vmatpush.msra.mxu0 %v2896
    %2980 = vmatpush.msra.mxu0 %v2891
    %2981 = vmatpush.msra.mxu0 %v2886
    %2982 = vmatpush.msra.mxu0 %v2881
    %2983 = vmatpush.msra.mxu0 %v2876
    %2984 = vmatmul.f32.gmra.mxu0 %v2874
    %v2985 = vpop.f32.mrf.mxu0
    %v2986 = vadd.f32 %v2958, %v2985
    %2987 = vdwg.mxu0
    %2988 = vmatpush.msra.mxu0 %v2952
    %2989 = vmatpush.msra.mxu0 %v2947
    %2990 = vmatpush.msra.mxu0 %v2942
    %2991 = vmatpush.msra.mxu0 %v2937
    %2992 = vmatpush.msra.mxu0 %v2932
    %2993 = vmatpush.msra.mxu0 %v2927
    %2994 = vmatpush.msra.mxu0 %v2922
    %2995 = vmatpush.msra.mxu0 %v2917
    %2996 = vmatpush.msra.mxu0 %v2912
    %2997 = vmatpush.msra.mxu0 %v2907
    %2998 = vmatpush.msra.mxu0 %v2902
    %2999 = vmatpush.msra.mxu0 %v2897
    %3000 = vmatpush.msra.mxu0 %v2892
    %3001 = vmatpush.msra.mxu0 %v2887
    %3002 = vmatpush.msra.mxu0 %v2882
    %3003 = vmatpush.msra.mxu0 %v2877
    %3004 = vmatmul.f32.gmra.mxu0 %v2874
    %v3005 = vpop.f32.mrf.mxu0
    %v3006 = vadd.f32 %v2959, %v3005
    %3007 = vdwg.mxu0
    %3008 = vmatpush.msra.mxu0 %v2953
    %3009 = vmatpush.msra.mxu0 %v2948
    %3010 = vmatpush.msra.mxu0 %v2943
    %3011 = vmatpush.msra.mxu0 %v2938
    %3012 = vmatpush.msra.mxu0 %v2933
    %3013 = vmatpush.msra.mxu0 %v2928
    %3014 = vmatpush.msra.mxu0 %v2923
    %3015 = vmatpush.msra.mxu0 %v2918
    %3016 = vmatpush.msra.mxu0 %v2913
    %3017 = vmatpush.msra.mxu0 %v2908
    %3018 = vmatpush.msra.mxu0 %v2903
    %3019 = vmatpush.msra.mxu0 %v2898
    %3020 = vmatpush.msra.mxu0 %v2893
    %3021 = vmatpush.msra.mxu0 %v2888
    %3022 = vmatpush.msra.mxu0 %v2883
    %3023 = vmatpush.msra.mxu0 %v2878
    %3024 = vmatmul.f32.gmra.mxu0 %v2874
    %v3025 = vpop.f32.mrf.mxu0
    %v3026 = vadd.f32 %v2960, %v3025
    %3027 = vdwg.mxu0
    %3028 = vmatpush.msra.mxu0 %v2954
    %3029 = vmatpush.msra.mxu0 %v2949
    %3030 = vmatpush.msra.mxu0 %v2944
    %3031 = vmatpush.msra.mxu0 %v2939
    %3032 = vmatpush.msra.mxu0 %v2934
    %3033 = vmatpush.msra.mxu0 %v2929
    %3034 = vmatpush.msra.mxu0 %v2924
    %3035 = vmatpush.msra.mxu0 %v2919
    %3036 = vmatpush.msra.mxu0 %v2914
    %3037 = vmatpush.msra.mxu0 %v2909
    %3038 = vmatpush.msra.mxu0 %v2904
    %3039 = vmatpush.msra.mxu0 %v2899
    %3040 = vmatpush.msra.mxu0 %v2894
    %3041 = vmatpush.msra.mxu0 %v2889
    %3042 = vmatpush.msra.mxu0 %v2884
    %3043 = vmatpush.msra.mxu0 %v2879
    %3044 = vmatmul.f32.gmra.mxu0 %v2874
    %v3045 = vpop.f32.mrf.mxu0
    %v3046 = vadd.f32 %v2961, %v3045
    %3047 = vdwg.mxu0
    %3048 = vmatpush.msra.mxu0 %v2955
    %3049 = vmatpush.msra.mxu0 %v2950
    %3050 = vmatpush.msra.mxu0 %v2945
    %3051 = vmatpush.msra.mxu0 %v2940
    %3052 = vmatpush.msra.mxu0 %v2935
    %3053 = vmatpush.msra.mxu0 %v2930
    %3054 = vmatpush.msra.mxu0 %v2925
    %3055 = vmatpush.msra.mxu0 %v2920
    %3056 = vmatpush.msra.mxu0 %v2915
    %3057 = vmatpush.msra.mxu0 %v2910
    %3058 = vmatpush.msra.mxu0 %v2905
    %3059 = vmatpush.msra.mxu0 %v2900
    %3060 = vmatpush.msra.mxu0 %v2895
    %3061 = vmatpush.msra.mxu0 %v2890
    %3062 = vmatpush.msra.mxu0 %v2885
    %3063 = vmatpush.msra.mxu0 %v2880
    %3064 = vmatmul.f32.gmra.mxu0 %v2874
    %v3065 = vpop.f32.mrf.mxu0
    %v3066 = vadd.f32 %v2962, %v3065
    %3067 = vdwg.mxu0
    %3069 = vset.pattern.permute.xlu0 0
    %3070 = vperm.xlu0 %3069, %v2875
    %v3071 = vpop.permute.xlu0 %3070
    %v3073 = vmul.f32 %v2986, %v3071
    %v3074 = vmul.f32 %v3006, %v3071
    %v3075 = vmul.f32 %v3026, %v3071
    %v3076 = vmul.f32 %v3046, %v3071
    %v3077 = vmul.f32 %v3066, %v3071
    %v3078 = vrot.slane %v3073, 4
    %v3079 = vadd.f32 %v3073, %v3078
    %v3080 = vrot.slane %v3079, 2
    %v3081 = vadd.f32 %v3079, %v3080
    %v3082 = vrot.slane %v3081, 1
    %v3083 = vadd.f32 %v3081, %v3082
    %v3084 = vrot.slane %v3074, 4
    %v3085 = vadd.f32 %v3074, %v3084
    %v3086 = vrot.slane %v3085, 2
    %v3087 = vadd.f32 %v3085, %v3086
    %v3088 = vrot.slane %v3087, 1
    %v3089 = vadd.f32 %v3087, %v3088
    %v3090 = vrot.slane %v3075, 4
    %v3091 = vadd.f32 %v3075, %v3090
    %v3092 = vrot.slane %v3091, 2
    %v3093 = vadd.f32 %v3091, %v3092
    %v3094 = vrot.slane %v3093, 1
    %v3095 = vadd.f32 %v3093, %v3094
    %v3096 = vrot.slane %v3076, 4
    %v3097 = vadd.f32 %v3076, %v3096
    %v3098 = vrot.slane %v3097, 2
    %v3099 = vadd.f32 %v3097, %v3098
    %v3100 = vrot.slane %v3099, 1
    %v3101 = vadd.f32 %v3099, %v3100
    %v3102 = vrot.slane %v3077, 4
    %v3103 = vadd.f32 %v3077, %v3102
    %v3104 = vrot.slane %v3103, 2
    %v3105 = vadd.f32 %v3103, %v3104
    %v3106 = vrot.slane %v3105, 1
    %v3107 = vadd.f32 %v3105, %v3106
    %v3108 = vmul.f32 %v3083, 0.5
    %v3109 = vmul.f32 %v3089, 0.5
    %v3110 = vmul.f32 %v3095, 0.5
    %v3111 = vmul.f32 %v3101, 0.5
    %v3112 = vmul.f32 %v3107, 0.5
    %v3113 = vsub.f32 %v2986, %v3108
    %v3114 = vsub.f32 %v3006, %v3109
    %v3115 = vsub.f32 %v3026, %v3110
    %v3116 = vsub.f32 %v3046, %v3111
    %v3117 = vsub.f32 %v3066, %v3112
    %v3118 = vmul.f32 %v3113, %v3113
    %v3119 = vmul.f32 %v3114, %v3114
    %v3120 = vmul.f32 %v3115, %v3115
    %v3121 = vmul.f32 %v3116, %v3116
    %v3122 = vmul.f32 %v3117, %v3117
    %v3123 = vmul.f32 %v3118, %v3071
    %v3124 = vmul.f32 %v3119, %v3071
    %v3125 = vmul.f32 %v3120, %v3071
    %v3126 = vmul.f32 %v3121, %v3071
    %v3127 = vmul.f32 %v3122, %v3071
    %v3128 = vrot.slane %v3123, 4
    %v3129 = vadd.f32 %v3123, %v3128
    %v3130 = vrot.slane %v3129, 2
    %v3131 = vadd.f32 %v3129, %v3130
    %v3132 = vrot.slane %v3131, 1
    %v3133 = vadd.f32 %v3131, %v3132
    %v3134 = vrot.slane %v3124, 4
    %v3135 = vadd.f32 %v3124, %v3134
    %v3136 = vrot.slane %v3135, 2
    %v3137 = vadd.f32 %v3135, %v3136
    %v3138 = vrot.slane %v3137, 1
    %v3139 = vadd.f32 %v3137, %v3138
    %v3140 = vrot.slane %v3125, 4
    %v3141 = vadd.f32 %v3125, %v3140
    %v3142 = vrot.slane %v3141, 2
    %v3143 = vadd.f32 %v3141, %v3142
    %v3144 = vrot.slane %v3143, 1
    %v3145 = vadd.f32 %v3143, %v3144
    %v3146 = vrot.slane %v3126, 4
    %v3147 = vadd.f32 %v3126, %v3146
    %v3148 = vrot.slane %v3147, 2
    %v3149 = vadd.f32 %v3147, %v3148
    %v3150 = vrot.slane %v3149, 1
    %v3151 = vadd.f32 %v3149, %v3150
    %v3152 = vrot.slane %v3127, 4
    %v3153 = vadd.f32 %v3127, %v3152
    %v3154 = vrot.slane %v3153, 2
    %v3155 = vadd.f32 %v3153, %v3154
    %v3156 = vrot.slane %v3155, 1
    %v3157 = vadd.f32 %v3155, %v3156
    %v3158 = vmul.f32 %v3133, 0.5
    %v3159 = vmul.f32 %v3139, 0.5
    %v3160 = vmul.f32 %v3145, 0.5
    %v3161 = vmul.f32 %v3151, 0.5
    %v3162 = vmul.f32 %v3157, 0.5
    %v3163 = vadd.f32 %v3158, 1e-05
    %v3164 = vadd.f32 %v3159, 1e-05
    %v3165 = vadd.f32 %v3160, 1e-05
    %v3166 = vadd.f32 %v3161, 1e-05
    %v3167 = vadd.f32 %v3162, 1e-05
    %v3168 = vrsqrt.pop %v3163
    %v3169 = vmul.f32 %v3168, %v3163
    %v3170 = vmul.f32 %v3169, %v3168
    %v3171 = vmul.f32 0.5, %v3170
    %v3172 = vsub.f32 1.5, %v3171
    %v3173 = vmul.f32 %v3168, %v3172
    %vm3174 = vweird.f32 %v3163
    %vm3175 = vweird.f32 %v3168
    %vm3176 = vmor %vm3174, %vm3175
    %v3177 = vsel %vm3176, %v3168, %v3173
    %v3178 = vrsqrt.pop %v3164
    %v3179 = vmul.f32 %v3178, %v3164
    %v3180 = vmul.f32 %v3179, %v3178
    %v3181 = vmul.f32 0.5, %v3180
    %v3182 = vsub.f32 1.5, %v3181
    %v3183 = vmul.f32 %v3178, %v3182
    %vm3184 = vweird.f32 %v3164
    %vm3185 = vweird.f32 %v3178
    %vm3186 = vmor %vm3184, %vm3185
    %v3187 = vsel %vm3186, %v3178, %v3183
    %v3188 = vrsqrt.pop %v3165
    %v3189 = vmul.f32 %v3188, %v3165
    %v3190 = vmul.f32 %v3189, %v3188
    %v3191 = vmul.f32 0.5, %v3190
    %v3192 = vsub.f32 1.5, %v3191
    %v3193 = vmul.f32 %v3188, %v3192
    %vm3194 = vweird.f32 %v3165
    %vm3195 = vweird.f32 %v3188
    %vm3196 = vmor %vm3194, %vm3195
    %v3197 = vsel %vm3196, %v3188, %v3193
    %v3198 = vrsqrt.pop %v3166
    %v3199 = vmul.f32 %v3198, %v3166
    %v3200 = vmul.f32 %v3199, %v3198
    %v3201 = vmul.f32 0.5, %v3200
    %v3202 = vsub.f32 1.5, %v3201
    %v3203 = vmul.f32 %v3198, %v3202
    %vm3204 = vweird.f32 %v3166
    %vm3205 = vweird.f32 %v3198
    %vm3206 = vmor %vm3204, %vm3205
    %v3207 = vsel %vm3206, %v3198, %v3203
    %v3208 = vrsqrt.pop %v3167
    %v3209 = vmul.f32 %v3208, %v3167
    %v3210 = vmul.f32 %v3209, %v3208
    %v3211 = vmul.f32 0.5, %v3210
    %v3212 = vsub.f32 1.5, %v3211
    %v3213 = vmul.f32 %v3208, %v3212
    %vm3214 = vweird.f32 %v3167
    %vm3215 = vweird.f32 %v3208
    %vm3216 = vmor %vm3214, %vm3215
    %v3217 = vsel %vm3216, %v3208, %v3213
    %v3218 = vmul.f32 %v3113, %v3177
    %v3219 = vmul.f32 %v3114, %v3187
    %v3220 = vmul.f32 %v3115, %v3197
    %v3221 = vmul.f32 %v3116, %v3207
    %v3222 = vmul.f32 %v3117, %v3217
    %v3223 = vld [vmem:[#allocation18] sm:$0x1f]
    %v3225 = vperm.slane %v3223, 0
    %v3226 = vperm.slane %v3223, 1
    %v3227 = vperm.slane %v3223, 2
    %v3228 = vperm.slane %v3223, 3
    %v3229 = vperm.slane %v3223, 4
    %v3235 = vmul.f32 %v3218, %v3225
    %v3236 = vmul.f32 %v3219, %v3226
    %v3237 = vmul.f32 %v3220, %v3227
    %v3238 = vmul.f32 %v3221, %v3228
    %v3239 = vmul.f32 %v3222, %v3229
    %v3240 = vld [vmem:[#allocation19] sm:$0x1f]
    %v3242 = vperm.slane %v3240, 0
    %v3243 = vperm.slane %v3240, 1
    %v3244 = vperm.slane %v3240, 2
    %v3245 = vperm.slane %v3240, 3
    %v3246 = vperm.slane %v3240, 4
    %v3252 = vadd.f32 %v3235, %v3242
    %v3253 = vadd.f32 %v3236, %v3243
    %v3254 = vadd.f32 %v3237, %v3244
    %v3255 = vadd.f32 %v3238, %v3245
    %v3256 = vadd.f32 %v3239, %v3246
    %v3257 = vmax.f32 %v3252, 0.0
    %v3258 = vmax.f32 %v3253, 0.0
    %v3259 = vmax.f32 %v3254, 0.0
    %v3260 = vmax.f32 %v3255, 0.0
    %v3261 = vmax.f32 %v3256, 0.0
    %v3262 = vld [vmem:[#allocation21] sm:$0xff]
    %v3263 = vld [vmem:[#allocation21 + $0x8] sm:$0xff]
    %v3264 = vld [vmem:[#allocation21 + $0x10] sm:$0xff]
    %v3265 = vld [vmem:[#allocation21 + $0x18] sm:$0xff]
    %v3266 = vld [vmem:[#allocation21 + $0x20] sm:$0xff]
    %v3267 = vld [vmem:[#allocation21 + $0x28] sm:$0xff]
    %v3268 = vld [vmem:[#allocation21 + $0x30] sm:$0xff]
    %v3269 = vld [vmem:[#allocation21 + $0x38] sm:$0xff]
    %v3270 = vld [vmem:[#allocation21 + $0x40] sm:$0xff]
    %v3271 = vld [vmem:[#allocation21 + $0x48] sm:$0xff]
    %v3272 = vld [vmem:[#allocation21 + $0x50] sm:$0xff]
    %v3273 = vld [vmem:[#allocation21 + $0x58] sm:$0xff]
    %v3274 = vld [vmem:[#allocation21 + $0x60] sm:$0xff]
    %v3275 = vld [vmem:[#allocation21 + $0x68] sm:$0xff]
    %v3276 = vld [vmem:[#allocation21 + $0x70] sm:$0xff]
    %v3277 = vld [vmem:[#allocation21 + $0x78] sm:$0xff]
    %v3278 = vld [vmem:[#allocation21 + $0x80] sm:$0xff]
    %v3279 = vld [vmem:[#allocation21 + $0x88] sm:$0xff]
    %v3280 = vld [vmem:[#allocation21 + $0x90] sm:$0xff]
    %v3281 = vld [vmem:[#allocation21 + $0x98] sm:$0xff]
    %v3282 = vld [vmem:[#allocation21 + $0xa0] sm:$0xff]
    %v3283 = vld [vmem:[#allocation21 + $0xa8] sm:$0xff]
    %v3284 = vld [vmem:[#allocation21 + $0xb0] sm:$0xff]
    %v3285 = vld [vmem:[#allocation21 + $0xb8] sm:$0xff]
    %v3286 = vld [vmem:[#allocation21 + $0xc0] sm:$0xff]
    %v3287 = vld [vmem:[#allocation21 + $0xc8] sm:$0xff]
    %v3288 = vld [vmem:[#allocation21 + $0xd0] sm:$0xff]
    %v3289 = vld [vmem:[#allocation21 + $0xd8] sm:$0xff]
    %v3290 = vld [vmem:[#allocation21 + $0xe0] sm:$0xff]
    %v3291 = vld [vmem:[#allocation21 + $0xe8] sm:$0xff]
    %v3292 = vld [vmem:[#allocation21 + $0xf0] sm:$0xff]
    %v3293 = vld [vmem:[#allocation21 + $0xf8] sm:$0xff]
    %v3294 = vld [vmem:[#allocation21 + $0x100] sm:$0xff]
    %v3295 = vld [vmem:[#allocation21 + $0x108] sm:$0xff]
    %v3296 = vld [vmem:[#allocation21 + $0x110] sm:$0xff]
    %v3297 = vld [vmem:[#allocation21 + $0x118] sm:$0xff]
    %v3298 = vld [vmem:[#allocation21 + $0x120] sm:$0xff]
    %v3299 = vld [vmem:[#allocation21 + $0x128] sm:$0xff]
    %v3300 = vld [vmem:[#allocation21 + $0x130] sm:$0xff]
    %v3301 = vld [vmem:[#allocation21 + $0x138] sm:$0xff]
    %v3302 = vld [vmem:[#allocation21 + $0x140] sm:$0xff]
    %v3303 = vld [vmem:[#allocation21 + $0x148] sm:$0xff]
    %v3304 = vld [vmem:[#allocation21 + $0x150] sm:$0xff]
    %v3305 = vld [vmem:[#allocation21 + $0x158] sm:$0xff]
    %v3306 = vld [vmem:[#allocation21 + $0x160] sm:$0xff]
    %v3307 = vld [vmem:[#allocation21 + $0x168] sm:$0xff]
    %v3308 = vld [vmem:[#allocation21 + $0x170] sm:$0xff]
    %v3309 = vld [vmem:[#allocation21 + $0x178] sm:$0xff]
    %v3310 = vld [vmem:[#allocation21 + $0x180] sm:$0xff]
    %v3311 = vld [vmem:[#allocation21 + $0x188] sm:$0xff]
    %v3312 = vld [vmem:[#allocation21 + $0x190] sm:$0xff]
    %v3313 = vld [vmem:[#allocation21 + $0x198] sm:$0xff]
    %v3314 = vld [vmem:[#allocation21 + $0x1a0] sm:$0xff]
    %v3315 = vld [vmem:[#allocation21 + $0x1a8] sm:$0xff]
    %v3316 = vld [vmem:[#allocation21 + $0x1b0] sm:$0xff]
    %v3317 = vld [vmem:[#allocation21 + $0x1b8] sm:$0xff]
    %v3318 = vld [vmem:[#allocation21 + $0x1c0] sm:$0xff]
    %v3319 = vld [vmem:[#allocation21 + $0x1c8] sm:$0xff]
    %v3320 = vld [vmem:[#allocation21 + $0x1d0] sm:$0xff]
    %v3321 = vld [vmem:[#allocation21 + $0x1d8] sm:$0xff]
    %v3322 = vld [vmem:[#allocation21 + $0x1e0] sm:$0xff]
    %v3323 = vld [vmem:[#allocation21 + $0x1e8] sm:$0xff]
    %v3324 = vld [vmem:[#allocation21 + $0x1f0] sm:$0xff]
    %v3325 = vld [vmem:[#allocation21 + $0x1f8] sm:$0xff]
    %v3326 = vld [vmem:[#allocation21 + $0x200] sm:$0xff]
    %v3327 = vld [vmem:[#allocation21 + $0x208] sm:$0xff]
    %v3328 = vld [vmem:[#allocation21 + $0x210] sm:$0xff]
    %v3329 = vld [vmem:[#allocation21 + $0x218] sm:$0xff]
    %v3330 = vld [vmem:[#allocation21 + $0x220] sm:$0xff]
    %v3331 = vld [vmem:[#allocation21 + $0x228] sm:$0xff]
    %v3332 = vld [vmem:[#allocation21 + $0x230] sm:$0xff]
    %v3333 = vld [vmem:[#allocation21 + $0x238] sm:$0xff]
    %v3334 = vld [vmem:[#allocation21 + $0x240] sm:$0xff]
    %v3335 = vld [vmem:[#allocation21 + $0x248] sm:$0xff]
    %v3336 = vld [vmem:[#allocation21 + $0x250] sm:$0xff]
    %v3337 = vld [vmem:[#allocation21 + $0x258] sm:$0xff]
    %v3338 = vld [vmem:[#allocation21 + $0x260] sm:$0xff]
    %v3339 = vld [vmem:[#allocation21 + $0x268] sm:$0xff]
    %v3340 = vld [vmem:[#allocation21 + $0x270] sm:$0xff]
    %v3341 = vld [vmem:[#allocation21 + $0x278] sm:$0xff]
    %v3342 = vld [vmem:[#allocation21 + $0x280] sm:$0xff]
    %v3343 = vld [vmem:[#allocation21 + $0x288] sm:$0xff]
    %v3344 = vld [vmem:[#allocation21 + $0x290] sm:$0xff]
    %v3345 = vld [vmem:[#allocation21 + $0x298] sm:$0xff]
    %v3346 = vld [vmem:[#allocation21 + $0x2a0] sm:$0xff]
    %v3347 = vld [vmem:[#allocation21 + $0x2a8] sm:$0xff]
    %v3348 = vld [vmem:[#allocation21 + $0x2b0] sm:$0xff]
    %v3349 = vld [vmem:[#allocation21 + $0x2b8] sm:$0xff]
    %v3350 = vld [vmem:[#allocation21 + $0x2c0] sm:$0xff]
    %v3351 = vld [vmem:[#allocation21 + $0x2c8] sm:$0xff]
    %v3352 = vld [vmem:[#allocation21 + $0x2d0] sm:$0xff]
    %v3353 = vld [vmem:[#allocation21 + $0x2d8] sm:$0xff]
    %v3354 = vld [vmem:[#allocation21 + $0x2e0] sm:$0xff]
    %v3355 = vld [vmem:[#allocation21 + $0x2e8] sm:$0xff]
    %v3356 = vld [vmem:[#allocation21 + $0x2f0] sm:$0xff]
    %v3357 = vld [vmem:[#allocation21 + $0x2f8] sm:$0xff]
    %v3358 = vld [vmem:[#allocation21 + $0x300] sm:$0xff]
    %v3359 = vld [vmem:[#allocation21 + $0x308] sm:$0xff]
    %v3360 = vld [vmem:[#allocation21 + $0x310] sm:$0xff]
    %v3361 = vld [vmem:[#allocation21 + $0x318] sm:$0xff]
    %v3362 = vld [vmem:[#allocation21 + $0x320] sm:$0xff]
    %v3363 = vld [vmem:[#allocation21 + $0x328] sm:$0xff]
    %v3364 = vld [vmem:[#allocation21 + $0x330] sm:$0xff]
    %v3365 = vld [vmem:[#allocation21 + $0x338] sm:$0xff]
    %v3366 = vld [vmem:[#allocation21 + $0x340] sm:$0xff]
    %v3367 = vld [vmem:[#allocation21 + $0x348] sm:$0xff]
    %v3368 = vld [vmem:[#allocation21 + $0x350] sm:$0xff]
    %v3369 = vld [vmem:[#allocation21 + $0x358] sm:$0xff]
    %v3370 = vld [vmem:[#allocation21 + $0x360] sm:$0xff]
    %v3371 = vld [vmem:[#allocation21 + $0x368] sm:$0xff]
    %v3372 = vld [vmem:[#allocation21 + $0x370] sm:$0xff]
    %v3373 = vld [vmem:[#allocation21 + $0x378] sm:$0xff]
    %v3374 = vld [vmem:[#allocation21 + $0x380] sm:$0xff]
    %v3375 = vld [vmem:[#allocation21 + $0x388] sm:$0xff]
    %v3376 = vld [vmem:[#allocation21 + $0x390] sm:$0xff]
    %v3377 = vld [vmem:[#allocation21 + $0x398] sm:$0xff]
    %v3378 = vld [vmem:[#allocation21 + $0x3a0] sm:$0xff]
    %v3379 = vld [vmem:[#allocation21 + $0x3a8] sm:$0xff]
    %v3380 = vld [vmem:[#allocation21 + $0x3b0] sm:$0xff]
    %v3381 = vld [vmem:[#allocation21 + $0x3b8] sm:$0xff]
    %v3382 = vld [vmem:[#allocation21 + $0x3c0] sm:$0xff]
    %v3383 = vld [vmem:[#allocation21 + $0x3c8] sm:$0xff]
    %v3384 = vld [vmem:[#allocation21 + $0x3d0] sm:$0xff]
    %v3385 = vld [vmem:[#allocation21 + $0x3d8] sm:$0xff]
    %v3386 = vld [vmem:[#allocation21 + $0x3e0] sm:$0xff]
    %v3387 = vld [vmem:[#allocation21 + $0x3e8] sm:$0xff]
    %v3388 = vld [vmem:[#allocation21 + $0x3f0] sm:$0xff]
    %v3389 = vld [vmem:[#allocation21 + $0x3f8] sm:$0xff]
    %v3390 = vld [vmem:[#allocation21 + $0x400] sm:$0xff]
    %v3391 = vld [vmem:[#allocation21 + $0x408] sm:$0xff]
    %v3392 = vld [vmem:[#allocation21 + $0x410] sm:$0xff]
    %v3393 = vld [vmem:[#allocation21 + $0x418] sm:$0xff]
    %v3394 = vld [vmem:[#allocation21 + $0x420] sm:$0xff]
    %v3395 = vld [vmem:[#allocation21 + $0x428] sm:$0xff]
    %v3396 = vld [vmem:[#allocation21 + $0x430] sm:$0xff]
    %v3397 = vld [vmem:[#allocation21 + $0x438] sm:$0xff]
    %v3398 = vld [vmem:[#allocation21 + $0x440] sm:$0xff]
    %v3399 = vld [vmem:[#allocation21 + $0x448] sm:$0xff]
    %v3400 = vld [vmem:[#allocation21 + $0x450] sm:$0xff]
    %v3401 = vld [vmem:[#allocation21 + $0x458] sm:$0xff]
    %v3402 = vld [vmem:[#allocation21 + $0x460] sm:$0xff]
    %v3403 = vld [vmem:[#allocation21 + $0x468] sm:$0xff]
    %v3404 = vld [vmem:[#allocation21 + $0x470] sm:$0xff]
    %v3405 = vld [vmem:[#allocation21 + $0x478] sm:$0xff]
    %v3406 = vld [vmem:[#allocation21 + $0x480] sm:$0xff]
    %v3407 = vld [vmem:[#allocation21 + $0x488] sm:$0xff]
    %v3408 = vld [vmem:[#allocation21 + $0x490] sm:$0xff]
    %v3409 = vld [vmem:[#allocation21 + $0x498] sm:$0xff]
    %v3410 = vld [vmem:[#allocation21 + $0x4a0] sm:$0xff]
    %v3411 = vld [vmem:[#allocation21 + $0x4a8] sm:$0xff]
    %v3412 = vld [vmem:[#allocation21 + $0x4b0] sm:$0xff]
    %v3413 = vld [vmem:[#allocation21 + $0x4b8] sm:$0xff]
    %v3414 = vld [vmem:[#allocation21 + $0x4c0] sm:$0xff]
    %v3415 = vld [vmem:[#allocation21 + $0x4c8] sm:$0xff]
    %v3416 = vld [vmem:[#allocation21 + $0x4d0] sm:$0xff]
    %v3417 = vld [vmem:[#allocation21 + $0x4d8] sm:$0xff]
    %v3418 = vld [vmem:[#allocation21 + $0x4e0] sm:$0xff]
    %v3419 = vld [vmem:[#allocation21 + $0x4e8] sm:$0xff]
    %v3420 = vld [vmem:[#allocation21 + $0x4f0] sm:$0xff]
    %v3421 = vld [vmem:[#allocation21 + $0x4f8] sm:$0xff]
    %v3422 = vld [vmem:[#allocation21 + $0x500] sm:$0xff]
    %v3423 = vld [vmem:[#allocation21 + $0x508] sm:$0xff]
    %v3424 = vld [vmem:[#allocation21 + $0x510] sm:$0xff]
    %v3425 = vld [vmem:[#allocation21 + $0x518] sm:$0xff]
    %v3426 = vld [vmem:[#allocation21 + $0x520] sm:$0xff]
    %v3427 = vld [vmem:[#allocation21 + $0x528] sm:$0xff]
    %v3428 = vld [vmem:[#allocation21 + $0x530] sm:$0xff]
    %v3429 = vld [vmem:[#allocation21 + $0x538] sm:$0xff]
    %v3430 = vld [vmem:[#allocation21 + $0x540] sm:$0xff]
    %v3431 = vld [vmem:[#allocation21 + $0x548] sm:$0xff]
    %v3432 = vld [vmem:[#allocation21 + $0x550] sm:$0xff]
    %v3433 = vld [vmem:[#allocation21 + $0x558] sm:$0xff]
    %v3434 = vld [vmem:[#allocation21 + $0x560] sm:$0xff]
    %v3435 = vld [vmem:[#allocation21 + $0x568] sm:$0xff]
    %v3436 = vld [vmem:[#allocation21 + $0x570] sm:$0xff]
    %v3437 = vld [vmem:[#allocation21 + $0x578] sm:$0xff]
    %v3438 = vld [vmem:[#allocation21 + $0x580] sm:$0xff]
    %v3439 = vld [vmem:[#allocation21 + $0x588] sm:$0xff]
    %v3440 = vld [vmem:[#allocation21 + $0x590] sm:$0xff]
    %v3441 = vld [vmem:[#allocation21 + $0x598] sm:$0xff]
    %v3442 = vld [vmem:[#allocation21 + $0x5a0] sm:$0xff]
    %v3443 = vld [vmem:[#allocation21 + $0x5a8] sm:$0xff]
    %v3444 = vld [vmem:[#allocation21 + $0x5b0] sm:$0xff]
    %v3445 = vld [vmem:[#allocation21 + $0x5b8] sm:$0xff]
    %v3446 = vld [vmem:[#allocation21 + $0x5c0] sm:$0xff]
    %v3447 = vld [vmem:[#allocation21 + $0x5c8] sm:$0xff]
    %v3448 = vld [vmem:[#allocation21 + $0x5d0] sm:$0xff]
    %v3449 = vld [vmem:[#allocation21 + $0x5d8] sm:$0xff]
    %v3450 = vld [vmem:[#allocation21 + $0x5e0] sm:$0xff]
    %v3451 = vld [vmem:[#allocation21 + $0x5e8] sm:$0xff]
    %v3452 = vld [vmem:[#allocation21 + $0x5f0] sm:$0xff]
    %v3453 = vld [vmem:[#allocation21 + $0x5f8] sm:$0xff]
    %v3454 = vld [vmem:[#allocation21 + $0x600] sm:$0xff]
    %v3455 = vld [vmem:[#allocation21 + $0x608] sm:$0xff]
    %v3456 = vld [vmem:[#allocation21 + $0x610] sm:$0xff]
    %v3457 = vld [vmem:[#allocation21 + $0x618] sm:$0xff]
    %v3458 = vld [vmem:[#allocation21 + $0x620] sm:$0xff]
    %v3459 = vld [vmem:[#allocation21 + $0x628] sm:$0xff]
    %v3460 = vld [vmem:[#allocation21 + $0x630] sm:$0xff]
    %v3461 = vld [vmem:[#allocation21 + $0x638] sm:$0xff]
    %v3462 = vld [vmem:[#allocation21 + $0x640] sm:$0xff]
    %v3463 = vld [vmem:[#allocation21 + $0x648] sm:$0xff]
    %v3464 = vld [vmem:[#allocation21 + $0x650] sm:$0xff]
    %v3465 = vld [vmem:[#allocation21 + $0x658] sm:$0xff]
    %v3466 = vld [vmem:[#allocation21 + $0x660] sm:$0xff]
    %v3467 = vld [vmem:[#allocation21 + $0x668] sm:$0xff]
    %v3468 = vld [vmem:[#allocation21 + $0x670] sm:$0xff]
    %v3469 = vld [vmem:[#allocation21 + $0x678] sm:$0xff]
    %v3470 = vld [vmem:[#allocation21 + $0x680] sm:$0xff]
    %v3471 = vld [vmem:[#allocation21 + $0x688] sm:$0xff]
    %v3472 = vld [vmem:[#allocation21 + $0x690] sm:$0xff]
    %v3473 = vld [vmem:[#allocation21 + $0x698] sm:$0xff]
    %v3474 = vld [vmem:[#allocation21 + $0x6a0] sm:$0xff]
    %v3475 = vld [vmem:[#allocation21 + $0x6a8] sm:$0xff]
    %v3476 = vld [vmem:[#allocation21 + $0x6b0] sm:$0xff]
    %v3477 = vld [vmem:[#allocation21 + $0x6b8] sm:$0xff]
    %v3478 = vld [vmem:[#allocation21 + $0x6c0] sm:$0xff]
    %v3479 = vld [vmem:[#allocation21 + $0x6c8] sm:$0xff]
    %v3480 = vld [vmem:[#allocation21 + $0x6d0] sm:$0xff]
    %v3481 = vld [vmem:[#allocation21 + $0x6d8] sm:$0xff]
    %v3482 = vld [vmem:[#allocation21 + $0x6e0] sm:$0xff]
    %v3483 = vld [vmem:[#allocation21 + $0x6e8] sm:$0xff]
    %v3484 = vld [vmem:[#allocation21 + $0x6f0] sm:$0xff]
    %v3485 = vld [vmem:[#allocation21 + $0x6f8] sm:$0xff]
    %v3486 = vld [vmem:[#allocation21 + $0x700] sm:$0xff]
    %v3487 = vld [vmem:[#allocation21 + $0x708] sm:$0xff]
    %v3488 = vld [vmem:[#allocation21 + $0x710] sm:$0xff]
    %v3489 = vld [vmem:[#allocation21 + $0x718] sm:$0xff]
    %v3490 = vld [vmem:[#allocation21 + $0x720] sm:$0xff]
    %v3491 = vld [vmem:[#allocation21 + $0x728] sm:$0xff]
    %v3492 = vld [vmem:[#allocation21 + $0x730] sm:$0xff]
    %v3493 = vld [vmem:[#allocation21 + $0x738] sm:$0xff]
    %v3494 = vld [vmem:[#allocation21 + $0x740] sm:$0xff]
    %v3495 = vld [vmem:[#allocation21 + $0x748] sm:$0xff]
    %v3496 = vld [vmem:[#allocation21 + $0x750] sm:$0xff]
    %v3497 = vld [vmem:[#allocation21 + $0x758] sm:$0xff]
    %v3498 = vld [vmem:[#allocation21 + $0x760] sm:$0xff]
    %v3499 = vld [vmem:[#allocation21 + $0x768] sm:$0xff]
    %v3500 = vld [vmem:[#allocation21 + $0x770] sm:$0xff]
    %v3501 = vld [vmem:[#allocation21 + $0x778] sm:$0xff]
    %v3502 = vld [vmem:[#allocation21 + $0x780] sm:$0xff]
    %v3503 = vld [vmem:[#allocation21 + $0x788] sm:$0xff]
    %v3504 = vld [vmem:[#allocation21 + $0x790] sm:$0xff]
    %v3505 = vld [vmem:[#allocation21 + $0x798] sm:$0xff]
    %v3506 = vld [vmem:[#allocation21 + $0x7a0] sm:$0xff]
    %v3507 = vld [vmem:[#allocation21 + $0x7a8] sm:$0xff]
    %v3508 = vld [vmem:[#allocation21 + $0x7b0] sm:$0xff]
    %v3509 = vld [vmem:[#allocation21 + $0x7b8] sm:$0xff]
    %v3510 = vld [vmem:[#allocation21 + $0x7c0] sm:$0xff]
    %v3511 = vld [vmem:[#allocation21 + $0x7c8] sm:$0xff]
    %v3512 = vld [vmem:[#allocation21 + $0x7d0] sm:$0xff]
    %v3513 = vld [vmem:[#allocation21 + $0x7d8] sm:$0xff]
    %v3514 = vld [vmem:[#allocation21 + $0x7e0] sm:$0xff]
    %v3515 = vld [vmem:[#allocation21 + $0x7e8] sm:$0xff]
    %v3516 = vld [vmem:[#allocation21 + $0x7f0] sm:$0xff]
    %v3517 = vld [vmem:[#allocation21 + $0x7f8] sm:$0xff]
    %v3518 = vld [vmem:[#allocation21 + $0x800] sm:$0xff]
    %v3519 = vld [vmem:[#allocation21 + $0x808] sm:$0xff]
    %v3520 = vld [vmem:[#allocation21 + $0x810] sm:$0xff]
    %v3521 = vld [vmem:[#allocation21 + $0x818] sm:$0xff]
    %v3522 = vld [vmem:[#allocation21 + $0x820] sm:$0xff]
    %v3523 = vld [vmem:[#allocation21 + $0x828] sm:$0xff]
    %v3524 = vld [vmem:[#allocation21 + $0x830] sm:$0xff]
    %v3525 = vld [vmem:[#allocation21 + $0x838] sm:$0xff]
    %v3526 = vld [vmem:[#allocation21 + $0x840] sm:$0xff]
    %v3527 = vld [vmem:[#allocation21 + $0x848] sm:$0xff]
    %v3528 = vld [vmem:[#allocation21 + $0x850] sm:$0xff]
    %v3529 = vld [vmem:[#allocation21 + $0x858] sm:$0xff]
    %v3530 = vld [vmem:[#allocation21 + $0x860] sm:$0xff]
    %v3531 = vld [vmem:[#allocation21 + $0x868] sm:$0xff]
    %v3532 = vld [vmem:[#allocation21 + $0x870] sm:$0xff]
    %v3533 = vld [vmem:[#allocation21 + $0x878] sm:$0xff]
    %v3534 = vld [vmem:[#allocation21 + $0x880] sm:$0xff]
    %v3535 = vld [vmem:[#allocation21 + $0x888] sm:$0xff]
    %v3536 = vld [vmem:[#allocation21 + $0x890] sm:$0xff]
    %v3537 = vld [vmem:[#allocation21 + $0x898] sm:$0xff]
    %v3538 = vld [vmem:[#allocation21 + $0x8a0] sm:$0xff]
    %v3539 = vld [vmem:[#allocation21 + $0x8a8] sm:$0xff]
    %v3540 = vld [vmem:[#allocation21 + $0x8b0] sm:$0xff]
    %v3541 = vld [vmem:[#allocation21 + $0x8b8] sm:$0xff]
    %v3542 = vld [vmem:[#allocation21 + $0x8c0] sm:$0xff]
    %v3543 = vld [vmem:[#allocation21 + $0x8c8] sm:$0xff]
    %v3544 = vld [vmem:[#allocation21 + $0x8d0] sm:$0xff]
    %v3545 = vld [vmem:[#allocation21 + $0x8d8] sm:$0xff]
    %v3546 = vld [vmem:[#allocation21 + $0x8e0] sm:$0xff]
    %v3547 = vld [vmem:[#allocation21 + $0x8e8] sm:$0xff]
    %v3548 = vld [vmem:[#allocation21 + $0x8f0] sm:$0xff]
    %v3549 = vld [vmem:[#allocation21 + $0x8f8] sm:$0xff]
    %v3550 = vld [vmem:[#allocation21 + $0x900] sm:$0xff]
    %v3551 = vld [vmem:[#allocation21 + $0x908] sm:$0xff]
    %v3552 = vld [vmem:[#allocation21 + $0x910] sm:$0xff]
    %v3553 = vld [vmem:[#allocation21 + $0x918] sm:$0xff]
    %v3554 = vld [vmem:[#allocation21 + $0x920] sm:$0xff]
    %v3555 = vld [vmem:[#allocation21 + $0x928] sm:$0xff]
    %v3556 = vld [vmem:[#allocation21 + $0x930] sm:$0xff]
    %v3557 = vld [vmem:[#allocation21 + $0x938] sm:$0xff]
    %v3558 = vld [vmem:[#allocation21 + $0x940] sm:$0xff]
    %v3559 = vld [vmem:[#allocation21 + $0x948] sm:$0xff]
    %v3560 = vld [vmem:[#allocation21 + $0x950] sm:$0xff]
    %v3561 = vld [vmem:[#allocation21 + $0x958] sm:$0xff]
    %v3562 = vld [vmem:[#allocation21 + $0x960] sm:$0xff]
    %v3563 = vld [vmem:[#allocation21 + $0x968] sm:$0xff]
    %v3564 = vld [vmem:[#allocation21 + $0x970] sm:$0xff]
    %v3565 = vld [vmem:[#allocation21 + $0x978] sm:$0xff]
    %v3566 = vld [vmem:[#allocation21 + $0x980] sm:$0xff]
    %v3567 = vld [vmem:[#allocation21 + $0x988] sm:$0xff]
    %v3568 = vld [vmem:[#allocation21 + $0x990] sm:$0xff]
    %v3569 = vld [vmem:[#allocation21 + $0x998] sm:$0xff]
    %v3570 = vld [vmem:[#allocation21 + $0x9a0] sm:$0xff]
    %v3571 = vld [vmem:[#allocation21 + $0x9a8] sm:$0xff]
    %v3572 = vld [vmem:[#allocation21 + $0x9b0] sm:$0xff]
    %v3573 = vld [vmem:[#allocation21 + $0x9b8] sm:$0xff]
    %v3574 = vld [vmem:[#allocation21 + $0x9c0] sm:$0xff]
    %v3575 = vld [vmem:[#allocation21 + $0x9c8] sm:$0xff]
    %v3576 = vld [vmem:[#allocation21 + $0x9d0] sm:$0xff]
    %v3577 = vld [vmem:[#allocation21 + $0x9d8] sm:$0xff]
    %v3578 = vld [vmem:[#allocation21 + $0x9e0] sm:$0xff]
    %v3579 = vld [vmem:[#allocation21 + $0x9e8] sm:$0xff]
    %v3580 = vld [vmem:[#allocation21 + $0x9f0] sm:$0xff]
    %v3581 = vld [vmem:[#allocation21 + $0x9f8] sm:$0xff]
    %v3582 = vld [vmem:[#allocation21 + $0xa00] sm:$0xff]
    %v3583 = vld [vmem:[#allocation21 + $0xa08] sm:$0xff]
    %v3584 = vld [vmem:[#allocation21 + $0xa10] sm:$0xff]
    %v3585 = vld [vmem:[#allocation21 + $0xa18] sm:$0xff]
    %v3586 = vld [vmem:[#allocation21 + $0xa20] sm:$0xff]
    %v3587 = vld [vmem:[#allocation21 + $0xa28] sm:$0xff]
    %v3588 = vld [vmem:[#allocation21 + $0xa30] sm:$0xff]
    %v3589 = vld [vmem:[#allocation21 + $0xa38] sm:$0xff]
    %v3590 = vld [vmem:[#allocation21 + $0xa40] sm:$0xff]
    %v3591 = vld [vmem:[#allocation21 + $0xa48] sm:$0xff]
    %v3592 = vld [vmem:[#allocation21 + $0xa50] sm:$0xff]
    %v3593 = vld [vmem:[#allocation21 + $0xa58] sm:$0xff]
    %v3594 = vld [vmem:[#allocation21 + $0xa60] sm:$0xff]
    %v3595 = vld [vmem:[#allocation21 + $0xa68] sm:$0xff]
    %v3596 = vld [vmem:[#allocation21 + $0xa70] sm:$0xff]
    %v3597 = vld [vmem:[#allocation21 + $0xa78] sm:$0xff]
    %v3598 = vld [vmem:[#allocation21 + $0xa80] sm:$0xff]
    %v3599 = vld [vmem:[#allocation21 + $0xa88] sm:$0xff]
    %v3600 = vld [vmem:[#allocation21 + $0xa90] sm:$0xff]
    %v3601 = vld [vmem:[#allocation21 + $0xa98] sm:$0xff]
    %v3602 = vld [vmem:[#allocation21 + $0xaa0] sm:$0xff]
    %v3603 = vld [vmem:[#allocation21 + $0xaa8] sm:$0xff]
    %v3604 = vld [vmem:[#allocation21 + $0xab0] sm:$0xff]
    %v3605 = vld [vmem:[#allocation21 + $0xab8] sm:$0xff]
    %v3606 = vld [vmem:[#allocation21 + $0xac0] sm:$0xff]
    %v3607 = vld [vmem:[#allocation21 + $0xac8] sm:$0xff]
    %v3608 = vld [vmem:[#allocation21 + $0xad0] sm:$0xff]
    %v3609 = vld [vmem:[#allocation21 + $0xad8] sm:$0xff]
    %v3610 = vld [vmem:[#allocation21 + $0xae0] sm:$0xff]
    %v3611 = vld [vmem:[#allocation21 + $0xae8] sm:$0xff]
    %v3612 = vld [vmem:[#allocation21 + $0xaf0] sm:$0xff]
    %v3613 = vld [vmem:[#allocation21 + $0xaf8] sm:$0xff]
    %v3614 = vld [vmem:[#allocation21 + $0xb00] sm:$0xff]
    %v3615 = vld [vmem:[#allocation21 + $0xb08] sm:$0xff]
    %v3616 = vld [vmem:[#allocation21 + $0xb10] sm:$0xff]
    %v3617 = vld [vmem:[#allocation21 + $0xb18] sm:$0xff]
    %v3618 = vld [vmem:[#allocation21 + $0xb20] sm:$0xff]
    %v3619 = vld [vmem:[#allocation21 + $0xb28] sm:$0xff]
    %v3620 = vld [vmem:[#allocation21 + $0xb30] sm:$0xff]
    %v3621 = vld [vmem:[#allocation21 + $0xb38] sm:$0xff]
    %v3622 = vld [vmem:[#allocation21 + $0xb40] sm:$0xff]
    %v3623 = vld [vmem:[#allocation21 + $0xb48] sm:$0xff]
    %v3624 = vld [vmem:[#allocation21 + $0xb50] sm:$0xff]
    %v3625 = vld [vmem:[#allocation21 + $0xb58] sm:$0xff]
    %v3626 = vld [vmem:[#allocation21 + $0xb60] sm:$0xff]
    %v3627 = vld [vmem:[#allocation21 + $0xb68] sm:$0xff]
    %v3628 = vld [vmem:[#allocation21 + $0xb70] sm:$0xff]
    %v3629 = vld [vmem:[#allocation21 + $0xb78] sm:$0xff]
    %v3630 = vld [vmem:[#allocation21 + $0xb80] sm:$0xff]
    %v3631 = vld [vmem:[#allocation21 + $0xb88] sm:$0xff]
    %v3632 = vld [vmem:[#allocation21 + $0xb90] sm:$0xff]
    %v3633 = vld [vmem:[#allocation21 + $0xb98] sm:$0xff]
    %v3634 = vld [vmem:[#allocation21 + $0xba0] sm:$0xff]
    %v3635 = vld [vmem:[#allocation21 + $0xba8] sm:$0xff]
    %v3636 = vld [vmem:[#allocation21 + $0xbb0] sm:$0xff]
    %v3637 = vld [vmem:[#allocation21 + $0xbb8] sm:$0xff]
    %v3638 = vld [vmem:[#allocation21 + $0xbc0] sm:$0xff]
    %v3639 = vld [vmem:[#allocation21 + $0xbc8] sm:$0xff]
    %v3640 = vld [vmem:[#allocation21 + $0xbd0] sm:$0xff]
    %v3641 = vld [vmem:[#allocation21 + $0xbd8] sm:$0xff]
    %v3642 = vld [vmem:[#allocation21 + $0xbe0] sm:$0xff]
    %v3643 = vld [vmem:[#allocation21 + $0xbe8] sm:$0xff]
    %v3644 = vld [vmem:[#allocation21 + $0xbf0] sm:$0xff]
    %v3645 = vld [vmem:[#allocation21 + $0xbf8] sm:$0xff]
    %v3646 = vld [vmem:[#allocation21 + $0xc00] sm:$0xff]
    %v3647 = vld [vmem:[#allocation21 + $0xc08] sm:$0xff]
    %v3648 = vld [vmem:[#allocation21 + $0xc10] sm:$0xff]
    %v3649 = vld [vmem:[#allocation21 + $0xc18] sm:$0xff]
    %v3650 = vld [vmem:[#allocation21 + $0xc20] sm:$0xff]
    %v3651 = vld [vmem:[#allocation21 + $0xc28] sm:$0xff]
    %v3652 = vld [vmem:[#allocation21 + $0xc30] sm:$0xff]
    %v3653 = vld [vmem:[#allocation21 + $0xc38] sm:$0xff]
    %v3654 = vld [vmem:[#allocation21 + $0xc40] sm:$0xff]
    %v3655 = vld [vmem:[#allocation21 + $0xc48] sm:$0xff]
    %v3656 = vld [vmem:[#allocation21 + $0xc50] sm:$0xff]
    %v3657 = vld [vmem:[#allocation21 + $0xc58] sm:$0xff]
    %v3658 = vld [vmem:[#allocation21 + $0xc60] sm:$0xff]
    %v3659 = vld [vmem:[#allocation21 + $0xc68] sm:$0xff]
    %v3660 = vld [vmem:[#allocation21 + $0xc70] sm:$0xff]
    %v3661 = vld [vmem:[#allocation21 + $0xc78] sm:$0xff]
    %v3662 = vld [vmem:[#allocation22] sm:$0x1f]
    %v3664 = vperm.slane %v3662, 0
    %v3665 = vperm.slane %v3662, 1
    %v3666 = vperm.slane %v3662, 2
    %v3667 = vperm.slane %v3662, 3
    %v3668 = vperm.slane %v3662, 4
    %3674 = vmatpush.msra.mxu0 %v3337
    %3675 = vmatpush.msra.mxu0 %v3332
    %3676 = vmatpush.msra.mxu0 %v3327
    %3677 = vmatpush.msra.mxu0 %v3322
    %3678 = vmatpush.msra.mxu0 %v3317
    %3679 = vmatpush.msra.mxu0 %v3312
    %3680 = vmatpush.msra.mxu0 %v3307
    %3681 = vmatpush.msra.mxu0 %v3302
    %3682 = vmatpush.msra.mxu0 %v3297
    %3683 = vmatpush.msra.mxu0 %v3292
    %3684 = vmatpush.msra.mxu0 %v3287
    %3685 = vmatpush.msra.mxu0 %v3282
    %3686 = vmatpush.msra.mxu0 %v3277
    %3687 = vmatpush.msra.mxu0 %v3272
    %3688 = vmatpush.msra.mxu0 %v3267
    %3689 = vmatpush.msra.mxu0 %v3262
    %3690 = vmatmul.f32.gmra.mxu0 %v3257
    %v3691 = vpop.f32.mrf.mxu0
    %v3692 = vadd.f32 %v3664, %v3691
    %3693 = vdwg.mxu0
    %3694 = vmatpush.msra.mxu0 %v3417
    %3695 = vmatpush.msra.mxu0 %v3412
    %3696 = vmatpush.msra.mxu0 %v3407
    %3697 = vmatpush.msra.mxu0 %v3402
    %3698 = vmatpush.msra.mxu0 %v3397
    %3699 = vmatpush.msra.mxu0 %v3392
    %3700 = vmatpush.msra.mxu0 %v3387
    %3701 = vmatpush.msra.mxu0 %v3382
    %3702 = vmatpush.msra.mxu0 %v3377
    %3703 = vmatpush.msra.mxu0 %v3372
    %3704 = vmatpush.msra.mxu0 %v3367
    %3705 = vmatpush.msra.mxu0 %v3362
    %3706 = vmatpush.msra.mxu0 %v3357
    %3707 = vmatpush.msra.mxu0 %v3352
    %3708 = vmatpush.msra.mxu0 %v3347
    %3709 = vmatpush.msra.mxu0 %v3342
    %3710 = vmatmul.f32.gmra.mxu0 %v3258
    %v3711 = vpop.f32.mrf.mxu0
    %v3712 = vadd.f32 %v3692, %v3711
    %3713 = vdwg.mxu0
    %3714 = vmatpush.msra.mxu0 %v3497
    %3715 = vmatpush.msra.mxu0 %v3492
    %3716 = vmatpush.msra.mxu0 %v3487
    %3717 = vmatpush.msra.mxu0 %v3482
    %3718 = vmatpush.msra.mxu0 %v3477
    %3719 = vmatpush.msra.mxu0 %v3472
    %3720 = vmatpush.msra.mxu0 %v3467
    %3721 = vmatpush.msra.mxu0 %v3462
    %3722 = vmatpush.msra.mxu0 %v3457
    %3723 = vmatpush.msra.mxu0 %v3452
    %3724 = vmatpush.msra.mxu0 %v3447
    %3725 = vmatpush.msra.mxu0 %v3442
    %3726 = vmatpush.msra.mxu0 %v3437
    %3727 = vmatpush.msra.mxu0 %v3432
    %3728 = vmatpush.msra.mxu0 %v3427
    %3729 = vmatpush.msra.mxu0 %v3422
    %3730 = vmatmul.f32.gmra.mxu0 %v3259
    %v3731 = vpop.f32.mrf.mxu0
    %v3732 = vadd.f32 %v3712, %v3731
    %3733 = vdwg.mxu0
    %3734 = vmatpush.msra.mxu0 %v3577
    %3735 = vmatpush.msra.mxu0 %v3572
    %3736 = vmatpush.msra.mxu0 %v3567
    %3737 = vmatpush.msra.mxu0 %v3562
    %3738 = vmatpush.msra.mxu0 %v3557
    %3739 = vmatpush.msra.mxu0 %v3552
    %3740 = vmatpush.msra.mxu0 %v3547
    %3741 = vmatpush.msra.mxu0 %v3542
    %3742 = vmatpush.msra.mxu0 %v3537
    %3743 = vmatpush.msra.mxu0 %v3532
    %3744 = vmatpush.msra.mxu0 %v3527
    %3745 = vmatpush.msra.mxu0 %v3522
    %3746 = vmatpush.msra.mxu0 %v3517
    %3747 = vmatpush.msra.mxu0 %v3512
    %3748 = vmatpush.msra.mxu0 %v3507
    %3749 = vmatpush.msra.mxu0 %v3502
    %3750 = vmatmul.f32.gmra.mxu0 %v3260
    %v3751 = vpop.f32.mrf.mxu0
    %v3752 = vadd.f32 %v3732, %v3751
    %3753 = vdwg.mxu0
    %3754 = vmatpush.msra.mxu0 %v3657
    %3755 = vmatpush.msra.mxu0 %v3652
    %3756 = vmatpush.msra.mxu0 %v3647
    %3757 = vmatpush.msra.mxu0 %v3642
    %3758 = vmatpush.msra.mxu0 %v3637
    %3759 = vmatpush.msra.mxu0 %v3632
    %3760 = vmatpush.msra.mxu0 %v3627
    %3761 = vmatpush.msra.mxu0 %v3622
    %3762 = vmatpush.msra.mxu0 %v3617
    %3763 = vmatpush.msra.mxu0 %v3612
    %3764 = vmatpush.msra.mxu0 %v3607
    %3765 = vmatpush.msra.mxu0 %v3602
    %3766 = vmatpush.msra.mxu0 %v3597
    %3767 = vmatpush.msra.mxu0 %v3592
    %3768 = vmatpush.msra.mxu0 %v3587
    %3769 = vmatpush.msra.mxu0 %v3582
    %3770 = vmatmul.f32.gmra.mxu0 %v3261
    %v3771 = vpop.f32.mrf.mxu0
    %v3772 = vadd.f32 %v3752, %v3771
    %3773 = vdwg.mxu0
    %3774 = vmatpush.msra.mxu0 %v3338
    %3775 = vmatpush.msra.mxu0 %v3333
    %3776 = vmatpush.msra.mxu0 %v3328
    %3777 = vmatpush.msra.mxu0 %v3323
    %3778 = vmatpush.msra.mxu0 %v3318
    %3779 = vmatpush.msra.mxu0 %v3313
    %3780 = vmatpush.msra.mxu0 %v3308
    %3781 = vmatpush.msra.mxu0 %v3303
    %3782 = vmatpush.msra.mxu0 %v3298
    %3783 = vmatpush.msra.mxu0 %v3293
    %3784 = vmatpush.msra.mxu0 %v3288
    %3785 = vmatpush.msra.mxu0 %v3283
    %3786 = vmatpush.msra.mxu0 %v3278
    %3787 = vmatpush.msra.mxu0 %v3273
    %3788 = vmatpush.msra.mxu0 %v3268
    %3789 = vmatpush.msra.mxu0 %v3263
    %3790 = vmatmul.f32.gmra.mxu0 %v3257
    %v3791 = vpop.f32.mrf.mxu0
    %v3792 = vadd.f32 %v3665, %v3791
    %3793 = vdwg.mxu0
    %3794 = vmatpush.msra.mxu0 %v3418
    %3795 = vmatpush.msra.mxu0 %v3413
    %3796 = vmatpush.msra.mxu0 %v3408
    %3797 = vmatpush.msra.mxu0 %v3403
    %3798 = vmatpush.msra.mxu0 %v3398
    %3799 = vmatpush.msra.mxu0 %v3393
    %3800 = vmatpush.msra.mxu0 %v3388
    %3801 = vmatpush.msra.mxu0 %v3383
    %3802 = vmatpush.msra.mxu0 %v3378
    %3803 = vmatpush.msra.mxu0 %v3373
    %3804 = vmatpush.msra.mxu0 %v3368
    %3805 = vmatpush.msra.mxu0 %v3363
    %3806 = vmatpush.msra.mxu0 %v3358
    %3807 = vmatpush.msra.mxu0 %v3353
    %3808 = vmatpush.msra.mxu0 %v3348
    %3809 = vmatpush.msra.mxu0 %v3343
    %3810 = vmatmul.f32.gmra.mxu0 %v3258
    %v3811 = vpop.f32.mrf.mxu0
    %v3812 = vadd.f32 %v3792, %v3811
    %3813 = vdwg.mxu0
    %3814 = vmatpush.msra.mxu0 %v3498
    %3815 = vmatpush.msra.mxu0 %v3493
    %3816 = vmatpush.msra.mxu0 %v3488
    %3817 = vmatpush.msra.mxu0 %v3483
    %3818 = vmatpush.msra.mxu0 %v3478
    %3819 = vmatpush.msra.mxu0 %v3473
    %3820 = vmatpush.msra.mxu0 %v3468
    %3821 = vmatpush.msra.mxu0 %v3463
    %3822 = vmatpush.msra.mxu0 %v3458
    %3823 = vmatpush.msra.mxu0 %v3453
    %3824 = vmatpush.msra.mxu0 %v3448
    %3825 = vmatpush.msra.mxu0 %v3443
    %3826 = vmatpush.msra.mxu0 %v3438
    %3827 = vmatpush.msra.mxu0 %v3433
    %3828 = vmatpush.msra.mxu0 %v3428
    %3829 = vmatpush.msra.mxu0 %v3423
    %3830 = vmatmul.f32.gmra.mxu0 %v3259
    %v3831 = vpop.f32.mrf.mxu0
    %v3832 = vadd.f32 %v3812, %v3831
    %3833 = vdwg.mxu0
    %3834 = vmatpush.msra.mxu0 %v3578
    %3835 = vmatpush.msra.mxu0 %v3573
    %3836 = vmatpush.msra.mxu0 %v3568
    %3837 = vmatpush.msra.mxu0 %v3563
    %3838 = vmatpush.msra.mxu0 %v3558
    %3839 = vmatpush.msra.mxu0 %v3553
    %3840 = vmatpush.msra.mxu0 %v3548
    %3841 = vmatpush.msra.mxu0 %v3543
    %3842 = vmatpush.msra.mxu0 %v3538
    %3843 = vmatpush.msra.mxu0 %v3533
    %3844 = vmatpush.msra.mxu0 %v3528
    %3845 = vmatpush.msra.mxu0 %v3523
    %3846 = vmatpush.msra.mxu0 %v3518
    %3847 = vmatpush.msra.mxu0 %v3513
    %3848 = vmatpush.msra.mxu0 %v3508
    %3849 = vmatpush.msra.mxu0 %v3503
    %3850 = vmatmul.f32.gmra.mxu0 %v3260
    %v3851 = vpop.f32.mrf.mxu0
    %v3852 = vadd.f32 %v3832, %v3851
    %3853 = vdwg.mxu0
    %3854 = vmatpush.msra.mxu0 %v3658
    %3855 = vmatpush.msra.mxu0 %v3653
    %3856 = vmatpush.msra.mxu0 %v3648
    %3857 = vmatpush.msra.mxu0 %v3643
    %3858 = vmatpush.msra.mxu0 %v3638
    %3859 = vmatpush.msra.mxu0 %v3633
    %3860 = vmatpush.msra.mxu0 %v3628
    %3861 = vmatpush.msra.mxu0 %v3623
    %3862 = vmatpush.msra.mxu0 %v3618
    %3863 = vmatpush.msra.mxu0 %v3613
    %3864 = vmatpush.msra.mxu0 %v3608
    %3865 = vmatpush.msra.mxu0 %v3603
    %3866 = vmatpush.msra.mxu0 %v3598
    %3867 = vmatpush.msra.mxu0 %v3593
    %3868 = vmatpush.msra.mxu0 %v3588
    %3869 = vmatpush.msra.mxu0 %v3583
    %3870 = vmatmul.f32.gmra.mxu0 %v3261
    %v3871 = vpop.f32.mrf.mxu0
    %v3872 = vadd.f32 %v3852, %v3871
    %3873 = vdwg.mxu0
    %3874 = vmatpush.msra.mxu0 %v3339
    %3875 = vmatpush.msra.mxu0 %v3334
    %3876 = vmatpush.msra.mxu0 %v3329
    %3877 = vmatpush.msra.mxu0 %v3324
    %3878 = vmatpush.msra.mxu0 %v3319
    %3879 = vmatpush.msra.mxu0 %v3314
    %3880 = vmatpush.msra.mxu0 %v3309
    %3881 = vmatpush.msra.mxu0 %v3304
    %3882 = vmatpush.msra.mxu0 %v3299
    %3883 = vmatpush.msra.mxu0 %v3294
    %3884 = vmatpush.msra.mxu0 %v3289
    %3885 = vmatpush.msra.mxu0 %v3284
    %3886 = vmatpush.msra.mxu0 %v3279
    %3887 = vmatpush.msra.mxu0 %v3274
    %3888 = vmatpush.msra.mxu0 %v3269
    %3889 = vmatpush.msra.mxu0 %v3264
    %3890 = vmatmul.f32.gmra.mxu0 %v3257
    %v3891 = vpop.f32.mrf.mxu0
    %v3892 = vadd.f32 %v3666, %v3891
    %3893 = vdwg.mxu0
    %3894 = vmatpush.msra.mxu0 %v3419
    %3895 = vmatpush.msra.mxu0 %v3414
    %3896 = vmatpush.msra.mxu0 %v3409
    %3897 = vmatpush.msra.mxu0 %v3404
    %3898 = vmatpush.msra.mxu0 %v3399
    %3899 = vmatpush.msra.mxu0 %v3394
    %3900 = vmatpush.msra.mxu0 %v3389
    %3901 = vmatpush.msra.mxu0 %v3384
    %3902 = vmatpush.msra.mxu0 %v3379
    %3903 = vmatpush.msra.mxu0 %v3374
    %3904 = vmatpush.msra.mxu0 %v3369
    %3905 = vmatpush.msra.mxu0 %v3364
    %3906 = vmatpush.msra.mxu0 %v3359
    %3907 = vmatpush.msra.mxu0 %v3354
    %3908 = vmatpush.msra.mxu0 %v3349
    %3909 = vmatpush.msra.mxu0 %v3344
    %3910 = vmatmul.f32.gmra.mxu0 %v3258
    %v3911 = vpop.f32.mrf.mxu0
    %v3912 = vadd.f32 %v3892, %v3911
    %3913 = vdwg.mxu0
    %3914 = vmatpush.msra.mxu0 %v3499
    %3915 = vmatpush.msra.mxu0 %v3494
    %3916 = vmatpush.msra.mxu0 %v3489
    %3917 = vmatpush.msra.mxu0 %v3484
    %3918 = vmatpush.msra.mxu0 %v3479
    %3919 = vmatpush.msra.mxu0 %v3474
    %3920 = vmatpush.msra.mxu0 %v3469
    %3921 = vmatpush.msra.mxu0 %v3464
    %3922 = vmatpush.msra.mxu0 %v3459
    %3923 = vmatpush.msra.mxu0 %v3454
    %3924 = vmatpush.msra.mxu0 %v3449
    %3925 = vmatpush.msra.mxu0 %v3444
    %3926 = vmatpush.msra.mxu0 %v3439
    %3927 = vmatpush.msra.mxu0 %v3434
    %3928 = vmatpush.msra.mxu0 %v3429
    %3929 = vmatpush.msra.mxu0 %v3424
    %3930 = vmatmul.f32.gmra.mxu0 %v3259
    %v3931 = vpop.f32.mrf.mxu0
    %v3932 = vadd.f32 %v3912, %v3931
    %3933 = vdwg.mxu0
    %3934 = vmatpush.msra.mxu0 %v3579
    %3935 = vmatpush.msra.mxu0 %v3574
    %3936 = vmatpush.msra.mxu0 %v3569
    %3937 = vmatpush.msra.mxu0 %v3564
    %3938 = vmatpush.msra.mxu0 %v3559
    %3939 = vmatpush.msra.mxu0 %v3554
    %3940 = vmatpush.msra.mxu0 %v3549
    %3941 = vmatpush.msra.mxu0 %v3544
    %3942 = vmatpush.msra.mxu0 %v3539
    %3943 = vmatpush.msra.mxu0 %v3534
    %3944 = vmatpush.msra.mxu0 %v3529
    %3945 = vmatpush.msra.mxu0 %v3524
    %3946 = vmatpush.msra.mxu0 %v3519
    %3947 = vmatpush.msra.mxu0 %v3514
    %3948 = vmatpush.msra.mxu0 %v3509
    %3949 = vmatpush.msra.mxu0 %v3504
    %3950 = vmatmul.f32.gmra.mxu0 %v3260
    %v3951 = vpop.f32.mrf.mxu0
    %v3952 = vadd.f32 %v3932, %v3951
    %3953 = vdwg.mxu0
    %3954 = vmatpush.msra.mxu0 %v3659
    %3955 = vmatpush.msra.mxu0 %v3654
    %3956 = vmatpush.msra.mxu0 %v3649
    %3957 = vmatpush.msra.mxu0 %v3644
    %3958 = vmatpush.msra.mxu0 %v3639
    %3959 = vmatpush.msra.mxu0 %v3634
    %3960 = vmatpush.msra.mxu0 %v3629
    %3961 = vmatpush.msra.mxu0 %v3624
    %3962 = vmatpush.msra.mxu0 %v3619
    %3963 = vmatpush.msra.mxu0 %v3614
    %3964 = vmatpush.msra.mxu0 %v3609
    %3965 = vmatpush.msra.mxu0 %v3604
    %3966 = vmatpush.msra.mxu0 %v3599
    %3967 = vmatpush.msra.mxu0 %v3594
    %3968 = vmatpush.msra.mxu0 %v3589
    %3969 = vmatpush.msra.mxu0 %v3584
    %3970 = vmatmul.f32.gmra.mxu0 %v3261
    %v3971 = vpop.f32.mrf.mxu0
    %v3972 = vadd.f32 %v3952, %v3971
    %3973 = vdwg.mxu0
    %3974 = vmatpush.msra.mxu0 %v3340
    %3975 = vmatpush.msra.mxu0 %v3335
    %3976 = vmatpush.msra.mxu0 %v3330
    %3977 = vmatpush.msra.mxu0 %v3325
    %3978 = vmatpush.msra.mxu0 %v3320
    %3979 = vmatpush.msra.mxu0 %v3315
    %3980 = vmatpush.msra.mxu0 %v3310
    %3981 = vmatpush.msra.mxu0 %v3305
    %3982 = vmatpush.msra.mxu0 %v3300
    %3983 = vmatpush.msra.mxu0 %v3295
    %3984 = vmatpush.msra.mxu0 %v3290
    %3985 = vmatpush.msra.mxu0 %v3285
    %3986 = vmatpush.msra.mxu0 %v3280
    %3987 = vmatpush.msra.mxu0 %v3275
    %3988 = vmatpush.msra.mxu0 %v3270
    %3989 = vmatpush.msra.mxu0 %v3265
    %3990 = vmatmul.f32.gmra.mxu0 %v3257
    %v3991 = vpop.f32.mrf.mxu0
    %v3992 = vadd.f32 %v3667, %v3991
    %3993 = vdwg.mxu0
    %3994 = vmatpush.msra.mxu0 %v3420
    %3995 = vmatpush.msra.mxu0 %v3415
    %3996 = vmatpush.msra.mxu0 %v3410
    %3997 = vmatpush.msra.mxu0 %v3405
    %3998 = vmatpush.msra.mxu0 %v3400
    %3999 = vmatpush.msra.mxu0 %v3395
    %4000 = vmatpush.msra.mxu0 %v3390
    %4001 = vmatpush.msra.mxu0 %v3385
    %4002 = vmatpush.msra.mxu0 %v3380
    %4003 = vmatpush.msra.mxu0 %v3375
    %4004 = vmatpush.msra.mxu0 %v3370
    %4005 = vmatpush.msra.mxu0 %v3365
    %4006 = vmatpush.msra.mxu0 %v3360
    %4007 = vmatpush.msra.mxu0 %v3355
    %4008 = vmatpush.msra.mxu0 %v3350
    %4009 = vmatpush.msra.mxu0 %v3345
    %4010 = vmatmul.f32.gmra.mxu0 %v3258
    %v4011 = vpop.f32.mrf.mxu0
    %v4012 = vadd.f32 %v3992, %v4011
    %4013 = vdwg.mxu0
    %4014 = vmatpush.msra.mxu0 %v3500
    %4015 = vmatpush.msra.mxu0 %v3495
    %4016 = vmatpush.msra.mxu0 %v3490
    %4017 = vmatpush.msra.mxu0 %v3485
    %4018 = vmatpush.msra.mxu0 %v3480
    %4019 = vmatpush.msra.mxu0 %v3475
    %4020 = vmatpush.msra.mxu0 %v3470
    %4021 = vmatpush.msra.mxu0 %v3465
    %4022 = vmatpush.msra.mxu0 %v3460
    %4023 = vmatpush.msra.mxu0 %v3455
    %4024 = vmatpush.msra.mxu0 %v3450
    %4025 = vmatpush.msra.mxu0 %v3445
    %4026 = vmatpush.msra.mxu0 %v3440
    %4027 = vmatpush.msra.mxu0 %v3435
    %4028 = vmatpush.msra.mxu0 %v3430
    %4029 = vmatpush.msra.mxu0 %v3425
    %4030 = vmatmul.f32.gmra.mxu0 %v3259
    %v4031 = vpop.f32.mrf.mxu0
    %v4032 = vadd.f32 %v4012, %v4031
    %4033 = vdwg.mxu0
    %4034 = vmatpush.msra.mxu0 %v3580
    %4035 = vmatpush.msra.mxu0 %v3575
    %4036 = vmatpush.msra.mxu0 %v3570
    %4037 = vmatpush.msra.mxu0 %v3565
    %4038 = vmatpush.msra.mxu0 %v3560
    %4039 = vmatpush.msra.mxu0 %v3555
    %4040 = vmatpush.msra.mxu0 %v3550
    %4041 = vmatpush.msra.mxu0 %v3545
    %4042 = vmatpush.msra.mxu0 %v3540
    %4043 = vmatpush.msra.mxu0 %v3535
    %4044 = vmatpush.msra.mxu0 %v3530
    %4045 = vmatpush.msra.mxu0 %v3525
    %4046 = vmatpush.msra.mxu0 %v3520
    %4047 = vmatpush.msra.mxu0 %v3515
    %4048 = vmatpush.msra.mxu0 %v3510
    %4049 = vmatpush.msra.mxu0 %v3505
    %4050 = vmatmul.f32.gmra.mxu0 %v3260
    %v4051 = vpop.f32.mrf.mxu0
    %v4052 = vadd.f32 %v4032, %v4051
    %4053 = vdwg.mxu0
    %4054 = vmatpush.msra.mxu0 %v3660
    %4055 = vmatpush.msra.mxu0 %v3655
    %4056 = vmatpush.msra.mxu0 %v3650
    %4057 = vmatpush.msra.mxu0 %v3645
    %4058 = vmatpush.msra.mxu0 %v3640
    %4059 = vmatpush.msra.mxu0 %v3635
    %4060 = vmatpush.msra.mxu0 %v3630
    %4061 = vmatpush.msra.mxu0 %v3625
    %4062 = vmatpush.msra.mxu0 %v3620
    %4063 = vmatpush.msra.mxu0 %v3615
    %4064 = vmatpush.msra.mxu0 %v3610
    %4065 = vmatpush.msra.mxu0 %v3605
    %4066 = vmatpush.msra.mxu0 %v3600
    %4067 = vmatpush.msra.mxu0 %v3595
    %4068 = vmatpush.msra.mxu0 %v3590
    %4069 = vmatpush.msra.mxu0 %v3585
    %4070 = vmatmul.f32.gmra.mxu0 %v3261
    %v4071 = vpop.f32.mrf.mxu0
    %v4072 = vadd.f32 %v4052, %v4071
    %4073 = vdwg.mxu0
    %4074 = vmatpush.msra.mxu0 %v3341
    %4075 = vmatpush.msra.mxu0 %v3336
    %4076 = vmatpush.msra.mxu0 %v3331
    %4077 = vmatpush.msra.mxu0 %v3326
    %4078 = vmatpush.msra.mxu0 %v3321
    %4079 = vmatpush.msra.mxu0 %v3316
    %4080 = vmatpush.msra.mxu0 %v3311
    %4081 = vmatpush.msra.mxu0 %v3306
    %4082 = vmatpush.msra.mxu0 %v3301
    %4083 = vmatpush.msra.mxu0 %v3296
    %4084 = vmatpush.msra.mxu0 %v3291
    %4085 = vmatpush.msra.mxu0 %v3286
    %4086 = vmatpush.msra.mxu0 %v3281
    %4087 = vmatpush.msra.mxu0 %v3276
    %4088 = vmatpush.msra.mxu0 %v3271
    %4089 = vmatpush.msra.mxu0 %v3266
    %4090 = vmatmul.f32.gmra.mxu0 %v3257
    %v4091 = vpop.f32.mrf.mxu0
    %v4092 = vadd.f32 %v3668, %v4091
    %4093 = vdwg.mxu0
    %4094 = vmatpush.msra.mxu0 %v3421
    %4095 = vmatpush.msra.mxu0 %v3416
    %4096 = vmatpush.msra.mxu0 %v3411
    %4097 = vmatpush.msra.mxu0 %v3406
    %4098 = vmatpush.msra.mxu0 %v3401
    %4099 = vmatpush.msra.mxu0 %v3396
    %4100 = vmatpush.msra.mxu0 %v3391
    %4101 = vmatpush.msra.mxu0 %v3386
    %4102 = vmatpush.msra.mxu0 %v3381
    %4103 = vmatpush.msra.mxu0 %v3376
    %4104 = vmatpush.msra.mxu0 %v3371
    %4105 = vmatpush.msra.mxu0 %v3366
    %4106 = vmatpush.msra.mxu0 %v3361
    %4107 = vmatpush.msra.mxu0 %v3356
    %4108 = vmatpush.msra.mxu0 %v3351
    %4109 = vmatpush.msra.mxu0 %v3346
    %4110 = vmatmul.f32.gmra.mxu0 %v3258
    %v4111 = vpop.f32.mrf.mxu0
    %v4112 = vadd.f32 %v4092, %v4111
    %4113 = vdwg.mxu0
    %4114 = vmatpush.msra.mxu0 %v3501
    %4115 = vmatpush.msra.mxu0 %v3496
    %4116 = vmatpush.msra.mxu0 %v3491
    %4117 = vmatpush.msra.mxu0 %v3486
    %4118 = vmatpush.msra.mxu0 %v3481
    %4119 = vmatpush.msra.mxu0 %v3476
    %4120 = vmatpush.msra.mxu0 %v3471
    %4121 = vmatpush.msra.mxu0 %v3466
    %4122 = vmatpush.msra.mxu0 %v3461
    %4123 = vmatpush.msra.mxu0 %v3456
    %4124 = vmatpush.msra.mxu0 %v3451
    %4125 = vmatpush.msra.mxu0 %v3446
    %4126 = vmatpush.msra.mxu0 %v3441
    %4127 = vmatpush.msra.mxu0 %v3436
    %4128 = vmatpush.msra.mxu0 %v3431
    %4129 = vmatpush.msra.mxu0 %v3426
    %4130 = vmatmul.f32.gmra.mxu0 %v3259
    %v4131 = vpop.f32.mrf.mxu0
    %v4132 = vadd.f32 %v4112, %v4131
    %4133 = vdwg.mxu0
    %4134 = vmatpush.msra.mxu0 %v3581
    %4135 = vmatpush.msra.mxu0 %v3576
    %4136 = vmatpush.msra.mxu0 %v3571
    %4137 = vmatpush.msra.mxu0 %v3566
    %4138 = vmatpush.msra.mxu0 %v3561
    %4139 = vmatpush.msra.mxu0 %v3556
    %4140 = vmatpush.msra.mxu0 %v3551
    %4141 = vmatpush.msra.mxu0 %v3546
    %4142 = vmatpush.msra.mxu0 %v3541
    %4143 = vmatpush.msra.mxu0 %v3536
    %4144 = vmatpush.msra.mxu0 %v3531
    %4145 = vmatpush.msra.mxu0 %v3526
    %4146 = vmatpush.msra.mxu0 %v3521
    %4147 = vmatpush.msra.mxu0 %v3516
    %4148 = vmatpush.msra.mxu0 %v3511
    %4149 = vmatpush.msra.mxu0 %v3506
    %4150 = vmatmul.f32.gmra.mxu0 %v3260
    %v4151 = vpop.f32.mrf.mxu0
    %v4152 = vadd.f32 %v4132, %v4151
    %4153 = vdwg.mxu0
    %4154 = vmatpush.msra.mxu0 %v3661
    %4155 = vmatpush.msra.mxu0 %v3656
    %4156 = vmatpush.msra.mxu0 %v3651
    %4157 = vmatpush.msra.mxu0 %v3646
    %4158 = vmatpush.msra.mxu0 %v3641
    %4159 = vmatpush.msra.mxu0 %v3636
    %4160 = vmatpush.msra.mxu0 %v3631
    %4161 = vmatpush.msra.mxu0 %v3626
    %4162 = vmatpush.msra.mxu0 %v3621
    %4163 = vmatpush.msra.mxu0 %v3616
    %4164 = vmatpush.msra.mxu0 %v3611
    %4165 = vmatpush.msra.mxu0 %v3606
    %4166 = vmatpush.msra.mxu0 %v3601
    %4167 = vmatpush.msra.mxu0 %v3596
    %4168 = vmatpush.msra.mxu0 %v3591
    %4169 = vmatpush.msra.mxu0 %v3586
    %4170 = vmatmul.f32.gmra.mxu0 %v3261
    %v4171 = vpop.f32.mrf.mxu0
    %v4172 = vadd.f32 %v4152, %v4171
    %4173 = vdwg.mxu0
    %v4174 = vmul.f32 %v3772, %v3071
    %v4175 = vmul.f32 %v3872, %v3071
    %v4176 = vmul.f32 %v3972, %v3071
    %v4177 = vmul.f32 %v4072, %v3071
    %v4178 = vmul.f32 %v4172, %v3071
    %v4179 = vrot.slane %v4174, 4
    %v4180 = vadd.f32 %v4174, %v4179
    %v4181 = vrot.slane %v4180, 2
    %v4182 = vadd.f32 %v4180, %v4181
    %v4183 = vrot.slane %v4182, 1
    %v4184 = vadd.f32 %v4182, %v4183
    %v4185 = vrot.slane %v4175, 4
    %v4186 = vadd.f32 %v4175, %v4185
    %v4187 = vrot.slane %v4186, 2
    %v4188 = vadd.f32 %v4186, %v4187
    %v4189 = vrot.slane %v4188, 1
    %v4190 = vadd.f32 %v4188, %v4189
    %v4191 = vrot.slane %v4176, 4
    %v4192 = vadd.f32 %v4176, %v4191
    %v4193 = vrot.slane %v4192, 2
    %v4194 = vadd.f32 %v4192, %v4193
    %v4195 = vrot.slane %v4194, 1
    %v4196 = vadd.f32 %v4194, %v4195
    %v4197 = vrot.slane %v4177, 4
    %v4198 = vadd.f32 %v4177, %v4197
    %v4199 = vrot.slane %v4198, 2
    %v4200 = vadd.f32 %v4198, %v4199
    %v4201 = vrot.slane %v4200, 1
    %v4202 = vadd.f32 %v4200, %v4201
    %v4203 = vrot.slane %v4178, 4
    %v4204 = vadd.f32 %v4178, %v4203
    %v4205 = vrot.slane %v4204, 2
    %v4206 = vadd.f32 %v4204, %v4205
    %v4207 = vrot.slane %v4206, 1
    %v4208 = vadd.f32 %v4206, %v4207
    %v4209 = vmul.f32 %v4184, 0.5
    %v4210 = vmul.f32 %v4190, 0.5
    %v4211 = vmul.f32 %v4196, 0.5
    %v4212 = vmul.f32 %v4202, 0.5
    %v4213 = vmul.f32 %v4208, 0.5
    %v4214 = vsub.f32 %v3772, %v4209
    %v4215 = vsub.f32 %v3872, %v4210
    %v4216 = vsub.f32 %v3972, %v4211
    %v4217 = vsub.f32 %v4072, %v4212
    %v4218 = vsub.f32 %v4172, %v4213
    %v4219 = vmul.f32 %v4214, %v4214
    %v4220 = vmul.f32 %v4215, %v4215
    %v4221 = vmul.f32 %v4216, %v4216
    %v4222 = vmul.f32 %v4217, %v4217
    %v4223 = vmul.f32 %v4218, %v4218
    %v4224 = vmul.f32 %v4219, %v3071
    %v4225 = vmul.f32 %v4220, %v3071
    %v4226 = vmul.f32 %v4221, %v3071
    %v4227 = vmul.f32 %v4222, %v3071
    %v4228 = vmul.f32 %v4223, %v3071
    %v4229 = vrot.slane %v4224, 4
    %v4230 = vadd.f32 %v4224, %v4229
    %v4231 = vrot.slane %v4230, 2
    %v4232 = vadd.f32 %v4230, %v4231
    %v4233 = vrot.slane %v4232, 1
    %v4234 = vadd.f32 %v4232, %v4233
    %v4235 = vrot.slane %v4225, 4
    %v4236 = vadd.f32 %v4225, %v4235
    %v4237 = vrot.slane %v4236, 2
    %v4238 = vadd.f32 %v4236, %v4237
    %v4239 = vrot.slane %v4238, 1
    %v4240 = vadd.f32 %v4238, %v4239
    %v4241 = vrot.slane %v4226, 4
    %v4242 = vadd.f32 %v4226, %v4241
    %v4243 = vrot.slane %v4242, 2
    %v4244 = vadd.f32 %v4242, %v4243
    %v4245 = vrot.slane %v4244, 1
    %v4246 = vadd.f32 %v4244, %v4245
    %v4247 = vrot.slane %v4227, 4
    %v4248 = vadd.f32 %v4227, %v4247
    %v4249 = vrot.slane %v4248, 2
    %v4250 = vadd.f32 %v4248, %v4249
    %v4251 = vrot.slane %v4250, 1
    %v4252 = vadd.f32 %v4250, %v4251
    %v4253 = vrot.slane %v4228, 4
    %v4254 = vadd.f32 %v4228, %v4253
    %v4255 = vrot.slane %v4254, 2
    %v4256 = vadd.f32 %v4254, %v4255
    %v4257 = vrot.slane %v4256, 1
    %v4258 = vadd.f32 %v4256, %v4257
    %v4259 = vmul.f32 %v4234, 0.5
    %v4260 = vmul.f32 %v4240, 0.5
    %v4261 = vmul.f32 %v4246, 0.5
    %v4262 = vmul.f32 %v4252, 0.5
    %v4263 = vmul.f32 %v4258, 0.5
    %v4264 = vadd.f32 %v4259, 1e-05
    %v4265 = vadd.f32 %v4260, 1e-05
    %v4266 = vadd.f32 %v4261, 1e-05
    %v4267 = vadd.f32 %v4262, 1e-05
    %v4268 = vadd.f32 %v4263, 1e-05
    %v4269 = vrsqrt.pop %v4264
    %v4270 = vmul.f32 %v4269, %v4264
    %v4271 = vmul.f32 %v4270, %v4269
    %v4272 = vmul.f32 0.5, %v4271
    %v4273 = vsub.f32 1.5, %v4272
    %v4274 = vmul.f32 %v4269, %v4273
    %vm4275 = vweird.f32 %v4264
    %vm4276 = vweird.f32 %v4269
    %vm4277 = vmor %vm4275, %vm4276
    %v4278 = vsel %vm4277, %v4269, %v4274
    %v4279 = vrsqrt.pop %v4265
    %v4280 = vmul.f32 %v4279, %v4265
    %v4281 = vmul.f32 %v4280, %v4279
    %v4282 = vmul.f32 0.5, %v4281
    %v4283 = vsub.f32 1.5, %v4282
    %v4284 = vmul.f32 %v4279, %v4283
    %vm4285 = vweird.f32 %v4265
    %vm4286 = vweird.f32 %v4279
    %vm4287 = vmor %vm4285, %vm4286
    %v4288 = vsel %vm4287, %v4279, %v4284
    %v4289 = vrsqrt.pop %v4266
    %v4290 = vmul.f32 %v4289, %v4266
    %v4291 = vmul.f32 %v4290, %v4289
    %v4292 = vmul.f32 0.5, %v4291
    %v4293 = vsub.f32 1.5, %v4292
    %v4294 = vmul.f32 %v4289, %v4293
    %vm4295 = vweird.f32 %v4266
    %vm4296 = vweird.f32 %v4289
    %vm4297 = vmor %vm4295, %vm4296
    %v4298 = vsel %vm4297, %v4289, %v4294
    %v4299 = vrsqrt.pop %v4267
    %v4300 = vmul.f32 %v4299, %v4267
    %v4301 = vmul.f32 %v4300, %v4299
    %v4302 = vmul.f32 0.5, %v4301
    %v4303 = vsub.f32 1.5, %v4302
    %v4304 = vmul.f32 %v4299, %v4303
    %vm4305 = vweird.f32 %v4267
    %vm4306 = vweird.f32 %v4299
    %vm4307 = vmor %vm4305, %vm4306
    %v4308 = vsel %vm4307, %v4299, %v4304
    %v4309 = vrsqrt.pop %v4268
    %v4310 = vmul.f32 %v4309, %v4268
    %v4311 = vmul.f32 %v4310, %v4309
    %v4312 = vmul.f32 0.5, %v4311
    %v4313 = vsub.f32 1.5, %v4312
    %v4314 = vmul.f32 %v4309, %v4313
    %vm4315 = vweird.f32 %v4268
    %vm4316 = vweird.f32 %v4309
    %vm4317 = vmor %vm4315, %vm4316
    %v4318 = vsel %vm4317, %v4309, %v4314
    %v4319 = vmul.f32 %v4214, %v4278
    %v4320 = vmul.f32 %v4215, %v4288
    %v4321 = vmul.f32 %v4216, %v4298
    %v4322 = vmul.f32 %v4217, %v4308
    %v4323 = vmul.f32 %v4218, %v4318
    %v4324 = vld [vmem:[#allocation24] sm:$0x1f]
    %v4326 = vperm.slane %v4324, 0
    %v4327 = vperm.slane %v4324, 1
    %v4328 = vperm.slane %v4324, 2
    %v4329 = vperm.slane %v4324, 3
    %v4330 = vperm.slane %v4324, 4
    %v4336 = vmul.f32 %v4319, %v4326
    %v4337 = vmul.f32 %v4320, %v4327
    %v4338 = vmul.f32 %v4321, %v4328
    %v4339 = vmul.f32 %v4322, %v4329
    %v4340 = vmul.f32 %v4323, %v4330
    %v4341 = vld [vmem:[#allocation25] sm:$0x1f]
    %v4343 = vperm.slane %v4341, 0
    %v4344 = vperm.slane %v4341, 1
    %v4345 = vperm.slane %v4341, 2
    %v4346 = vperm.slane %v4341, 3
    %v4347 = vperm.slane %v4341, 4
    %v4353 = vadd.f32 %v4336, %v4343
    %v4354 = vadd.f32 %v4337, %v4344
    %v4355 = vadd.f32 %v4338, %v4345
    %v4356 = vadd.f32 %v4339, %v4346
    %v4357 = vadd.f32 %v4340, %v4347
    %v4358 = vld [vmem:[#allocation27] sm:$0xff]
    %v4359 = vld [vmem:[#allocation27 + $0x8] sm:$0xff]
    %v4360 = vld [vmem:[#allocation27 + $0x10] sm:$0xff]
    %v4361 = vld [vmem:[#allocation27 + $0x18] sm:$0xff]
    %v4362 = vld [vmem:[#allocation27 + $0x20] sm:$0xff]
    %v4363 = vld [vmem:[#allocation27 + $0x28] sm:$0xff]
    %v4364 = vld [vmem:[#allocation27 + $0x30] sm:$0xff]
    %v4365 = vld [vmem:[#allocation27 + $0x38] sm:$0xff]
    %v4366 = vld [vmem:[#allocation27 + $0x40] sm:$0xff]
    %v4367 = vld [vmem:[#allocation27 + $0x48] sm:$0xff]
    %v4368 = vld [vmem:[#allocation27 + $0x50] sm:$0xff]
    %v4369 = vld [vmem:[#allocation27 + $0x58] sm:$0xff]
    %v4370 = vld [vmem:[#allocation27 + $0x60] sm:$0xff]
    %v4371 = vld [vmem:[#allocation27 + $0x68] sm:$0xff]
    %v4372 = vld [vmem:[#allocation27 + $0x70] sm:$0xff]
    %v4373 = vld [vmem:[#allocation27 + $0x78] sm:$0xff]
    %v4374 = vld [vmem:[#allocation27 + $0x80] sm:$0xff]
    %v4375 = vld [vmem:[#allocation27 + $0x88] sm:$0xff]
    %v4376 = vld [vmem:[#allocation27 + $0x90] sm:$0xff]
    %v4377 = vld [vmem:[#allocation27 + $0x98] sm:$0xff]
    %v4378 = vld [vmem:[#allocation27 + $0xa0] sm:$0xff]
    %v4379 = vld [vmem:[#allocation27 + $0xa8] sm:$0xff]
    %v4380 = vld [vmem:[#allocation27 + $0xb0] sm:$0xff]
    %v4381 = vld [vmem:[#allocation27 + $0xb8] sm:$0xff]
    %v4382 = vld [vmem:[#allocation27 + $0xc0] sm:$0xff]
    %v4383 = vld [vmem:[#allocation27 + $0xc8] sm:$0xff]
    %v4384 = vld [vmem:[#allocation27 + $0xd0] sm:$0xff]
    %v4385 = vld [vmem:[#allocation27 + $0xd8] sm:$0xff]
    %v4386 = vld [vmem:[#allocation27 + $0xe0] sm:$0xff]
    %v4387 = vld [vmem:[#allocation27 + $0xe8] sm:$0xff]
    %v4388 = vld [vmem:[#allocation27 + $0xf0] sm:$0xff]
    %v4389 = vld [vmem:[#allocation27 + $0xf8] sm:$0xff]
    %v4390 = vld [vmem:[#allocation27 + $0x100] sm:$0xff]
    %v4391 = vld [vmem:[#allocation27 + $0x108] sm:$0xff]
    %v4392 = vld [vmem:[#allocation27 + $0x110] sm:$0xff]
    %v4393 = vld [vmem:[#allocation27 + $0x118] sm:$0xff]
    %v4394 = vld [vmem:[#allocation27 + $0x120] sm:$0xff]
    %v4395 = vld [vmem:[#allocation27 + $0x128] sm:$0xff]
    %v4396 = vld [vmem:[#allocation27 + $0x130] sm:$0xff]
    %v4397 = vld [vmem:[#allocation27 + $0x138] sm:$0xff]
    %v4398 = vld [vmem:[#allocation27 + $0x140] sm:$0xff]
    %v4399 = vld [vmem:[#allocation27 + $0x148] sm:$0xff]
    %v4400 = vld [vmem:[#allocation27 + $0x150] sm:$0xff]
    %v4401 = vld [vmem:[#allocation27 + $0x158] sm:$0xff]
    %v4402 = vld [vmem:[#allocation27 + $0x160] sm:$0xff]
    %v4403 = vld [vmem:[#allocation27 + $0x168] sm:$0xff]
    %v4404 = vld [vmem:[#allocation27 + $0x170] sm:$0xff]
    %v4405 = vld [vmem:[#allocation27 + $0x178] sm:$0xff]
    %v4406 = vld [vmem:[#allocation27 + $0x180] sm:$0xff]
    %v4407 = vld [vmem:[#allocation27 + $0x188] sm:$0xff]
    %v4408 = vld [vmem:[#allocation27 + $0x190] sm:$0xff]
    %v4409 = vld [vmem:[#allocation27 + $0x198] sm:$0xff]
    %v4410 = vld [vmem:[#allocation27 + $0x1a0] sm:$0xff]
    %v4411 = vld [vmem:[#allocation27 + $0x1a8] sm:$0xff]
    %v4412 = vld [vmem:[#allocation27 + $0x1b0] sm:$0xff]
    %v4413 = vld [vmem:[#allocation27 + $0x1b8] sm:$0xff]
    %v4414 = vld [vmem:[#allocation27 + $0x1c0] sm:$0xff]
    %v4415 = vld [vmem:[#allocation27 + $0x1c8] sm:$0xff]
    %v4416 = vld [vmem:[#allocation27 + $0x1d0] sm:$0xff]
    %v4417 = vld [vmem:[#allocation27 + $0x1d8] sm:$0xff]
    %v4418 = vld [vmem:[#allocation27 + $0x1e0] sm:$0xff]
    %v4419 = vld [vmem:[#allocation27 + $0x1e8] sm:$0xff]
    %v4420 = vld [vmem:[#allocation27 + $0x1f0] sm:$0xff]
    %v4421 = vld [vmem:[#allocation27 + $0x1f8] sm:$0xff]
    %v4422 = vld [vmem:[#allocation27 + $0x200] sm:$0xff]
    %v4423 = vld [vmem:[#allocation27 + $0x208] sm:$0xff]
    %v4424 = vld [vmem:[#allocation27 + $0x210] sm:$0xff]
    %v4425 = vld [vmem:[#allocation27 + $0x218] sm:$0xff]
    %v4426 = vld [vmem:[#allocation27 + $0x220] sm:$0xff]
    %v4427 = vld [vmem:[#allocation27 + $0x228] sm:$0xff]
    %v4428 = vld [vmem:[#allocation27 + $0x230] sm:$0xff]
    %v4429 = vld [vmem:[#allocation27 + $0x238] sm:$0xff]
    %v4430 = vld [vmem:[#allocation27 + $0x240] sm:$0xff]
    %v4431 = vld [vmem:[#allocation27 + $0x248] sm:$0xff]
    %v4432 = vld [vmem:[#allocation27 + $0x250] sm:$0xff]
    %v4433 = vld [vmem:[#allocation27 + $0x258] sm:$0xff]
    %v4434 = vld [vmem:[#allocation27 + $0x260] sm:$0xff]
    %v4435 = vld [vmem:[#allocation27 + $0x268] sm:$0xff]
    %v4436 = vld [vmem:[#allocation27 + $0x270] sm:$0xff]
    %v4437 = vld [vmem:[#allocation27 + $0x278] sm:$0xff]
    %v4438 = vld [vmem:[#allocation28] sm:$0x1]
    %v4440 = vperm.slane %v4438, 0
    %4442 = vmatpush.msra.mxu0 %v4373
    %4443 = vmatpush.msra.mxu0 %v4372
    %4444 = vmatpush.msra.mxu0 %v4371
    %4445 = vmatpush.msra.mxu0 %v4370
    %4446 = vmatpush.msra.mxu0 %v4369
    %4447 = vmatpush.msra.mxu0 %v4368
    %4448 = vmatpush.msra.mxu0 %v4367
    %4449 = vmatpush.msra.mxu0 %v4366
    %4450 = vmatpush.msra.mxu0 %v4365
    %4451 = vmatpush.msra.mxu0 %v4364
    %4452 = vmatpush.msra.mxu0 %v4363
    %4453 = vmatpush.msra.mxu0 %v4362
    %4454 = vmatpush.msra.mxu0 %v4361
    %4455 = vmatpush.msra.mxu0 %v4360
    %4456 = vmatpush.msra.mxu0 %v4359
    %4457 = vmatpush.msra.mxu0 %v4358
    %4458 = vmatmul.f32.gmra.mxu0 %v4353
    %v4459 = vpop.f32.mrf.mxu0
    %v4460 = vadd.f32 %v4440, %v4459
    %4461 = vdwg.mxu0
    %4462 = vmatpush.msra.mxu0 %v4389
    %4463 = vmatpush.msra.mxu0 %v4388
    %4464 = vmatpush.msra.mxu0 %v4387
    %4465 = vmatpush.msra.mxu0 %v4386
    %4466 = vmatpush.msra.mxu0 %v4385
    %4467 = vmatpush.msra.mxu0 %v4384
    %4468 = vmatpush.msra.mxu0 %v4383
    %4469 = vmatpush.msra.mxu0 %v4382
    %4470 = vmatpush.msra.mxu0 %v4381
    %4471 = vmatpush.msra.mxu0 %v4380
    %4472 = vmatpush.msra.mxu0 %v4379
    %4473 = vmatpush.msra.mxu0 %v4378
    %4474 = vmatpush.msra.mxu0 %v4377
    %4475 = vmatpush.msra.mxu0 %v4376
    %4476 = vmatpush.msra.mxu0 %v4375
    %4477 = vmatpush.msra.mxu0 %v4374
    %4478 = vmatmul.f32.gmra.mxu0 %v4354
    %v4479 = vpop.f32.mrf.mxu0
    %v4480 = vadd.f32 %v4460, %v4479
    %4481 = vdwg.mxu0
    %4482 = vmatpush.msra.mxu0 %v4405
    %4483 = vmatpush.msra.mxu0 %v4404
    %4484 = vmatpush.msra.mxu0 %v4403
    %4485 = vmatpush.msra.mxu0 %v4402
    %4486 = vmatpush.msra.mxu0 %v4401
    %4487 = vmatpush.msra.mxu0 %v4400
    %4488 = vmatpush.msra.mxu0 %v4399
    %4489 = vmatpush.msra.mxu0 %v4398
    %4490 = vmatpush.msra.mxu0 %v4397
    %4491 = vmatpush.msra.mxu0 %v4396
    %4492 = vmatpush.msra.mxu0 %v4395
    %4493 = vmatpush.msra.mxu0 %v4394
    %4494 = vmatpush.msra.mxu0 %v4393
    %4495 = vmatpush.msra.mxu0 %v4392
    %4496 = vmatpush.msra.mxu0 %v4391
    %4497 = vmatpush.msra.mxu0 %v4390
    %4498 = vmatmul.f32.gmra.mxu0 %v4355
    %v4499 = vpop.f32.mrf.mxu0
    %v4500 = vadd.f32 %v4480, %v4499
    %4501 = vdwg.mxu0
    %4502 = vmatpush.msra.mxu0 %v4421
    %4503 = vmatpush.msra.mxu0 %v4420
    %4504 = vmatpush.msra.mxu0 %v4419
    %4505 = vmatpush.msra.mxu0 %v4418
    %4506 = vmatpush.msra.mxu0 %v4417
    %4507 = vmatpush.msra.mxu0 %v4416
    %4508 = vmatpush.msra.mxu0 %v4415
    %4509 = vmatpush.msra.mxu0 %v4414
    %4510 = vmatpush.msra.mxu0 %v4413
    %4511 = vmatpush.msra.mxu0 %v4412
    %4512 = vmatpush.msra.mxu0 %v4411
    %4513 = vmatpush.msra.mxu0 %v4410
    %4514 = vmatpush.msra.mxu0 %v4409
    %4515 = vmatpush.msra.mxu0 %v4408
    %4516 = vmatpush.msra.mxu0 %v4407
    %4517 = vmatpush.msra.mxu0 %v4406
    %4518 = vmatmul.f32.gmra.mxu0 %v4356
    %v4519 = vpop.f32.mrf.mxu0
    %v4520 = vadd.f32 %v4500, %v4519
    %4521 = vdwg.mxu0
    %4522 = vmatpush.msra.mxu0 %v4437
    %4523 = vmatpush.msra.mxu0 %v4436
    %4524 = vmatpush.msra.mxu0 %v4435
    %4525 = vmatpush.msra.mxu0 %v4434
    %4526 = vmatpush.msra.mxu0 %v4433
    %4527 = vmatpush.msra.mxu0 %v4432
    %4528 = vmatpush.msra.mxu0 %v4431
    %4529 = vmatpush.msra.mxu0 %v4430
    %4530 = vmatpush.msra.mxu0 %v4429
    %4531 = vmatpush.msra.mxu0 %v4428
    %4532 = vmatpush.msra.mxu0 %v4427
    %4533 = vmatpush.msra.mxu0 %v4426
    %4534 = vmatpush.msra.mxu0 %v4425
    %4535 = vmatpush.msra.mxu0 %v4424
    %4536 = vmatpush.msra.mxu0 %v4423
    %4537 = vmatpush.msra.mxu0 %v4422
    %4538 = vmatmul.f32.gmra.mxu0 %v4357
    %v4539 = vpop.f32.mrf.mxu0
    %v4540 = vadd.f32 %v4520, %v4539
    %4541 = vdwg.mxu0
    %v4542 = vmax.f32 %v4540, 0.0
    %4543 = vst [vmem:[%s20] sm:$0xff] %v4542
    // Predicated region
    $region154: #{concept_learner_gru_forward.1} parent=1 // pred_check
      _
    $region155: #{concept_learner_gru_forward.1} parent=1 // pred_check_branch
      %4545 = sbr.rel (0) target = $region157
    $region156: #{concept_learner_gru_forward.1} parent=1 // pred_region
      _
    $region157: #{concept_learner_gru_forward.1} parent=1 // pred_fallthru
      _
    // Predicated region
    $region158: #{concept_learner_gru_forward.1} parent=1 // pred_check
      _
    $region159: #{concept_learner_gru_forward.1} parent=1 // pred_check_branch
      %4547 = sbr.rel (0) target = $region161
    $region160: #{concept_learner_gru_forward.1} parent=1 // pred_region
      _
    $region161: #{concept_learner_gru_forward.1} parent=1 // pred_fallthru
      _
    %4548 = vsyncpa [#allocation3], 1
    %4549 = vsyncpa [#allocation5], 1
    %4550 = vsyncpa [#allocation8], 1
    %4551 = vsyncpa [#allocation11], 1
    %4552 = vsyncpa [#allocation14], 1
    %4553 = vsyncpa [#allocation17], 1
    %4554 = vsyncpa [#allocation20], 1
    %4555 = vsyncpa [#allocation23], 1
    %4556 = vsyncpa [#allocation26], 1
    %4557 = vsyncpa [#allocation29], 1

</llo_original>
